<compile_context>
chip_gen: v7x
topology: tpu7x:2x2x1
jax: 0.10.0
libtpu: 0.0.40
codegen_flags: <defaults>
</compile_context>

<pallas_src>
import functools

import jax
import jax.numpy as jnp
from jax.experimental import pallas as pl
from jax.experimental.pallas import tpu as pltpu


# ------------------------------- fused kernel -------------------------------

def _rinet_kernel(a_ref, a2_ref, a3_ref, ahat_ref,
                  x0_ref, x1_ref, x2_ref, x3_ref,
                  w1_ref, b1_ref, w2_ref, b2_ref,
                  out_ref,
                  emb_scr, hw2_scr, acc_d, acc_c,
                  *, num_classes):
    s = pl.program_id(0)            # stage: 0 = context, 1 = GCN layer 1, 2 = GCN layer 2
    i = pl.program_id(1)            # output row tile
    k = pl.program_id(2)            # contraction (node) tile  -- reduction axis, last
    nk = pl.num_programs(2)

    tm = acc_d.shape[0]
    tk = a_ref.shape[1]
    row0 = pl.multiple_of(i * tm, tm)
    col0 = pl.multiple_of(k * tk, tk)

    # ------------- stage 0: context vectors -> emb_scr (VMEM only) -------------
    @pl.when(s == 0)
    def _stage0():
        @pl.when(k == 0)
        def _():
            acc_d[...] = jnp.zeros_like(acc_d)

        acc = acc_d[...]
        acc += jnp.dot(a_ref[...].astype(jnp.float32),
                       x1_ref[pl.ds(col0, tk), :],          # c1 * x
                       preferred_element_type=jnp.float32)
        acc += jnp.dot(a2_ref[...].astype(jnp.float32),
                       x2_ref[pl.ds(col0, tk), :],          # c2 * roll(x, 1)
                       preferred_element_type=jnp.float32)
        acc += jnp.dot(a3_ref[...].astype(jnp.float32),
                       x3_ref[pl.ds(col0, tk), :],          # c3 * roll(x, 2)
                       preferred_element_type=jnp.float32)
        acc_d[...] = acc

        @pl.when(k == nk - 1)
        def _():
            # + zeroth-order term (c0 * x) and commit the emb row tile.
            emb_scr[pl.ds(row0, tm), :] = acc_d[...] + x0_ref[pl.ds(row0, tm), :]

    # ---- stage 1: relu((Ahat @ emb) @ W1 + b1) @ W2pad -> hw2_scr (VMEM only) ----
    # Propagate first (contracts over D=16), then apply W1 — mathematically identical
    # to GCNConv's weight-first order but half the N^2-scaled MXU work since D < H.
    @pl.when(s == 1)
    def _stage1():
        @pl.when(k == 0)
        def _():
            acc_d[...] = jnp.zeros_like(acc_d)

        acc_d[...] += jnp.dot(ahat_ref[...].astype(jnp.float32),
                              emb_scr[pl.ds(col0, tk), :],
                              preferred_element_type=jnp.float32)

        @pl.when(k == nk - 1)
        def _():
            h = jnp.maximum(
                jnp.dot(acc_d[...], w1_ref[...],
                        preferred_element_type=jnp.float32) + b1_ref[...],
                0.0)
            # Apply the (padded) classifier weight once per node, so stage 2 is a pure
            # Ahat propagation.  h itself never needs to be materialized.
            hw2_scr[pl.ds(row0, tm), :] = jnp.dot(
                h, w2_ref[...], preferred_element_type=jnp.float32)

    # -------------- stage 2: log_softmax(Ahat @ hw2 + b2pad) -> out --------------
    @pl.when(s == 2)
    def _stage2():
        @pl.when(k == 0)
        def _():
            acc_c[...] = jnp.zeros_like(acc_c)

        acc_c[...] += jnp.dot(ahat_ref[...].astype(jnp.float32),
                              hw2_scr[pl.ds(col0, tk), :],
                              preferred_element_type=jnp.float32)

        @pl.when(k == nk - 1)
        def _():
            z = acc_c[...] + b2_ref[...]
            # Mask the lane-padding columns to ~-inf so the log_softmax over the
            # 128-wide (lane-dense) block equals the log_softmax over C real classes.
            col = jax.lax.broadcasted_iota(jnp.int32, z.shape, 1)
            z = jnp.where(col < num_classes, z, -1e30)
            m = jnp.max(z, axis=1, keepdims=True)
            lse = jnp.log(jnp.sum(jnp.exp(z - m), axis=1, keepdims=True))
            out_ref[...] = (z - m) - lse


# --------------------------------- wrapper ----------------------------------

def rinet_forward(params, x, a_bf, a2_bf, a3_bf, ahat_bf, *, tm=128, tk=128):
    # Tile sizing: for large graphs raise these (v5e/v6e: ~(512, 512-1024); v7x: keep the
    # resident footprint under ~48 MiB of its 64 MiB VMEM, e.g. (256-384, 1024) bf16 tiles).
    n, d = x.shape
    hdim = params["w1"].shape[1]
    c = params["w2"].shape[1]
    c_pad = pl.cdiv(c, 128) * 128
    tm = min(tm, n)
    tk = min(tk, n)
    assert n % tm == 0 and n % tk == 0, "N must be a multiple of the tile sizes"

    coefs = params["coefs"]  # (4,) relu-normalized order weights
    # Fold the order coefficients into the (tiny) dense RHS operands; the rolls
    # (torch.roll(x, {1,2}, dim=1)) are done here because the feature axis (D=16) is far
    # narrower than the 128-lane XLU rotate path.
    # TODO(synk): use pltpu.roll on the feature axis inside the kernel once D >= 128.
    x0 = coefs[0] * x
    x1 = coefs[1] * x
    x2 = coefs[2] * jnp.roll(x, 1, axis=1)
    x3 = coefs[3] * jnp.roll(x, 2, axis=1)

    # Lane-dense output: pad the classifier to a 128-wide output block (unmasked vst);
    # the padded logits are forced to ~-inf inside the kernel before the softmax.
    w2p = jnp.zeros((hdim, c_pad), jnp.float32).at[:, :c].set(params["w2"])
    b2p = jnp.zeros((1, c_pad), jnp.float32).at[:, :c].set(params["b2"])

    n_i = n // tm
    n_k = n // tk

    # Stage-gated index maps: each adjacency is DMA'd only during the stage that uses it.
    adj_ctx = lambda s, i, k: (jnp.where(s == 0, i, 0), jnp.where(s == 0, k, 0))
    adj_prop = lambda s, i, k: (jnp.where(s == 0, 0, i), jnp.where(s == 0, 0, k))
    resident = lambda s, i, k: (0, 0)   # fetched once, stays resident in VMEM

    grid_spec = pltpu.PrefetchScalarGridSpec(
        num_scalar_prefetch=0,
        grid=(3, n_i, n_k),
        in_specs=[
            pl.BlockSpec((tm, tk), adj_ctx),        # A            (bf16)
            pl.BlockSpec((tm, tk), adj_ctx),        # A@A, diag=0  (bf16)
            pl.BlockSpec((tm, tk), adj_ctx),        # A^2@A,diag=0 (bf16)
            pl.BlockSpec((tm, tk), adj_prop),       # Ahat         (bf16)
            pl.BlockSpec((n, d), resident),         # c0 * x
            pl.BlockSpec((n, d), resident),         # c1 * x
            pl.BlockSpec((n, d), resident),         # c2 * roll(x, 1)
            pl.BlockSpec((n, d), resident),         # c3 * roll(x, 2)
            pl.BlockSpec((d, hdim), resident),      # W1
            pl.BlockSpec((1, hdim), resident),      # b1
            pl.BlockSpec((hdim, c_pad), resident),  # W2 (zero-padded to 128 cols)
            pl.BlockSpec((1, c_pad), resident),     # b2 (zero-padded to 128 cols)
        ],
        out_specs=pl.BlockSpec(
            (tm, c_pad), lambda s, i, k: (jnp.where(s == 2, i, 0), 0)),
        scratch_shapes=[
            pltpu.VMEM((n, d), jnp.float32),        # emb          (never touches HBM)
            pltpu.VMEM((n, c_pad), jnp.float32),    # relu(h) @ W2 (never touches HBM)
            pltpu.VMEM((tm, d), jnp.float32),       # row-tile accumulator (stages 0/1)
            pltpu.VMEM((tm, c_pad), jnp.float32),   # row-tile accumulator (stage 2)
        ],
    )

    out_padded = pl.pallas_call(
        functools.partial(_rinet_kernel, num_classes=c),
        out_shape=jax.ShapeDtypeStruct((n, c_pad), jnp.float32),
        grid_spec=grid_spec,
        # Stages communicate through persistent VMEM scratch, so every axis must stay
        # sequential ("arbitrary"); splitting the row axis across v7x's 2 TCs would break
        # the cross-stage dependency.
        compiler_params=pltpu.CompilerParams(
            dimension_semantics=("arbitrary", "arbitrary", "arbitrary")),
    )(a_bf, a2_bf, a3_bf, ahat_bf, x0, x1, x2, x3,
      params["w1"], params["b1"], w2p, b2p)

    return out_padded[:, :c]


# --------------------------- parameter / graph glue --------------------------

def build_adjacencies(edge_index, num_nodes):
    """Dense equivalents of sparse_adj_mat, its square/cube, and the GCN-normalized A."""
    src, dst = edge_index
    eye = jnp.eye(num_nodes, dtype=jnp.float32)
    a = jnp.zeros((num_nodes, num_nodes), jnp.float32)
    a = a.at[src, dst].set(1.0)
    a = a.at[dst, src].set(1.0)                 # undirected (is_directed=False)
    a = a * (1.0 - eye)                         # no self loops
    a2 = (a @ a) * (1.0 - eye)                  # fill_diag(0)
    a3 = (a2 @ a) * (1.0 - eye)                 # fill_diag(0)
    atilde = a + eye                            # GCNConv: D~^-1/2 (A + I) D~^-1/2
    dinv = 1.0 / jnp.sqrt(jnp.sum(atilde, axis=1))
    ahat = dinv[:, None] * atilde * dinv[None, :]
    return a, a2, a3, ahat


def glorot(key, shape):
    limit = (6.0 / (shape[0] + shape[1])) ** 0.5
    return jax.random.uniform(key, shape, jnp.float32, -limit, limit)


def init_params(key, d_in, hidden, num_classes):
    k1, k2, k3 = jax.random.split(key, 3)
    w1 = glorot(k1, (d_in, hidden))
    b1 = jnp.zeros((1, hidden), jnp.float32)
    w2 = glorot(k2, (hidden, num_classes))
    b2 = jnp.zeros((1, num_classes), jnp.float32)
    # order weights: zeroth_order filled with 1.0; fst/snd/trd ~ N(0,1) (Embedding default)
    raw = jnp.concatenate([jnp.ones((1,), jnp.float32),
                           jax.random.normal(k3, (3,), jnp.float32)])
    rel = jnp.maximum(raw, 0.0)
    coefs = rel / (jnp.sum(rel) + 1e-6)
    return dict(w1=w1, b1=b1, w2=w2, b2=b2, coefs=coefs)


def rinet_reference(params, x, a_bf, a2_bf, a3_bf, ahat_bf):
    """Pure-JAX reference (same bf16-stored adjacencies, f32 math)."""
    a, a2, a3, ahat = (m.astype(jnp.float32) for m in (a_bf, a2_bf, a3_bf, ahat_bf))
    cf = params["coefs"]
    emb = (cf[0] * x + cf[1] * (a @ x)
           + cf[2] * (a2 @ jnp.roll(x, 1, axis=1))
           + cf[3] * (a3 @ jnp.roll(x, 2, axis=1)))
    h = jax.nn.relu(ahat @ (emb @ params["w1"]) + params["b1"])
    z = ahat @ (h @ params["w2"]) + params["b2"]
    return jax.nn.log_softmax(z, axis=1)


# ------------------------------------ main -----------------------------------

if __name__ == "__main__":
    N, D, H, C, E = 256, 16, 32, 4, 512
    key = jax.random.PRNGKey(0)
    kx, ke, kp = jax.random.split(key, 3)

    # deterministic random index vectors
    x = jax.random.normal(kx, (N, D), jnp.float32)

    # deterministic random undirected edge set (edge_index: (2, E))
    src = jax.random.randint(ke, (E,), 0, N)
    dst = jax.random.randint(jax.random.fold_in(ke, 1), (E,), 0, N)
    edge_index = jnp.stack([src, dst])

    a, a2, a3, ahat = build_adjacencies(edge_index, N)
    # bf16 adjacency storage: A/A2/A3 entries are small integers (exact); Ahat ~1e-3 rel rounding.
    a_bf = a.astype(jnp.bfloat16)
    a2_bf = a2.astype(jnp.bfloat16)
    a3_bf = a3.astype(jnp.bfloat16)
    ahat_bf = ahat.astype(jnp.bfloat16)

    params = init_params(kp, D, H, C)

    out = jax.jit(rinet_forward)(params, x, a_bf, a2_bf, a3_bf, ahat_bf)
    out = jax.block_until_ready(out)

    ref = rinet_reference(params, x, a_bf, a2_bf, a3_bf, ahat_bf)

    assert out.shape == (N, C)
    # rows of log_softmax exponentiate-sum to ~1
    assert bool(jnp.allclose(jnp.sum(jnp.exp(out), axis=1), 1.0, atol=1e-4))
    # match the pure-JAX reference (tolerance covers matmul-precision / reassociation noise)
    assert bool(jnp.allclose(out, ref, atol=1e-1, rtol=1e-1))
    print("KERNEL_OK")
</pallas_src>

<mosaic_0001>
module attributes {stable_mosaic.version = 11 : i64} {
  func.func @_rinet_kernel(%arg0: i32, %arg1: i32, %arg2: i32, %arg3: memref<128x128xbf16, #tpu.memory_space<vmem>>, %arg4: memref<128x128xbf16, #tpu.memory_space<vmem>>, %arg5: memref<128x128xbf16, #tpu.memory_space<vmem>>, %arg6: memref<128x128xbf16, #tpu.memory_space<vmem>>, %arg7: memref<256x16xf32, #tpu.memory_space<vmem>>, %arg8: memref<256x16xf32, #tpu.memory_space<vmem>>, %arg9: memref<256x16xf32, #tpu.memory_space<vmem>>, %arg10: memref<256x16xf32, #tpu.memory_space<vmem>>, %arg11: memref<16x32xf32, #tpu.memory_space<vmem>>, %arg12: memref<1x32xf32, #tpu.memory_space<vmem>>, %arg13: memref<32x128xf32, #tpu.memory_space<vmem>>, %arg14: memref<1x128xf32, #tpu.memory_space<vmem>>, %arg15: memref<128x128xf32, #tpu.memory_space<vmem>>, %arg16: memref<256x16xf32, #tpu.memory_space<vmem>>, %arg17: memref<256x128xf32, #tpu.memory_space<vmem>>, %arg18: memref<128x16xf32, #tpu.memory_space<vmem>>, %arg19: memref<128x128xf32, #tpu.memory_space<vmem>>) attributes {dimension_semantics = [#tpu.dimension_semantics<arbitrary>, #tpu.dimension_semantics<arbitrary>, #tpu.dimension_semantics<arbitrary>], iteration_bounds = array<i64: 3, 2, 2>, scalar_prefetch = 0 : i64, scratch_operands = 4 : i64, tpu.core_type = #tpu.core_type<tc>, window_params = [{transform_indices = @transform_0, window_bounds = array<i64: 128, 128>}, {transform_indices = @transform_1, window_bounds = array<i64: 128, 128>}, {transform_indices = @transform_2, window_bounds = array<i64: 128, 128>}, {transform_indices = @transform_3, window_bounds = array<i64: 128, 128>}, {pipeline_mode = #tpu.pipeline_mode<synchronous>, transform_indices = @transform_4, window_bounds = array<i64: 256, 16>}, {pipeline_mode = #tpu.pipeline_mode<synchronous>, transform_indices = @transform_5, window_bounds = array<i64: 256, 16>}, {pipeline_mode = #tpu.pipeline_mode<synchronous>, transform_indices = @transform_6, window_bounds = array<i64: 256, 16>}, {pipeline_mode = #tpu.pipeline_mode<synchronous>, transform_indices = @transform_7, window_bounds = array<i64: 256, 16>}, {pipeline_mode = #tpu.pipeline_mode<synchronous>, transform_indices = @transform_8, window_bounds = array<i64: 16, 32>}, {pipeline_mode = #tpu.pipeline_mode<synchronous>, transform_indices = @transform_9, window_bounds = array<i64: 1, 32>}, {pipeline_mode = #tpu.pipeline_mode<synchronous>, transform_indices = @transform_10, window_bounds = array<i64: 32, 128>}, {pipeline_mode = #tpu.pipeline_mode<synchronous>, transform_indices = @transform_11, window_bounds = array<i64: 1, 128>}, {transform_indices = @transform_12, window_bounds = array<i64: 128, 128>}]} {
    %c128_i32 = arith.constant 128 : i32
    %0 = arith.muli %arg1, %c128_i32 : i32
    %1 = tpu.assume_multiple %0, 128 : i32
    %c128_i32_0 = arith.constant 128 : i32
    %2 = arith.muli %arg2, %c128_i32_0 : i32
    %3 = tpu.assume_multiple %2, 128 : i32
    %c0_i32 = arith.constant 0 : i32
    %4 = arith.cmpi eq, %arg0, %c0_i32 : i32
    %5 = arith.extui %4 : i1 to i32
    %c0_i32_1 = arith.constant 0 : i32
    %6 = arith.cmpi ne, %5, %c0_i32_1 : i32
    scf.if %6 {
      %c0_i32_4 = arith.constant 0 : i32
      %13 = arith.cmpi eq, %arg2, %c0_i32_4 : i32
      %14 = arith.extui %13 : i1 to i32
      %c0_i32_5 = arith.constant 0 : i32
      %15 = arith.cmpi ne, %14, %c0_i32_5 : i32
      scf.if %15 {
        %cst_22 = arith.constant 0.000000e+00 : f32
        %39 = vector.broadcast %cst_22 : f32 to vector<128x16xf32>
        %c0_23 = arith.constant 0 : index
        %c0_24 = arith.constant 0 : index
        %40 = vector.load %arg18[%c0_23, %c0_24] : memref<128x16xf32, #tpu.memory_space<vmem>>, vector<128x16xf32>
        tpu.vector_store %arg18[%c0_23, %c0_24], %39 {strides = array<i32>} : memref<128x16xf32, #tpu.memory_space<vmem>>, vector<128x16xf32>,
      } else {
      }
      %c0 = arith.constant 0 : index
      %c0_6 = arith.constant 0 : index
      %16 = vector.load %arg18[%c0, %c0_6] : memref<128x16xf32, #tpu.memory_space<vmem>>, vector<128x16xf32>
      %c0_7 = arith.constant 0 : index
      %c0_8 = arith.constant 0 : index
      %17 = vector.load %arg3[%c0_7, %c0_8] : memref<128x128xbf16, #tpu.memory_space<vmem>>, vector<128x128xbf16>
      %18 = arith.extf %17 : vector<128x128xbf16> to vector<128x128xf32>
      %19 = arith.index_cast %3 : i32 to index
      %c0_9 = arith.constant 0 : index
      %20 = vector.load %arg8[%19, %c0_9] : memref<256x16xf32, #tpu.memory_space<vmem>>, vector<128x16xf32>
      %cst = arith.constant dense<0.000000e+00> : vector<128x16xf32>
      %21 = tpu.matmul %18, %20, %cst {dimension_numbers = #tpu.dot_dimension_numbers<[1], [0], [0], [1], [0, 0, 1, 1], [], []>} : vector<128x128xf32>, vector<128x16xf32>, vector<128x16xf32> -> vector<128x16xf32>
      %22 = arith.addf %16, %21 : vector<128x16xf32>
      %c0_10 = arith.constant 0 : index
      %c0_11 = arith.constant 0 : index
      %23 = vector.load %arg4[%c0_10, %c0_11] : memref<128x128xbf16, #tpu.memory_space<vmem>>, vector<128x128xbf16>
      %24 = arith.extf %23 : vector<128x128xbf16> to vector<128x128xf32>
      %25 = arith.index_cast %3 : i32 to index
      %c0_12 = arith.constant 0 : index
      %26 = vector.load %arg9[%25, %c0_12] : memref<256x16xf32, #tpu.memory_space<vmem>>, vector<128x16xf32>
      %cst_13 = arith.constant dense<0.000000e+00> : vector<128x16xf32>
      %27 = tpu.matmul %24, %26, %cst_13 {dimension_numbers = #tpu.dot_dimension_numbers<[1], [0], [0], [1], [0, 0, 1, 1], [], []>} : vector<128x128xf32>, vector<128x16xf32>, vector<128x16xf32> -> vector<128x16xf32>
      %28 = arith.addf %22, %27 : vector<128x16xf32>
      %c0_14 = arith.constant 0 : index
      %c0_15 = arith.constant 0 : index
      %29 = vector.load %arg5[%c0_14, %c0_15] : memref<128x128xbf16, #tpu.memory_space<vmem>>, vector<128x128xbf16>
      %30 = arith.extf %29 : vector<128x128xbf16> to vector<128x128xf32>
      %31 = arith.index_cast %3 : i32 to index
      %c0_16 = arith.constant 0 : index
      %32 = vector.load %arg10[%31, %c0_16] : memref<256x16xf32, #tpu.memory_space<vmem>>, vector<128x16xf32>
      %cst_17 = arith.constant dense<0.000000e+00> : vector<128x16xf32>
      %33 = tpu.matmul %30, %32, %cst_17 {dimension_numbers = #tpu.dot_dimension_numbers<[1], [0], [0], [1], [0, 0, 1, 1], [], []>} : vector<128x128xf32>, vector<128x16xf32>, vector<128x16xf32> -> vector<128x16xf32>
      %34 = arith.addf %28, %33 : vector<128x16xf32>
      %c0_18 = arith.constant 0 : index
      %c0_19 = arith.constant 0 : index
      %35 = vector.load %arg18[%c0_18, %c0_19] : memref<128x16xf32, #tpu.memory_space<vmem>>, vector<128x16xf32>
      tpu.vector_store %arg18[%c0_18, %c0_19], %34 {strides = array<i32>} : memref<128x16xf32, #tpu.memory_space<vmem>>, vector<128x16xf32>,
      %c1_i32_20 = arith.constant 1 : i32
      %36 = arith.cmpi eq, %arg2, %c1_i32_20 : i32
      %37 = arith.extui %36 : i1 to i32
      %c0_i32_21 = arith.constant 0 : i32
      %38 = arith.cmpi ne, %37, %c0_i32_21 : i32
      scf.if %38 {
        %c0_22 = arith.constant 0 : index
        %c0_23 = arith.constant 0 : index
        %39 = vector.load %arg18[%c0_22, %c0_23] : memref<128x16xf32, #tpu.memory_space<vmem>>, vector<128x16xf32>
        %40 = arith.index_cast %1 : i32 to index
        %c0_24 = arith.constant 0 : index
        %41 = vector.load %arg7[%40, %c0_24] : memref<256x16xf32, #tpu.memory_space<vmem>>, vector<128x16xf32>
        %42 = arith.addf %39, %41 : vector<128x16xf32>
        %43 = arith.index_cast %1 : i32 to index
        %c0_25 = arith.constant 0 : index
        %44 = vector.load %arg16[%43, %c0_25] : memref<256x16xf32, #tpu.memory_space<vmem>>, vector<128x16xf32>
        tpu.vector_store %arg16[%43, %c0_25], %42 {strides = array<i32>} : memref<256x16xf32, #tpu.memory_space<vmem>>, vector<128x16xf32>,
      } else {
      }
    } else {
    }
    %c1_i32 = arith.constant 1 : i32
    %7 = arith.cmpi eq, %arg0, %c1_i32 : i32
    %8 = arith.extui %7 : i1 to i32
    %c0_i32_2 = arith.constant 0 : i32
    %9 = arith.cmpi ne, %8, %c0_i32_2 : i32
    scf.if %9 {
      %c0_i32_4 = arith.constant 0 : i32
      %13 = arith.cmpi eq, %arg2, %c0_i32_4 : i32
      %14 = arith.extui %13 : i1 to i32
      %c0_i32_5 = arith.constant 0 : i32
      %15 = arith.cmpi ne, %14, %c0_i32_5 : i32
      scf.if %15 {
        %cst_14 = arith.constant 0.000000e+00 : f32
        %27 = vector.broadcast %cst_14 : f32 to vector<128x16xf32>
        %c0_15 = arith.constant 0 : index
        %c0_16 = arith.constant 0 : index
        %28 = vector.load %arg18[%c0_15, %c0_16] : memref<128x16xf32, #tpu.memory_space<vmem>>, vector<128x16xf32>
        tpu.vector_store %arg18[%c0_15, %c0_16], %27 {strides = array<i32>} : memref<128x16xf32, #tpu.memory_space<vmem>>, vector<128x16xf32>,
      } else {
      }
      %c0 = arith.constant 0 : index
      %c0_6 = arith.constant 0 : index
      %16 = vector.load %arg18[%c0, %c0_6] : memref<128x16xf32, #tpu.memory_space<vmem>>, vector<128x16xf32>
      %c0_7 = arith.constant 0 : index
      %c0_8 = arith.constant 0 : index
      %17 = vector.load %arg6[%c0_7, %c0_8] : memref<128x128xbf16, #tpu.memory_space<vmem>>, vector<128x128xbf16>
      %18 = arith.extf %17 : vector<128x128xbf16> to vector<128x128xf32>
      %19 = arith.index_cast %3 : i32 to index
      %c0_9 = arith.constant 0 : index
      %20 = vector.load %arg16[%19, %c0_9] : memref<256x16xf32, #tpu.memory_space<vmem>>, vector<128x16xf32>
      %cst = arith.constant dense<0.000000e+00> : vector<128x16xf32>
      %21 = tpu.matmul %18, %20, %cst {dimension_numbers = #tpu.dot_dimension_numbers<[1], [0], [0], [1], [0, 0, 1, 1], [], []>} : vector<128x128xf32>, vector<128x16xf32>, vector<128x16xf32> -> vector<128x16xf32>
      %22 = arith.addf %16, %21 : vector<128x16xf32>
      %c0_10 = arith.constant 0 : index
      %c0_11 = arith.constant 0 : index
      %23 = vector.load %arg18[%c0_10, %c0_11] : memref<128x16xf32, #tpu.memory_space<vmem>>, vector<128x16xf32>
      tpu.vector_store %arg18[%c0_10, %c0_11], %22 {strides = array<i32>} : memref<128x16xf32, #tpu.memory_space<vmem>>, vector<128x16xf32>,
      %c1_i32_12 = arith.constant 1 : i32
      %24 = arith.cmpi eq, %arg2, %c1_i32_12 : i32
      %25 = arith.extui %24 : i1 to i32
      %c0_i32_13 = arith.constant 0 : i32
      %26 = arith.cmpi ne, %25, %c0_i32_13 : i32
      scf.if %26 {
        %c0_14 = arith.constant 0 : index
        %c0_15 = arith.constant 0 : index
        %27 = vector.load %arg18[%c0_14, %c0_15] : memref<128x16xf32, #tpu.memory_space<vmem>>, vector<128x16xf32>
        %c0_16 = arith.constant 0 : index
        %c0_17 = arith.constant 0 : index
        %28 = vector.load %arg11[%c0_16, %c0_17] : memref<16x32xf32, #tpu.memory_space<vmem>>, vector<16x32xf32>
        %cst_18 = arith.constant dense<0.000000e+00> : vector<128x32xf32>
        %29 = tpu.matmul %27, %28, %cst_18 {dimension_numbers = #tpu.dot_dimension_numbers<[1], [0], [0], [1], [0, 0, 1, 1], [], []>} : vector<128x16xf32>, vector<16x32xf32>, vector<128x32xf32> -> vector<128x32xf32>
        %c0_19 = arith.constant 0 : index
        %c0_20 = arith.constant 0 : index
        %30 = vector.load %arg12[%c0_19, %c0_20] : memref<1x32xf32, #tpu.memory_space<vmem>>, vector<1x32xf32>
        %31 = vector.broadcast %30 : vector<1x32xf32> to vector<128x32xf32>
        %32 = arith.addf %29, %31 : vector<128x32xf32>
        %cst_21 = arith.constant 0.000000e+00 : f32
        %33 = vector.broadcast %cst_21 : f32 to vector<128x32xf32>
        %34 = arith.maximumf %32, %33 : vector<128x32xf32>
        %c0_22 = arith.constant 0 : index
        %c0_23 = arith.constant 0 : index
        %35 = vector.load %arg13[%c0_22, %c0_23] : memref<32x128xf32, #tpu.memory_space<vmem>>, vector<32x128xf32>
        %cst_24 = arith.constant dense<0.000000e+00> : vector<128x128xf32>
        %36 = tpu.matmul %34, %35, %cst_24 {dimension_numbers = #tpu.dot_dimension_numbers<[1], [0], [0], [1], [0, 0, 1, 1], [], []>} : vector<128x32xf32>, vector<32x128xf32>, vector<128x128xf32> -> vector<128x128xf32>
        %37 = arith.index_cast %1 : i32 to index
        %c0_25 = arith.constant 0 : index
        %38 = vector.load %arg17[%37, %c0_25] : memref<256x128xf32, #tpu.memory_space<vmem>>, vector<128x128xf32>
        tpu.vector_store %arg17[%37, %c0_25], %36 {strides = array<i32>} : memref<256x128xf32, #tpu.memory_space<vmem>>, vector<128x128xf32>,
      } else {
      }
    } else {
    }
    %c2_i32 = arith.constant 2 : i32
    %10 = arith.cmpi eq, %arg0, %c2_i32 : i32
    %11 = arith.extui %10 : i1 to i32
    %c0_i32_3 = arith.constant 0 : i32
    %12 = arith.cmpi ne, %11, %c0_i32_3 : i32
    scf.if %12 {
      %c0_i32_4 = arith.constant 0 : i32
      %13 = arith.cmpi eq, %arg2, %c0_i32_4 : i32
      %14 = arith.extui %13 : i1 to i32
      %c0_i32_5 = arith.constant 0 : i32
      %15 = arith.cmpi ne, %14, %c0_i32_5 : i32
      scf.if %15 {
        %cst_14 = arith.constant 0.000000e+00 : f32
        %27 = vector.broadcast %cst_14 : f32 to vector<128x128xf32>
        %c0_15 = arith.constant 0 : index
        %c0_16 = arith.constant 0 : index
        %28 = vector.load %arg19[%c0_15, %c0_16] : memref<128x128xf32, #tpu.memory_space<vmem>>, vector<128x128xf32>
        tpu.vector_store %arg19[%c0_15, %c0_16], %27 {strides = array<i32>} : memref<128x128xf32, #tpu.memory_space<vmem>>, vector<128x128xf32>,
      } else {
      }
      %c0 = arith.constant 0 : index
      %c0_6 = arith.constant 0 : index
      %16 = vector.load %arg19[%c0, %c0_6] : memref<128x128xf32, #tpu.memory_space<vmem>>, vector<128x128xf32>
      %c0_7 = arith.constant 0 : index
      %c0_8 = arith.constant 0 : index
      %17 = vector.load %arg6[%c0_7, %c0_8] : memref<128x128xbf16, #tpu.memory_space<vmem>>, vector<128x128xbf16>
      %18 = arith.extf %17 : vector<128x128xbf16> to vector<128x128xf32>
      %19 = arith.index_cast %3 : i32 to index
      %c0_9 = arith.constant 0 : index
      %20 = vector.load %arg17[%19, %c0_9] : memref<256x128xf32, #tpu.memory_space<vmem>>, vector<128x128xf32>
      %cst = arith.constant dense<0.000000e+00> : vector<128x128xf32>
      %21 = tpu.matmul %18, %20, %cst {dimension_numbers = #tpu.dot_dimension_numbers<[1], [0], [0], [1], [0, 0, 1, 1], [], []>} : vector<128x128xf32>, vector<128x128xf32>, vector<128x128xf32> -> vector<128x128xf32>
      %22 = arith.addf %16, %21 : vector<128x128xf32>
      %c0_10 = arith.constant 0 : index
      %c0_11 = arith.constant 0 : index
      %23 = vector.load %arg19[%c0_10, %c0_11] : memref<128x128xf32, #tpu.memory_space<vmem>>, vector<128x128xf32>
      tpu.vector_store %arg19[%c0_10, %c0_11], %22 {strides = array<i32>} : memref<128x128xf32, #tpu.memory_space<vmem>>, vector<128x128xf32>,
      %c1_i32_12 = arith.constant 1 : i32
      %24 = arith.cmpi eq, %arg2, %c1_i32_12 : i32
      %25 = arith.extui %24 : i1 to i32
      %c0_i32_13 = arith.constant 0 : i32
      %26 = arith.cmpi ne, %25, %c0_i32_13 : i32
      scf.if %26 {
        %c0_14 = arith.constant 0 : index
        %c0_15 = arith.constant 0 : index
        %27 = vector.load %arg19[%c0_14, %c0_15] : memref<128x128xf32, #tpu.memory_space<vmem>>, vector<128x128xf32>
        %c0_16 = arith.constant 0 : index
        %c0_17 = arith.constant 0 : index
        %28 = vector.load %arg14[%c0_16, %c0_17] : memref<1x128xf32, #tpu.memory_space<vmem>>, vector<1x128xf32>
        %29 = vector.broadcast %28 : vector<1x128xf32> to vector<128x128xf32>
        %30 = arith.addf %27, %29 : vector<128x128xf32>
        %31 = tpu.iota {dimensions = array<i32: 1>} : vector<128x128xi32>
        %c4_i32 = arith.constant 4 : i32
        %32 = vector.broadcast %c4_i32 : i32 to vector<128x128xi32>
        %33 = arith.cmpi slt, %31, %32 : vector<128x128xi32>
        %cst_18 = arith.constant -1.000000e+30 : f32
        %34 = vector.broadcast %cst_18 : f32 to vector<128x128xf32>
        %35 = arith.select %33, %30, %34 : vector<128x128xi1>, vector<128x128xf32>
        %cst_19 = arith.constant dense<0xFF800000> : vector<128xf32>
        %36 = vector.multi_reduction <maximumf>, %35, %cst_19 [1] : vector<128x128xf32> to vector<128xf32>
        %37 = vector.shape_cast %36 : vector<128xf32> to vector<128x1xf32>
        %38 = vector.broadcast %37 : vector<128x1xf32> to vector<128x128xf32>
        %39 = arith.subf %35, %38 : vector<128x128xf32>
        %40 = math.exp %39 : vector<128x128xf32>
        %cst_20 = arith.constant dense<0.000000e+00> : vector<128xf32>
        %41 = vector.multi_reduction <add>, %40, %cst_20 [1] : vector<128x128xf32> to vector<128xf32>
        %42 = vector.shape_cast %41 : vector<128xf32> to vector<128x1xf32>
        %43 = math.log %42 : vector<128x1xf32>
        %44 = vector.broadcast %37 : vector<128x1xf32> to vector<128x128xf32>
        %45 = arith.subf %35, %44 : vector<128x128xf32>
        %46 = vector.broadcast %43 : vector<128x1xf32> to vector<128x128xf32>
        %47 = arith.subf %45, %46 : vector<128x128xf32>
        %c0_21 = arith.constant 0 : index
        %c0_22 = arith.constant 0 : index
        %48 = vector.load %arg15[%c0_21, %c0_22] : memref<128x128xf32, #tpu.memory_space<vmem>>, vector<128x128xf32>
        tpu.vector_store %arg15[%c0_21, %c0_22], %47 {strides = array<i32>} : memref<128x128xf32, #tpu.memory_space<vmem>>, vector<128x128xf32>,
      } else {
      }
    } else {
    }
    return
  }
  func.func @transform_0(%arg0: i32, %arg1: i32, %arg2: i32) -> (i32, i32) {
    %c0_i32 = arith.constant 0 : i32
    %0 = arith.cmpi eq, %arg0, %c0_i32 : i32
    %c0_i32_0 = arith.constant 0 : i32
    %1 = arith.select %0, %arg1, %c0_i32_0 : i32
    %c0_i32_1 = arith.constant 0 : i32
    %2 = arith.cmpi eq, %arg0, %c0_i32_1 : i32
    %c0_i32_2 = arith.constant 0 : i32
    %3 = arith.select %2, %arg2, %c0_i32_2 : i32
    %c0_i32_3 = arith.constant 0 : i32
    return %1, %3 : i32, i32
  }
  func.func @transform_1(%arg0: i32, %arg1: i32, %arg2: i32) -> (i32, i32) {
    %c0_i32 = arith.constant 0 : i32
    %0 = arith.cmpi eq, %arg0, %c0_i32 : i32
    %c0_i32_0 = arith.constant 0 : i32
    %1 = arith.select %0, %arg1, %c0_i32_0 : i32
    %c0_i32_1 = arith.constant 0 : i32
    %2 = arith.cmpi eq, %arg0, %c0_i32_1 : i32
    %c0_i32_2 = arith.constant 0 : i32
    %3 = arith.select %2, %arg2, %c0_i32_2 : i32
    %c0_i32_3 = arith.constant 0 : i32
    return %1, %3 : i32, i32
  }
  func.func @transform_2(%arg0: i32, %arg1: i32, %arg2: i32) -> (i32, i32) {
    %c0_i32 = arith.constant 0 : i32
    %0 = arith.cmpi eq, %arg0, %c0_i32 : i32
    %c0_i32_0 = arith.constant 0 : i32
    %1 = arith.select %0, %arg1, %c0_i32_0 : i32
    %c0_i32_1 = arith.constant 0 : i32
    %2 = arith.cmpi eq, %arg0, %c0_i32_1 : i32
    %c0_i32_2 = arith.constant 0 : i32
    %3 = arith.select %2, %arg2, %c0_i32_2 : i32
    %c0_i32_3 = arith.constant 0 : i32
    return %1, %3 : i32, i32
  }
  func.func @transform_3(%arg0: i32, %arg1: i32, %arg2: i32) -> (i32, i32) {
    %c0_i32 = arith.constant 0 : i32
    %0 = arith.cmpi eq, %arg0, %c0_i32 : i32
    %c0_i32_0 = arith.constant 0 : i32
    %1 = arith.select %0, %c0_i32_0, %arg1 : i32
    %c0_i32_1 = arith.constant 0 : i32
    %2 = arith.cmpi eq, %arg0, %c0_i32_1 : i32
    %c0_i32_2 = arith.constant 0 : i32
    %3 = arith.select %2, %c0_i32_2, %arg2 : i32
    %c0_i32_3 = arith.constant 0 : i32
    return %1, %3 : i32, i32
  }
  func.func @transform_4(%arg0: i32, %arg1: i32, %arg2: i32) -> (i32, i32) {
    %c0_i32 = arith.constant 0 : i32
    %c0_i32_0 = arith.constant 0 : i32
    %c0_i32_1 = arith.constant 0 : i32
    return %c0_i32, %c0_i32_0 : i32, i32
  }
  func.func @transform_5(%arg0: i32, %arg1: i32, %arg2: i32) -> (i32, i32) {
    %c0_i32 = arith.constant 0 : i32
    %c0_i32_0 = arith.constant 0 : i32
    %c0_i32_1 = arith.constant 0 : i32
    return %c0_i32, %c0_i32_0 : i32, i32
  }
  func.func @transform_6(%arg0: i32, %arg1: i32, %arg2: i32) -> (i32, i32) {
    %c0_i32 = arith.constant 0 : i32
    %c0_i32_0 = arith.constant 0 : i32
    %c0_i32_1 = arith.constant 0 : i32
    return %c0_i32, %c0_i32_0 : i32, i32
  }
  func.func @transform_7(%arg0: i32, %arg1: i32, %arg2: i32) -> (i32, i32) {
    %c0_i32 = arith.constant 0 : i32
    %c0_i32_0 = arith.constant 0 : i32
    %c0_i32_1 = arith.constant 0 : i32
    return %c0_i32, %c0_i32_0 : i32, i32
  }
  func.func @transform_8(%arg0: i32, %arg1: i32, %arg2: i32) -> (i32, i32) {
    %c0_i32 = arith.constant 0 : i32
    %c0_i32_0 = arith.constant 0 : i32
    %c0_i32_1 = arith.constant 0 : i32
    return %c0_i32, %c0_i32_0 : i32, i32
  }
  func.func @transform_9(%arg0: i32, %arg1: i32, %arg2: i32) -> (i32, i32) {
    %c0_i32 = arith.constant 0 : i32
    %c0_i32_0 = arith.constant 0 : i32
    %c0_i32_1 = arith.constant 0 : i32
    return %c0_i32, %c0_i32_0 : i32, i32
  }
  func.func @transform_10(%arg0: i32, %arg1: i32, %arg2: i32) -> (i32, i32) {
    %c0_i32 = arith.constant 0 : i32
    %c0_i32_0 = arith.constant 0 : i32
    %c0_i32_1 = arith.constant 0 : i32
    return %c0_i32, %c0_i32_0 : i32, i32
  }
  func.func @transform_11(%arg0: i32, %arg1: i32, %arg2: i32) -> (i32, i32) {
    %c0_i32 = arith.constant 0 : i32
    %c0_i32_0 = arith.constant 0 : i32
    %c0_i32_1 = arith.constant 0 : i32
    return %c0_i32, %c0_i32_0 : i32, i32
  }
  func.func @transform_12(%arg0: i32, %arg1: i32, %arg2: i32) -> (i32, i32) {
    %c2_i32 = arith.constant 2 : i32
    %0 = arith.cmpi eq, %arg0, %c2_i32 : i32
    %c0_i32 = arith.constant 0 : i32
    %1 = arith.select %0, %arg1, %c0_i32 : i32
    %c0_i32_0 = arith.constant 0 : i32
    %c0_i32_1 = arith.constant 0 : i32
    return %1, %c0_i32_0 : i32, i32
  }
}

</mosaic_0001>

<llo_original>
// kernel: rinet_forward.1
$region0: #{rinet_forward.1}
  #allocation0 [shape = 'u32[]', space=smem, size = 0x4, offset = 0x4, fixed_abs, tag = 'smem constant byte address 0x4 - core index']
  #allocation1 [shape = 'u32[144,128]{1,0:T(1,128)}', space=vmem, size = 0x12000, scoped, tag = 'internal scratch']
  #allocation2 [shape = 'f32[256,16]{1,0:T(8,128)}', space=vmem, size = 0x20000, scoped, tag = 'scratch operand']
  #allocation3 [shape = 'f32[256,128]{1,0:T(8,128)}', space=vmem, size = 0x20000, scoped, tag = 'scratch operand']
  #allocation4 [shape = 'f32[128,16]{1,0:T(8,128)}', space=vmem, size = 0x10000, scoped, tag = 'scratch operand']
  #allocation5 [shape = 'f32[128,128]{1,0:T(8,128)}', space=vmem, size = 0x10000, scoped, tag = 'scratch operand']
  %s0 = inlined_call_operand.vmem [shape: bf16[256,256], index: 0, kind: input, shape index: {}]
  %s1 = inlined_call_operand.vmem [shape: bf16[256,256], index: 1, kind: input, shape index: {}]
  %s2 = inlined_call_operand.vmem [shape: bf16[256,256], index: 2, kind: input, shape index: {}]
  %s3 = inlined_call_operand.vmem [shape: bf16[256,256], index: 3, kind: input, shape index: {}]
  %s4 = inlined_call_operand.vmem [shape: f32[256,16], index: 4, kind: input, shape index: {}]
  %s5 = inlined_call_operand.vmem [shape: f32[256,16], index: 5, kind: input, shape index: {}]
  %s6 = inlined_call_operand.vmem [shape: f32[256,16], index: 6, kind: input, shape index: {}]
  %s7 = inlined_call_operand.vmem [shape: f32[256,16], index: 7, kind: input, shape index: {}]
  %s8 = inlined_call_operand.vmem [shape: f32[16,32], index: 8, kind: input, shape index: {}]
  %s9 = inlined_call_operand.vmem [shape: f32[1,32], index: 9, kind: input, shape index: {}]
  %s10 = inlined_call_operand.vmem [shape: f32[32,128], index: 10, kind: input, shape index: {}]
  %s11 = inlined_call_operand.vmem [shape: f32[1,128], index: 11, kind: input, shape index: {}]
  %s12 = inlined_call_operand.vmem [shape: f32[256,128], index: 12, kind: output, shape index: {}]
  %s13 = sld [smem:[#allocation0]]
  $region281: #{rinet_forward.1} parent=0
    _
  %s15 = ssub.s32 1, %s13
  %s16 = scalar_select 0, %s15, %s13
  $region1: #{rinet_forward.1} parent=0
    #allocation6 [shape = 'u8[65536]{0}', space=vmem, size = 0x10000, scoped, tag = 'input window, operand 0']
    #allocation7 [shape = 'u8[65536]{0}', space=vmem, size = 0x10000, scoped, tag = 'input window, operand 1']
    #allocation8 [shape = 'u8[65536]{0}', space=vmem, size = 0x10000, scoped, tag = 'input window, operand 2']
    #allocation9 [shape = 'u8[65536]{0}', space=vmem, size = 0x10000, scoped, tag = 'input window, operand 3']
    loop: start=0, step=1, limit=14
    $region2: #{rinet_forward.1} parent=1 // loop_pre_header
      _
    $region3: #{rinet_forward.1} parent=1 // loop_header
      %s18 = sphi 0, %s22
      %p19 = scmp.ge.s32.totalorder %s18, 14
      %s25 = sphi 0, %s44
      %s26 = sphi 0, %s40
      %s27 = sphi 0, %s36
      %s28 = sphi 0, %s25
      %s29 = sphi 0, %s26
      %s30 = sphi 0, %s27
      %s31 = sphi 0, %s28
      %s32 = sphi 0, %s29
      %s33 = sphi 0, %s30
      %s55 = sphi 0, %s57
      %s58 = sphi 0, %s55
      %s59 = sphi 0, %s58
      %s75 = sphi 0, %s59
      %s89 = sphi 0, %s91
      %s92 = sphi 0, %s89
      %s93 = sphi 0, %s92
      %s109 = sphi 0, %s93
      %s123 = sphi 0, %s125
      %s126 = sphi 0, %s123
      %s127 = sphi 0, %s126
      %s143 = sphi 0, %s127
      %s157 = sphi 0, %s159
      %s160 = sphi 0, %s157
      %s161 = sphi 0, %s160
      %s177 = sphi 0, %s161
      %s181 = sphi 0, %s181
      %s183 = sphi 0, %s181
      %s184 = sphi 0, %s183
      %s198 = sphi 0, %s184
      %s202 = sphi 0, %s202
      %s204 = sphi 0, %s202
      %s205 = sphi 0, %s204
      %s219 = sphi 0, %s205
      %s223 = sphi 0, %s223
      %s225 = sphi 0, %s223
      %s226 = sphi 0, %s225
      %s240 = sphi 0, %s226
      %s244 = sphi 0, %s244
      %s246 = sphi 0, %s244
      %s247 = sphi 0, %s246
      %s261 = sphi 0, %s247
      %s265 = sphi 0, %s265
      %s267 = sphi 0, %s265
      %s268 = sphi 0, %s267
      %s282 = sphi 0, %s268
      %s286 = sphi 0, %s286
      %s288 = sphi 0, %s286
      %s289 = sphi 0, %s288
      %s303 = sphi 0, %s289
      %s307 = sphi 0, %s307
      %s309 = sphi 0, %s307
      %s310 = sphi 0, %s309
      %s324 = sphi 0, %s310
      %s328 = sphi 0, %s328
      %s330 = sphi 0, %s328
      %s331 = sphi 0, %s330
      %s345 = sphi 0, %s331
      %s355 = sphi 0, %s357
      %s358 = sphi 0, %s355
      %s359 = sphi 0, %s358
      %s375 = sphi 0, %s359
    $region4: #{rinet_forward.1} parent=1 // loop_header_branch
      %21 = sbr.rel (%p19) target = $region8
    $region5: #{rinet_forward.1} parent=1 // loop_body
      %s23 = ssub.s32 %s18, 1
      %s24 = ssub.s32 %s18, 2
      %s34 = sadd.s32 1, %s27
      %p35 = scmp.ge.s32.totalorder %s34, 2
      %s36 = scalar_select %p35, 0, %s34
      %s37 = sadd.s32 1, %s26
      %s38 = scalar_select %p35, %s37, %s26
      %p39 = scmp.ge.s32.totalorder %s38, 2
      %s40 = scalar_select %p39, 0, %s38
      %s41 = sadd.s32 1, %s25
      %s42 = scalar_select %p39, %s41, %s25
      %p43 = scmp.ge.s32.totalorder %s42, 3
      %s44 = scalar_select %p43, 0, %s42
      %p45 = scmp.eq.s32.totalorder %s25, 0
      %s46 = scalar_select %p45, %s26, 0
      %s47 = scalar_select %p45, %s27, 0
      %p48 = scmp.eq.s32.totalorder %s44, 0
      %s49 = scalar_select %p48, %s40, 0
      %s50 = scalar_select %p48, %s36, 0
      %s51 = ssub.s32 %s46, %s49
      %s52 = ssub.s32 %s47, %s50
      %s53 = sor.u32 %s51, %s52
      %p54 = scmp.eq.s32.totalorder %s53, 0
      %s56 = sadd.s32 %s55, 1
      %s57 = scalar_select %p54, %s55, %s56
      %p60 = pneg %p54
      %p61 = scmp.eq.s32.totalorder %s18, 11
      %p62 = por %p60, %p61
      %p63 = scmp.ne.s32.totalorder %s55, %s58
      %p64 = scmp.eq.s32.totalorder %s18, 0
      %p65 = por %p63, %p64
      %p66 = scmp.ne.s32.totalorder %s55, %s58
      %p67 = scmp.eq.s32.totalorder %s23, 11
      %p68 = por %p66, %p67
      %p69 = scmp.ne.s32.totalorder %s58, %s59
      %p70 = scmp.eq.s32.totalorder %s23, 0
      %p71 = por %p69, %p70
      %p72 = scmp.ne.s32.totalorder %s58, %s59
      %p73 = scmp.eq.s32.totalorder %s24, 11
      %p74 = por %p72, %p73
      %p76 = scmp.ne.s32.totalorder %s59, %s75
      %p77 = scmp.eq.s32.totalorder %s24, 0
      %p78 = por %p76, %p77
      %p79 = scmp.eq.s32.totalorder %s25, 0
      %s80 = scalar_select %p79, %s26, 0
      %s81 = scalar_select %p79, %s27, 0
      %p82 = scmp.eq.s32.totalorder %s44, 0
      %s83 = scalar_select %p82, %s40, 0
      %s84 = scalar_select %p82, %s36, 0
      %s85 = ssub.s32 %s80, %s83
      %s86 = ssub.s32 %s81, %s84
      %s87 = sor.u32 %s85, %s86
      %p88 = scmp.eq.s32.totalorder %s87, 0
      %s90 = sadd.s32 %s89, 1
      %s91 = scalar_select %p88, %s89, %s90
      %p94 = pneg %p88
      %p95 = scmp.eq.s32.totalorder %s18, 11
      %p96 = por %p94, %p95
      %p97 = scmp.ne.s32.totalorder %s89, %s92
      %p98 = scmp.eq.s32.totalorder %s18, 0
      %p99 = por %p97, %p98
      %p100 = scmp.ne.s32.totalorder %s89, %s92
      %p101 = scmp.eq.s32.totalorder %s23, 11
      %p102 = por %p100, %p101
      %p103 = scmp.ne.s32.totalorder %s92, %s93
      %p104 = scmp.eq.s32.totalorder %s23, 0
      %p105 = por %p103, %p104
      %p106 = scmp.ne.s32.totalorder %s92, %s93
      %p107 = scmp.eq.s32.totalorder %s24, 11
      %p108 = por %p106, %p107
      %p110 = scmp.ne.s32.totalorder %s93, %s109
      %p111 = scmp.eq.s32.totalorder %s24, 0
      %p112 = por %p110, %p111
      %p113 = scmp.eq.s32.totalorder %s25, 0
      %s114 = scalar_select %p113, %s26, 0
      %s115 = scalar_select %p113, %s27, 0
      %p116 = scmp.eq.s32.totalorder %s44, 0
      %s117 = scalar_select %p116, %s40, 0
      %s118 = scalar_select %p116, %s36, 0
      %s119 = ssub.s32 %s114, %s117
      %s120 = ssub.s32 %s115, %s118
      %s121 = sor.u32 %s119, %s120
      %p122 = scmp.eq.s32.totalorder %s121, 0
      %s124 = sadd.s32 %s123, 1
      %s125 = scalar_select %p122, %s123, %s124
      %p128 = pneg %p122
      %p129 = scmp.eq.s32.totalorder %s18, 11
      %p130 = por %p128, %p129
      %p131 = scmp.ne.s32.totalorder %s123, %s126
      %p132 = scmp.eq.s32.totalorder %s18, 0
      %p133 = por %p131, %p132
      %p134 = scmp.ne.s32.totalorder %s123, %s126
      %p135 = scmp.eq.s32.totalorder %s23, 11
      %p136 = por %p134, %p135
      %p137 = scmp.ne.s32.totalorder %s126, %s127
      %p138 = scmp.eq.s32.totalorder %s23, 0
      %p139 = por %p137, %p138
      %p140 = scmp.ne.s32.totalorder %s126, %s127
      %p141 = scmp.eq.s32.totalorder %s24, 11
      %p142 = por %p140, %p141
      %p144 = scmp.ne.s32.totalorder %s127, %s143
      %p145 = scmp.eq.s32.totalorder %s24, 0
      %p146 = por %p144, %p145
      %p147 = scmp.eq.s32.totalorder %s25, 0
      %s148 = scalar_select %p147, 0, %s26
      %s149 = scalar_select %p147, 0, %s27
      %p150 = scmp.eq.s32.totalorder %s44, 0
      %s151 = scalar_select %p150, 0, %s40
      %s152 = scalar_select %p150, 0, %s36
      %s153 = ssub.s32 %s148, %s151
      %s154 = ssub.s32 %s149, %s152
      %s155 = sor.u32 %s153, %s154
      %p156 = scmp.eq.s32.totalorder %s155, 0
      %s158 = sadd.s32 %s157, 1
      %s159 = scalar_select %p156, %s157, %s158
      %p162 = pneg %p156
      %p163 = scmp.eq.s32.totalorder %s18, 11
      %p164 = por %p162, %p163
      %p165 = scmp.ne.s32.totalorder %s157, %s160
      %p166 = scmp.eq.s32.totalorder %s18, 0
      %p167 = por %p165, %p166
      %p168 = scmp.ne.s32.totalorder %s157, %s160
      %p169 = scmp.eq.s32.totalorder %s23, 11
      %p170 = por %p168, %p169
      %p171 = scmp.ne.s32.totalorder %s160, %s161
      %p172 = scmp.eq.s32.totalorder %s23, 0
      %p173 = por %p171, %p172
      %p174 = scmp.ne.s32.totalorder %s160, %s161
      %p175 = scmp.eq.s32.totalorder %s24, 11
      %p176 = por %p174, %p175
      %p178 = scmp.ne.s32.totalorder %s161, %s177
      %p179 = scmp.eq.s32.totalorder %s24, 0
      %p180 = por %p178, %p179
      %s182 = sadd.s32 %s181, 1
      %p185 = scmp.eq.s32.totalorder %s18, 11
      %p186 = scmp.ne.s32.totalorder %s181, %s183
      %p187 = scmp.eq.s32.totalorder %s18, 0
      %p188 = por %p186, %p187
      %p189 = scmp.ne.s32.totalorder %s181, %s183
      %p190 = scmp.eq.s32.totalorder %s23, 11
      %p191 = por %p189, %p190
      %p192 = scmp.ne.s32.totalorder %s183, %s184
      %p193 = scmp.eq.s32.totalorder %s23, 0
      %p194 = por %p192, %p193
      %p195 = scmp.ne.s32.totalorder %s183, %s184
      %p196 = scmp.eq.s32.totalorder %s24, 11
      %p197 = por %p195, %p196
      %p199 = scmp.ne.s32.totalorder %s184, %s198
      %p200 = scmp.eq.s32.totalorder %s24, 0
      %p201 = por %p199, %p200
      %s203 = sadd.s32 %s202, 1
      %p206 = scmp.eq.s32.totalorder %s18, 11
      %p207 = scmp.ne.s32.totalorder %s202, %s204
      %p208 = scmp.eq.s32.totalorder %s18, 0
      %p209 = por %p207, %p208
      %p210 = scmp.ne.s32.totalorder %s202, %s204
      %p211 = scmp.eq.s32.totalorder %s23, 11
      %p212 = por %p210, %p211
      %p213 = scmp.ne.s32.totalorder %s204, %s205
      %p214 = scmp.eq.s32.totalorder %s23, 0
      %p215 = por %p213, %p214
      %p216 = scmp.ne.s32.totalorder %s204, %s205
      %p217 = scmp.eq.s32.totalorder %s24, 11
      %p218 = por %p216, %p217
      %p220 = scmp.ne.s32.totalorder %s205, %s219
      %p221 = scmp.eq.s32.totalorder %s24, 0
      %p222 = por %p220, %p221
      %s224 = sadd.s32 %s223, 1
      %p227 = scmp.eq.s32.totalorder %s18, 11
      %p228 = scmp.ne.s32.totalorder %s223, %s225
      %p229 = scmp.eq.s32.totalorder %s18, 0
      %p230 = por %p228, %p229
      %p231 = scmp.ne.s32.totalorder %s223, %s225
      %p232 = scmp.eq.s32.totalorder %s23, 11
      %p233 = por %p231, %p232
      %p234 = scmp.ne.s32.totalorder %s225, %s226
      %p235 = scmp.eq.s32.totalorder %s23, 0
      %p236 = por %p234, %p235
      %p237 = scmp.ne.s32.totalorder %s225, %s226
      %p238 = scmp.eq.s32.totalorder %s24, 11
      %p239 = por %p237, %p238
      %p241 = scmp.ne.s32.totalorder %s226, %s240
      %p242 = scmp.eq.s32.totalorder %s24, 0
      %p243 = por %p241, %p242
      %s245 = sadd.s32 %s244, 1
      %p248 = scmp.eq.s32.totalorder %s18, 11
      %p249 = scmp.ne.s32.totalorder %s244, %s246
      %p250 = scmp.eq.s32.totalorder %s18, 0
      %p251 = por %p249, %p250
      %p252 = scmp.ne.s32.totalorder %s244, %s246
      %p253 = scmp.eq.s32.totalorder %s23, 11
      %p254 = por %p252, %p253
      %p255 = scmp.ne.s32.totalorder %s246, %s247
      %p256 = scmp.eq.s32.totalorder %s23, 0
      %p257 = por %p255, %p256
      %p258 = scmp.ne.s32.totalorder %s246, %s247
      %p259 = scmp.eq.s32.totalorder %s24, 11
      %p260 = por %p258, %p259
      %p262 = scmp.ne.s32.totalorder %s247, %s261
      %p263 = scmp.eq.s32.totalorder %s24, 0
      %p264 = por %p262, %p263
      %s266 = sadd.s32 %s265, 1
      %p269 = scmp.eq.s32.totalorder %s18, 11
      %p270 = scmp.ne.s32.totalorder %s265, %s267
      %p271 = scmp.eq.s32.totalorder %s18, 0
      %p272 = por %p270, %p271
      %p273 = scmp.ne.s32.totalorder %s265, %s267
      %p274 = scmp.eq.s32.totalorder %s23, 11
      %p275 = por %p273, %p274
      %p276 = scmp.ne.s32.totalorder %s267, %s268
      %p277 = scmp.eq.s32.totalorder %s23, 0
      %p278 = por %p276, %p277
      %p279 = scmp.ne.s32.totalorder %s267, %s268
      %p280 = scmp.eq.s32.totalorder %s24, 11
      %p281 = por %p279, %p280
      %p283 = scmp.ne.s32.totalorder %s268, %s282
      %p284 = scmp.eq.s32.totalorder %s24, 0
      %p285 = por %p283, %p284
      %s287 = sadd.s32 %s286, 1
      %p290 = scmp.eq.s32.totalorder %s18, 11
      %p291 = scmp.ne.s32.totalorder %s286, %s288
      %p292 = scmp.eq.s32.totalorder %s18, 0
      %p293 = por %p291, %p292
      %p294 = scmp.ne.s32.totalorder %s286, %s288
      %p295 = scmp.eq.s32.totalorder %s23, 11
      %p296 = por %p294, %p295
      %p297 = scmp.ne.s32.totalorder %s288, %s289
      %p298 = scmp.eq.s32.totalorder %s23, 0
      %p299 = por %p297, %p298
      %p300 = scmp.ne.s32.totalorder %s288, %s289
      %p301 = scmp.eq.s32.totalorder %s24, 11
      %p302 = por %p300, %p301
      %p304 = scmp.ne.s32.totalorder %s289, %s303
      %p305 = scmp.eq.s32.totalorder %s24, 0
      %p306 = por %p304, %p305
      %s308 = sadd.s32 %s307, 1
      %p311 = scmp.eq.s32.totalorder %s18, 11
      %p312 = scmp.ne.s32.totalorder %s307, %s309
      %p313 = scmp.eq.s32.totalorder %s18, 0
      %p314 = por %p312, %p313
      %p315 = scmp.ne.s32.totalorder %s307, %s309
      %p316 = scmp.eq.s32.totalorder %s23, 11
      %p317 = por %p315, %p316
      %p318 = scmp.ne.s32.totalorder %s309, %s310
      %p319 = scmp.eq.s32.totalorder %s23, 0
      %p320 = por %p318, %p319
      %p321 = scmp.ne.s32.totalorder %s309, %s310
      %p322 = scmp.eq.s32.totalorder %s24, 11
      %p323 = por %p321, %p322
      %p325 = scmp.ne.s32.totalorder %s310, %s324
      %p326 = scmp.eq.s32.totalorder %s24, 0
      %p327 = por %p325, %p326
      %s329 = sadd.s32 %s328, 1
      %p332 = scmp.eq.s32.totalorder %s18, 11
      %p333 = scmp.ne.s32.totalorder %s328, %s330
      %p334 = scmp.eq.s32.totalorder %s18, 0
      %p335 = por %p333, %p334
      %p336 = scmp.ne.s32.totalorder %s328, %s330
      %p337 = scmp.eq.s32.totalorder %s23, 11
      %p338 = por %p336, %p337
      %p339 = scmp.ne.s32.totalorder %s330, %s331
      %p340 = scmp.eq.s32.totalorder %s23, 0
      %p341 = por %p339, %p340
      %p342 = scmp.ne.s32.totalorder %s330, %s331
      %p343 = scmp.eq.s32.totalorder %s24, 11
      %p344 = por %p342, %p343
      %p346 = scmp.ne.s32.totalorder %s331, %s345
      %p347 = scmp.eq.s32.totalorder %s24, 0
      %p348 = por %p346, %p347
      %p349 = scmp.eq.s32.totalorder %s25, 2
      %s350 = scalar_select %p349, %s26, 0
      %p351 = scmp.eq.s32.totalorder %s44, 2
      %s352 = scalar_select %p351, %s40, 0
      %s353 = ssub.s32 %s350, %s352
      %p354 = scmp.eq.s32.totalorder %s353, 0
      %s356 = sadd.s32 %s355, 1
      %s357 = scalar_select %p354, %s355, %s356
      %p360 = pneg %p354
      %p361 = scmp.eq.s32.totalorder %s18, 11
      %p362 = por %p360, %p361
      %p363 = scmp.ne.s32.totalorder %s355, %s358
      %p364 = scmp.eq.s32.totalorder %s18, 0
      %p365 = por %p363, %p364
      %p366 = scmp.ne.s32.totalorder %s355, %s358
      %p367 = scmp.eq.s32.totalorder %s23, 11
      %p368 = por %p366, %p367
      %p369 = scmp.ne.s32.totalorder %s358, %s359
      %p370 = scmp.eq.s32.totalorder %s23, 0
      %p371 = por %p369, %p370
      %p372 = scmp.ne.s32.totalorder %s358, %s359
      %p373 = scmp.eq.s32.totalorder %s24, 11
      %p374 = por %p372, %p373
      %p376 = scmp.ne.s32.totalorder %s359, %s375
      %p377 = scmp.eq.s32.totalorder %s24, 0
      %p378 = por %p376, %p377
      %p379 = scmp.le.s32.totalorder 1, %s18
      %p380 = scmp.lt.s32.totalorder %s18, 13
      %p381 = pnand %p379, %p380
      %p382 = pneg %p381
      // Predicated region
      $region9: #{rinet_forward.1} parent=5 // pred_check
        _
      $region10: #{rinet_forward.1} parent=5 // pred_check_branch
        %384 = sbr.rel (%p381) target = $region12
      $region11: #{rinet_forward.1} parent=5 // pred_region
        %s385 = ssub.s32 %s18, 1
        // Predicated region
        $region13: #{rinet_forward.1} parent=11 // pred_check
          %p386 = pneg %p194
        $region14: #{rinet_forward.1} parent=11 // pred_check_branch
          %388 = sbr.rel (%p386) target = $region16
        $region15: #{rinet_forward.1} parent=11 // pred_region
          _
        $region16: #{rinet_forward.1} parent=11 // pred_fallthru
          _
        // Predicated region
        $region17: #{rinet_forward.1} parent=11 // pred_check
          %p389 = pneg %p215
        $region18: #{rinet_forward.1} parent=11 // pred_check_branch
          %391 = sbr.rel (%p389) target = $region20
        $region19: #{rinet_forward.1} parent=11 // pred_region
          _
        $region20: #{rinet_forward.1} parent=11 // pred_fallthru
          _
        // Predicated region
        $region21: #{rinet_forward.1} parent=11 // pred_check
          %p392 = pneg %p236
        $region22: #{rinet_forward.1} parent=11 // pred_check_branch
          %394 = sbr.rel (%p392) target = $region24
        $region23: #{rinet_forward.1} parent=11 // pred_region
          _
        $region24: #{rinet_forward.1} parent=11 // pred_fallthru
          _
        // Predicated region
        $region25: #{rinet_forward.1} parent=11 // pred_check
          %p395 = pneg %p257
        $region26: #{rinet_forward.1} parent=11 // pred_check_branch
          %397 = sbr.rel (%p395) target = $region28
        $region27: #{rinet_forward.1} parent=11 // pred_region
          _
        $region28: #{rinet_forward.1} parent=11 // pred_fallthru
          _
        // Predicated region
        $region29: #{rinet_forward.1} parent=11 // pred_check
          %p398 = pneg %p278
        $region30: #{rinet_forward.1} parent=11 // pred_check_branch
          %400 = sbr.rel (%p398) target = $region32
        $region31: #{rinet_forward.1} parent=11 // pred_region
          _
        $region32: #{rinet_forward.1} parent=11 // pred_fallthru
          _
        // Predicated region
        $region33: #{rinet_forward.1} parent=11 // pred_check
          %p401 = pneg %p299
        $region34: #{rinet_forward.1} parent=11 // pred_check_branch
          %403 = sbr.rel (%p401) target = $region36
        $region35: #{rinet_forward.1} parent=11 // pred_region
          _
        $region36: #{rinet_forward.1} parent=11 // pred_fallthru
          _
        // Predicated region
        $region37: #{rinet_forward.1} parent=11 // pred_check
          %p404 = pneg %p320
        $region38: #{rinet_forward.1} parent=11 // pred_check_branch
          %406 = sbr.rel (%p404) target = $region40
        $region39: #{rinet_forward.1} parent=11 // pred_region
          _
        $region40: #{rinet_forward.1} parent=11 // pred_fallthru
          _
        // Predicated region
        $region41: #{rinet_forward.1} parent=11 // pred_check
          %p407 = pneg %p341
        $region42: #{rinet_forward.1} parent=11 // pred_check_branch
          %409 = sbr.rel (%p407) target = $region44
        $region43: #{rinet_forward.1} parent=11 // pred_region
          _
        $region44: #{rinet_forward.1} parent=11 // pred_fallthru
          _
      $region12: #{rinet_forward.1} parent=5 // pred_fallthru
        _
      %p410 = scmp.lt.s32.totalorder %s18, 12
      // Predicated region
      $region45: #{rinet_forward.1} parent=5 // pred_check
        %p411 = pneg %p410
      $region46: #{rinet_forward.1} parent=5 // pred_check_branch
        %413 = sbr.rel (%p411) target = $region48
      $region47: #{rinet_forward.1} parent=5 // pred_region
        // Predicated region
        $region49: #{rinet_forward.1} parent=47 // pred_check
          %p414 = pneg %p65
        $region50: #{rinet_forward.1} parent=47 // pred_check_branch
          %416 = sbr.rel (%p414) target = $region52
        $region51: #{rinet_forward.1} parent=47 // pred_region
          %s417 = sand.u32 %s55, 1
          %s418 = sand.u32 %s55, 1
          %s419 = smul.addr %s418, 64
          %s420 = scalar_lea.vmem [#allocation6], %s419
          %p421 = scmp.eq.s32.totalorder %s25, 0
          %s422 = scalar_select %p421, %s26, 0
          %s423 = scalar_select %p421, %s27, 0
          %s424 = smul.u32 16, %s422
          %s425 = smul.addr %s424, 2
          %s426 = sadd.s32 %s423, %s425
          %s427 = smul.addr %s426, 4
          %s428 = scalar_lea.vmem %s0, %s427
          // Predicated region
          $region53: #{rinet_forward.1} parent=51 // pred_check
            _
          $region54: #{rinet_forward.1} parent=51 // pred_check_branch
            %430 = sbr.rel (0) target = $region56
          $region55: #{rinet_forward.1} parent=51 // pred_region
            // Predicated region
            $region57: #{rinet_forward.1} parent=55 // pred_check
              _
            $region58: #{rinet_forward.1} parent=55 // pred_check_branch
              %432 = sbr.rel target = $region60
            $region59: #{rinet_forward.1} parent=55 // pred_region
              // Predicated region
              $region72: #{rinet_forward.1} parent=59 // pred_check
                _
              $region73: #{rinet_forward.1} parent=59 // pred_check_branch
                %477 = sbr.rel (0) target = $region75
              $region74: #{rinet_forward.1} parent=59 // pred_region
                loop: start=0, step=1, limit=1
                $region76: #{rinet_forward.1} parent=74 // loop_pre_header
                  _
                $region77: #{rinet_forward.1} parent=74 // loop_header
                  %s479 = sphi 0, %s483
                  %p480 = scmp.ge.s32.totalorder %s479, 1
                  %s484 = sphi %s428, %s428
                  %s485 = sphi %s420, %s420
                $region78: #{rinet_forward.1} parent=74 // loop_header_branch
                  %482 = sbr.rel (%p480) target = $region82
                $region79: #{rinet_forward.1} parent=74 // loop_body
                  _
                $region80: #{rinet_forward.1} parent=74 // loop_footer
                  %s483 = sadd.s32 1, %s479
                $region81: #{rinet_forward.1} parent=74 // loop_footer_branch
                  %478 = sbr.rel target = $region77
                $region82: #{rinet_forward.1} parent=74 // loop_exit
                  _
                loop: start=0, step=1, limit=1
                $region83: #{rinet_forward.1} parent=74 // loop_pre_header
                  _
                $region84: #{rinet_forward.1} parent=74 // loop_header
                  %s488 = sphi 0, %s492
                  %p489 = scmp.ge.s32.totalorder %s488, 1
                  %s493 = sphi %s428, %s428
                  %s494 = sphi %s420, %s420
                $region85: #{rinet_forward.1} parent=74 // loop_header_branch
                  %491 = sbr.rel (%p489) target = $region89
                $region86: #{rinet_forward.1} parent=74 // loop_body
                  %v495 = vld [vmem:[%s493] sm:$0xf]
                  %496 = vst [vmem:[%s494] sm:$0xf] %v495
                  %v497 = vld [vmem:[%s493 + $0x8] sm:$0xf]
                  %498 = vst [vmem:[%s494 + $0x4] sm:$0xf] %v497
                  %v499 = vld [vmem:[%s493 + $0x10] sm:$0xf]
                  %500 = vst [vmem:[%s494 + $0x8] sm:$0xf] %v499
                  %v501 = vld [vmem:[%s493 + $0x18] sm:$0xf]
                  %502 = vst [vmem:[%s494 + $0xc] sm:$0xf] %v501
                  %v503 = vld [vmem:[%s493 + $0x20] sm:$0xf]
                  %504 = vst [vmem:[%s494 + $0x10] sm:$0xf] %v503
                  %v505 = vld [vmem:[%s493 + $0x28] sm:$0xf]
                  %506 = vst [vmem:[%s494 + $0x14] sm:$0xf] %v505
                  %v507 = vld [vmem:[%s493 + $0x30] sm:$0xf]
                  %508 = vst [vmem:[%s494 + $0x18] sm:$0xf] %v507
                  %v509 = vld [vmem:[%s493 + $0x38] sm:$0xf]
                  %510 = vst [vmem:[%s494 + $0x1c] sm:$0xf] %v509
                  %v511 = vld [vmem:[%s493 + $0x40] sm:$0xf]
                  %512 = vst [vmem:[%s494 + $0x20] sm:$0xf] %v511
                  %v513 = vld [vmem:[%s493 + $0x48] sm:$0xf]
                  %514 = vst [vmem:[%s494 + $0x24] sm:$0xf] %v513
                  %v515 = vld [vmem:[%s493 + $0x50] sm:$0xf]
                  %516 = vst [vmem:[%s494 + $0x28] sm:$0xf] %v515
                  %v517 = vld [vmem:[%s493 + $0x58] sm:$0xf]
                  %518 = vst [vmem:[%s494 + $0x2c] sm:$0xf] %v517
                  %v519 = vld [vmem:[%s493 + $0x60] sm:$0xf]
                  %520 = vst [vmem:[%s494 + $0x30] sm:$0xf] %v519
                  %v521 = vld [vmem:[%s493 + $0x68] sm:$0xf]
                  %522 = vst [vmem:[%s494 + $0x34] sm:$0xf] %v521
                  %v523 = vld [vmem:[%s493 + $0x70] sm:$0xf]
                  %524 = vst [vmem:[%s494 + $0x38] sm:$0xf] %v523
                  %v525 = vld [vmem:[%s493 + $0x78] sm:$0xf]
                  %526 = vst [vmem:[%s494 + $0x3c] sm:$0xf] %v525
                $region87: #{rinet_forward.1} parent=74 // loop_footer
                  %s492 = sadd.s32 1, %s488
                $region88: #{rinet_forward.1} parent=74 // loop_footer_branch
                  %487 = sbr.rel target = $region84
                $region89: #{rinet_forward.1} parent=74 // loop_exit
                  _
              $region75: #{rinet_forward.1} parent=59 // pred_fallthru
                _
            $region60: #{rinet_forward.1} parent=55 // pred_fallthru
              _
            // Predicated region
            $region61: #{rinet_forward.1} parent=55 // pred_check
              _
            $region62: #{rinet_forward.1} parent=55 // pred_check_branch
              %434 = sbr.rel (0) target = $region64
            $region63: #{rinet_forward.1} parent=55 // pred_region
              loop: start=0, step=1, limit=1
              $region65: #{rinet_forward.1} parent=63 // loop_pre_header
                _
              $region66: #{rinet_forward.1} parent=63 // loop_header
                %s437 = sphi 0, %s441
                %p438 = scmp.ge.s32.totalorder %s437, 1
                %s442 = sphi %s428, %s428
                %s443 = sphi %s420, %s420
              $region67: #{rinet_forward.1} parent=63 // loop_header_branch
                %440 = sbr.rel (%p438) target = $region71
              $region68: #{rinet_forward.1} parent=63 // loop_body
                %v444 = vld [vmem:[%s442] sm:$0xf]
                %445 = vst [vmem:[%s443] sm:$0xf] %v444
                %v446 = vld [vmem:[%s442 + $0x8] sm:$0xf]
                %447 = vst [vmem:[%s443 + $0x4] sm:$0xf] %v446
                %v448 = vld [vmem:[%s442 + $0x10] sm:$0xf]
                %449 = vst [vmem:[%s443 + $0x8] sm:$0xf] %v448
                %v450 = vld [vmem:[%s442 + $0x18] sm:$0xf]
                %451 = vst [vmem:[%s443 + $0xc] sm:$0xf] %v450
                %v452 = vld [vmem:[%s442 + $0x20] sm:$0xf]
                %453 = vst [vmem:[%s443 + $0x10] sm:$0xf] %v452
                %v454 = vld [vmem:[%s442 + $0x28] sm:$0xf]
                %455 = vst [vmem:[%s443 + $0x14] sm:$0xf] %v454
                %v456 = vld [vmem:[%s442 + $0x30] sm:$0xf]
                %457 = vst [vmem:[%s443 + $0x18] sm:$0xf] %v456
                %v458 = vld [vmem:[%s442 + $0x38] sm:$0xf]
                %459 = vst [vmem:[%s443 + $0x1c] sm:$0xf] %v458
                %v460 = vld [vmem:[%s442 + $0x40] sm:$0xf]
                %461 = vst [vmem:[%s443 + $0x20] sm:$0xf] %v460
                %v462 = vld [vmem:[%s442 + $0x48] sm:$0xf]
                %463 = vst [vmem:[%s443 + $0x24] sm:$0xf] %v462
                %v464 = vld [vmem:[%s442 + $0x50] sm:$0xf]
                %465 = vst [vmem:[%s443 + $0x28] sm:$0xf] %v464
                %v466 = vld [vmem:[%s442 + $0x58] sm:$0xf]
                %467 = vst [vmem:[%s443 + $0x2c] sm:$0xf] %v466
                %v468 = vld [vmem:[%s442 + $0x60] sm:$0xf]
                %469 = vst [vmem:[%s443 + $0x30] sm:$0xf] %v468
                %v470 = vld [vmem:[%s442 + $0x68] sm:$0xf]
                %471 = vst [vmem:[%s443 + $0x34] sm:$0xf] %v470
                %v472 = vld [vmem:[%s442 + $0x70] sm:$0xf]
                %473 = vst [vmem:[%s443 + $0x38] sm:$0xf] %v472
                %v474 = vld [vmem:[%s442 + $0x78] sm:$0xf]
                %475 = vst [vmem:[%s443 + $0x3c] sm:$0xf] %v474
              $region69: #{rinet_forward.1} parent=63 // loop_footer
                %s441 = sadd.s32 1, %s437
              $region70: #{rinet_forward.1} parent=63 // loop_footer_branch
                %436 = sbr.rel target = $region66
              $region71: #{rinet_forward.1} parent=63 // loop_exit
                _
            $region64: #{rinet_forward.1} parent=55 // pred_fallthru
              _
          $region56: #{rinet_forward.1} parent=51 // pred_fallthru
            _
          %527 = vnop
        $region52: #{rinet_forward.1} parent=47 // pred_fallthru
          _
        // Predicated region
        $region90: #{rinet_forward.1} parent=47 // pred_check
          %p528 = pneg %p99
        $region91: #{rinet_forward.1} parent=47 // pred_check_branch
          %530 = sbr.rel (%p528) target = $region93
        $region92: #{rinet_forward.1} parent=47 // pred_region
          %s531 = sand.u32 %s89, 1
          %s532 = sand.u32 %s89, 1
          %s533 = smul.addr %s532, 64
          %s534 = scalar_lea.vmem [#allocation7], %s533
          %p535 = scmp.eq.s32.totalorder %s25, 0
          %s536 = scalar_select %p535, %s26, 0
          %s537 = scalar_select %p535, %s27, 0
          %s538 = smul.u32 16, %s536
          %s539 = smul.addr %s538, 2
          %s540 = sadd.s32 %s537, %s539
          %s541 = smul.addr %s540, 4
          %s542 = scalar_lea.vmem %s1, %s541
          // Predicated region
          $region94: #{rinet_forward.1} parent=92 // pred_check
            _
          $region95: #{rinet_forward.1} parent=92 // pred_check_branch
            %544 = sbr.rel (0) target = $region97
          $region96: #{rinet_forward.1} parent=92 // pred_region
            // Predicated region
            $region98: #{rinet_forward.1} parent=96 // pred_check
              _
            $region99: #{rinet_forward.1} parent=96 // pred_check_branch
              %546 = sbr.rel target = $region101
            $region100: #{rinet_forward.1} parent=96 // pred_region
              // Predicated region
              $region113: #{rinet_forward.1} parent=100 // pred_check
                _
              $region114: #{rinet_forward.1} parent=100 // pred_check_branch
                %591 = sbr.rel (0) target = $region116
              $region115: #{rinet_forward.1} parent=100 // pred_region
                loop: start=0, step=1, limit=1
                $region117: #{rinet_forward.1} parent=115 // loop_pre_header
                  _
                $region118: #{rinet_forward.1} parent=115 // loop_header
                  %s593 = sphi 0, %s597
                  %p594 = scmp.ge.s32.totalorder %s593, 1
                  %s598 = sphi %s542, %s542
                  %s599 = sphi %s534, %s534
                $region119: #{rinet_forward.1} parent=115 // loop_header_branch
                  %596 = sbr.rel (%p594) target = $region123
                $region120: #{rinet_forward.1} parent=115 // loop_body
                  _
                $region121: #{rinet_forward.1} parent=115 // loop_footer
                  %s597 = sadd.s32 1, %s593
                $region122: #{rinet_forward.1} parent=115 // loop_footer_branch
                  %592 = sbr.rel target = $region118
                $region123: #{rinet_forward.1} parent=115 // loop_exit
                  _
                loop: start=0, step=1, limit=1
                $region124: #{rinet_forward.1} parent=115 // loop_pre_header
                  _
                $region125: #{rinet_forward.1} parent=115 // loop_header
                  %s602 = sphi 0, %s606
                  %p603 = scmp.ge.s32.totalorder %s602, 1
                  %s607 = sphi %s542, %s542
                  %s608 = sphi %s534, %s534
                $region126: #{rinet_forward.1} parent=115 // loop_header_branch
                  %605 = sbr.rel (%p603) target = $region130
                $region127: #{rinet_forward.1} parent=115 // loop_body
                  %v609 = vld [vmem:[%s607] sm:$0xf]
                  %610 = vst [vmem:[%s608] sm:$0xf] %v609
                  %v611 = vld [vmem:[%s607 + $0x8] sm:$0xf]
                  %612 = vst [vmem:[%s608 + $0x4] sm:$0xf] %v611
                  %v613 = vld [vmem:[%s607 + $0x10] sm:$0xf]
                  %614 = vst [vmem:[%s608 + $0x8] sm:$0xf] %v613
                  %v615 = vld [vmem:[%s607 + $0x18] sm:$0xf]
                  %616 = vst [vmem:[%s608 + $0xc] sm:$0xf] %v615
                  %v617 = vld [vmem:[%s607 + $0x20] sm:$0xf]
                  %618 = vst [vmem:[%s608 + $0x10] sm:$0xf] %v617
                  %v619 = vld [vmem:[%s607 + $0x28] sm:$0xf]
                  %620 = vst [vmem:[%s608 + $0x14] sm:$0xf] %v619
                  %v621 = vld [vmem:[%s607 + $0x30] sm:$0xf]
                  %622 = vst [vmem:[%s608 + $0x18] sm:$0xf] %v621
                  %v623 = vld [vmem:[%s607 + $0x38] sm:$0xf]
                  %624 = vst [vmem:[%s608 + $0x1c] sm:$0xf] %v623
                  %v625 = vld [vmem:[%s607 + $0x40] sm:$0xf]
                  %626 = vst [vmem:[%s608 + $0x20] sm:$0xf] %v625
                  %v627 = vld [vmem:[%s607 + $0x48] sm:$0xf]
                  %628 = vst [vmem:[%s608 + $0x24] sm:$0xf] %v627
                  %v629 = vld [vmem:[%s607 + $0x50] sm:$0xf]
                  %630 = vst [vmem:[%s608 + $0x28] sm:$0xf] %v629
                  %v631 = vld [vmem:[%s607 + $0x58] sm:$0xf]
                  %632 = vst [vmem:[%s608 + $0x2c] sm:$0xf] %v631
                  %v633 = vld [vmem:[%s607 + $0x60] sm:$0xf]
                  %634 = vst [vmem:[%s608 + $0x30] sm:$0xf] %v633
                  %v635 = vld [vmem:[%s607 + $0x68] sm:$0xf]
                  %636 = vst [vmem:[%s608 + $0x34] sm:$0xf] %v635
                  %v637 = vld [vmem:[%s607 + $0x70] sm:$0xf]
                  %638 = vst [vmem:[%s608 + $0x38] sm:$0xf] %v637
                  %v639 = vld [vmem:[%s607 + $0x78] sm:$0xf]
                  %640 = vst [vmem:[%s608 + $0x3c] sm:$0xf] %v639
                $region128: #{rinet_forward.1} parent=115 // loop_footer
                  %s606 = sadd.s32 1, %s602
                $region129: #{rinet_forward.1} parent=115 // loop_footer_branch
                  %601 = sbr.rel target = $region125
                $region130: #{rinet_forward.1} parent=115 // loop_exit
                  _
              $region116: #{rinet_forward.1} parent=100 // pred_fallthru
                _
            $region101: #{rinet_forward.1} parent=96 // pred_fallthru
              _
            // Predicated region
            $region102: #{rinet_forward.1} parent=96 // pred_check
              _
            $region103: #{rinet_forward.1} parent=96 // pred_check_branch
              %548 = sbr.rel (0) target = $region105
            $region104: #{rinet_forward.1} parent=96 // pred_region
              loop: start=0, step=1, limit=1
              $region106: #{rinet_forward.1} parent=104 // loop_pre_header
                _
              $region107: #{rinet_forward.1} parent=104 // loop_header
                %s551 = sphi 0, %s555
                %p552 = scmp.ge.s32.totalorder %s551, 1
                %s556 = sphi %s542, %s542
                %s557 = sphi %s534, %s534
              $region108: #{rinet_forward.1} parent=104 // loop_header_branch
                %554 = sbr.rel (%p552) target = $region112
              $region109: #{rinet_forward.1} parent=104 // loop_body
                %v558 = vld [vmem:[%s556] sm:$0xf]
                %559 = vst [vmem:[%s557] sm:$0xf] %v558
                %v560 = vld [vmem:[%s556 + $0x8] sm:$0xf]
                %561 = vst [vmem:[%s557 + $0x4] sm:$0xf] %v560
                %v562 = vld [vmem:[%s556 + $0x10] sm:$0xf]
                %563 = vst [vmem:[%s557 + $0x8] sm:$0xf] %v562
                %v564 = vld [vmem:[%s556 + $0x18] sm:$0xf]
                %565 = vst [vmem:[%s557 + $0xc] sm:$0xf] %v564
                %v566 = vld [vmem:[%s556 + $0x20] sm:$0xf]
                %567 = vst [vmem:[%s557 + $0x10] sm:$0xf] %v566
                %v568 = vld [vmem:[%s556 + $0x28] sm:$0xf]
                %569 = vst [vmem:[%s557 + $0x14] sm:$0xf] %v568
                %v570 = vld [vmem:[%s556 + $0x30] sm:$0xf]
                %571 = vst [vmem:[%s557 + $0x18] sm:$0xf] %v570
                %v572 = vld [vmem:[%s556 + $0x38] sm:$0xf]
                %573 = vst [vmem:[%s557 + $0x1c] sm:$0xf] %v572
                %v574 = vld [vmem:[%s556 + $0x40] sm:$0xf]
                %575 = vst [vmem:[%s557 + $0x20] sm:$0xf] %v574
                %v576 = vld [vmem:[%s556 + $0x48] sm:$0xf]
                %577 = vst [vmem:[%s557 + $0x24] sm:$0xf] %v576
                %v578 = vld [vmem:[%s556 + $0x50] sm:$0xf]
                %579 = vst [vmem:[%s557 + $0x28] sm:$0xf] %v578
                %v580 = vld [vmem:[%s556 + $0x58] sm:$0xf]
                %581 = vst [vmem:[%s557 + $0x2c] sm:$0xf] %v580
                %v582 = vld [vmem:[%s556 + $0x60] sm:$0xf]
                %583 = vst [vmem:[%s557 + $0x30] sm:$0xf] %v582
                %v584 = vld [vmem:[%s556 + $0x68] sm:$0xf]
                %585 = vst [vmem:[%s557 + $0x34] sm:$0xf] %v584
                %v586 = vld [vmem:[%s556 + $0x70] sm:$0xf]
                %587 = vst [vmem:[%s557 + $0x38] sm:$0xf] %v586
                %v588 = vld [vmem:[%s556 + $0x78] sm:$0xf]
                %589 = vst [vmem:[%s557 + $0x3c] sm:$0xf] %v588
              $region110: #{rinet_forward.1} parent=104 // loop_footer
                %s555 = sadd.s32 1, %s551
              $region111: #{rinet_forward.1} parent=104 // loop_footer_branch
                %550 = sbr.rel target = $region107
              $region112: #{rinet_forward.1} parent=104 // loop_exit
                _
            $region105: #{rinet_forward.1} parent=96 // pred_fallthru
              _
          $region97: #{rinet_forward.1} parent=92 // pred_fallthru
            _
          %641 = vnop
        $region93: #{rinet_forward.1} parent=47 // pred_fallthru
          _
        // Predicated region
        $region131: #{rinet_forward.1} parent=47 // pred_check
          %p642 = pneg %p133
        $region132: #{rinet_forward.1} parent=47 // pred_check_branch
          %644 = sbr.rel (%p642) target = $region134
        $region133: #{rinet_forward.1} parent=47 // pred_region
          %s645 = sand.u32 %s123, 1
          %s646 = sand.u32 %s123, 1
          %s647 = smul.addr %s646, 64
          %s648 = scalar_lea.vmem [#allocation8], %s647
          %p649 = scmp.eq.s32.totalorder %s25, 0
          %s650 = scalar_select %p649, %s26, 0
          %s651 = scalar_select %p649, %s27, 0
          %s652 = smul.u32 16, %s650
          %s653 = smul.addr %s652, 2
          %s654 = sadd.s32 %s651, %s653
          %s655 = smul.addr %s654, 4
          %s656 = scalar_lea.vmem %s2, %s655
          // Predicated region
          $region135: #{rinet_forward.1} parent=133 // pred_check
            _
          $region136: #{rinet_forward.1} parent=133 // pred_check_branch
            %658 = sbr.rel (0) target = $region138
          $region137: #{rinet_forward.1} parent=133 // pred_region
            // Predicated region
            $region139: #{rinet_forward.1} parent=137 // pred_check
              _
            $region140: #{rinet_forward.1} parent=137 // pred_check_branch
              %660 = sbr.rel target = $region142
            $region141: #{rinet_forward.1} parent=137 // pred_region
              // Predicated region
              $region154: #{rinet_forward.1} parent=141 // pred_check
                _
              $region155: #{rinet_forward.1} parent=141 // pred_check_branch
                %705 = sbr.rel (0) target = $region157
              $region156: #{rinet_forward.1} parent=141 // pred_region
                loop: start=0, step=1, limit=1
                $region158: #{rinet_forward.1} parent=156 // loop_pre_header
                  _
                $region159: #{rinet_forward.1} parent=156 // loop_header
                  %s707 = sphi 0, %s711
                  %p708 = scmp.ge.s32.totalorder %s707, 1
                  %s712 = sphi %s656, %s656
                  %s713 = sphi %s648, %s648
                $region160: #{rinet_forward.1} parent=156 // loop_header_branch
                  %710 = sbr.rel (%p708) target = $region164
                $region161: #{rinet_forward.1} parent=156 // loop_body
                  _
                $region162: #{rinet_forward.1} parent=156 // loop_footer
                  %s711 = sadd.s32 1, %s707
                $region163: #{rinet_forward.1} parent=156 // loop_footer_branch
                  %706 = sbr.rel target = $region159
                $region164: #{rinet_forward.1} parent=156 // loop_exit
                  _
                loop: start=0, step=1, limit=1
                $region165: #{rinet_forward.1} parent=156 // loop_pre_header
                  _
                $region166: #{rinet_forward.1} parent=156 // loop_header
                  %s716 = sphi 0, %s720
                  %p717 = scmp.ge.s32.totalorder %s716, 1
                  %s721 = sphi %s656, %s656
                  %s722 = sphi %s648, %s648
                $region167: #{rinet_forward.1} parent=156 // loop_header_branch
                  %719 = sbr.rel (%p717) target = $region171
                $region168: #{rinet_forward.1} parent=156 // loop_body
                  %v723 = vld [vmem:[%s721] sm:$0xf]
                  %724 = vst [vmem:[%s722] sm:$0xf] %v723
                  %v725 = vld [vmem:[%s721 + $0x8] sm:$0xf]
                  %726 = vst [vmem:[%s722 + $0x4] sm:$0xf] %v725
                  %v727 = vld [vmem:[%s721 + $0x10] sm:$0xf]
                  %728 = vst [vmem:[%s722 + $0x8] sm:$0xf] %v727
                  %v729 = vld [vmem:[%s721 + $0x18] sm:$0xf]
                  %730 = vst [vmem:[%s722 + $0xc] sm:$0xf] %v729
                  %v731 = vld [vmem:[%s721 + $0x20] sm:$0xf]
                  %732 = vst [vmem:[%s722 + $0x10] sm:$0xf] %v731
                  %v733 = vld [vmem:[%s721 + $0x28] sm:$0xf]
                  %734 = vst [vmem:[%s722 + $0x14] sm:$0xf] %v733
                  %v735 = vld [vmem:[%s721 + $0x30] sm:$0xf]
                  %736 = vst [vmem:[%s722 + $0x18] sm:$0xf] %v735
                  %v737 = vld [vmem:[%s721 + $0x38] sm:$0xf]
                  %738 = vst [vmem:[%s722 + $0x1c] sm:$0xf] %v737
                  %v739 = vld [vmem:[%s721 + $0x40] sm:$0xf]
                  %740 = vst [vmem:[%s722 + $0x20] sm:$0xf] %v739
                  %v741 = vld [vmem:[%s721 + $0x48] sm:$0xf]
                  %742 = vst [vmem:[%s722 + $0x24] sm:$0xf] %v741
                  %v743 = vld [vmem:[%s721 + $0x50] sm:$0xf]
                  %744 = vst [vmem:[%s722 + $0x28] sm:$0xf] %v743
                  %v745 = vld [vmem:[%s721 + $0x58] sm:$0xf]
                  %746 = vst [vmem:[%s722 + $0x2c] sm:$0xf] %v745
                  %v747 = vld [vmem:[%s721 + $0x60] sm:$0xf]
                  %748 = vst [vmem:[%s722 + $0x30] sm:$0xf] %v747
                  %v749 = vld [vmem:[%s721 + $0x68] sm:$0xf]
                  %750 = vst [vmem:[%s722 + $0x34] sm:$0xf] %v749
                  %v751 = vld [vmem:[%s721 + $0x70] sm:$0xf]
                  %752 = vst [vmem:[%s722 + $0x38] sm:$0xf] %v751
                  %v753 = vld [vmem:[%s721 + $0x78] sm:$0xf]
                  %754 = vst [vmem:[%s722 + $0x3c] sm:$0xf] %v753
                $region169: #{rinet_forward.1} parent=156 // loop_footer
                  %s720 = sadd.s32 1, %s716
                $region170: #{rinet_forward.1} parent=156 // loop_footer_branch
                  %715 = sbr.rel target = $region166
                $region171: #{rinet_forward.1} parent=156 // loop_exit
                  _
              $region157: #{rinet_forward.1} parent=141 // pred_fallthru
                _
            $region142: #{rinet_forward.1} parent=137 // pred_fallthru
              _
            // Predicated region
            $region143: #{rinet_forward.1} parent=137 // pred_check
              _
            $region144: #{rinet_forward.1} parent=137 // pred_check_branch
              %662 = sbr.rel (0) target = $region146
            $region145: #{rinet_forward.1} parent=137 // pred_region
              loop: start=0, step=1, limit=1
              $region147: #{rinet_forward.1} parent=145 // loop_pre_header
                _
              $region148: #{rinet_forward.1} parent=145 // loop_header
                %s665 = sphi 0, %s669
                %p666 = scmp.ge.s32.totalorder %s665, 1
                %s670 = sphi %s656, %s656
                %s671 = sphi %s648, %s648
              $region149: #{rinet_forward.1} parent=145 // loop_header_branch
                %668 = sbr.rel (%p666) target = $region153
              $region150: #{rinet_forward.1} parent=145 // loop_body
                %v672 = vld [vmem:[%s670] sm:$0xf]
                %673 = vst [vmem:[%s671] sm:$0xf] %v672
                %v674 = vld [vmem:[%s670 + $0x8] sm:$0xf]
                %675 = vst [vmem:[%s671 + $0x4] sm:$0xf] %v674
                %v676 = vld [vmem:[%s670 + $0x10] sm:$0xf]
                %677 = vst [vmem:[%s671 + $0x8] sm:$0xf] %v676
                %v678 = vld [vmem:[%s670 + $0x18] sm:$0xf]
                %679 = vst [vmem:[%s671 + $0xc] sm:$0xf] %v678
                %v680 = vld [vmem:[%s670 + $0x20] sm:$0xf]
                %681 = vst [vmem:[%s671 + $0x10] sm:$0xf] %v680
                %v682 = vld [vmem:[%s670 + $0x28] sm:$0xf]
                %683 = vst [vmem:[%s671 + $0x14] sm:$0xf] %v682
                %v684 = vld [vmem:[%s670 + $0x30] sm:$0xf]
                %685 = vst [vmem:[%s671 + $0x18] sm:$0xf] %v684
                %v686 = vld [vmem:[%s670 + $0x38] sm:$0xf]
                %687 = vst [vmem:[%s671 + $0x1c] sm:$0xf] %v686
                %v688 = vld [vmem:[%s670 + $0x40] sm:$0xf]
                %689 = vst [vmem:[%s671 + $0x20] sm:$0xf] %v688
                %v690 = vld [vmem:[%s670 + $0x48] sm:$0xf]
                %691 = vst [vmem:[%s671 + $0x24] sm:$0xf] %v690
                %v692 = vld [vmem:[%s670 + $0x50] sm:$0xf]
                %693 = vst [vmem:[%s671 + $0x28] sm:$0xf] %v692
                %v694 = vld [vmem:[%s670 + $0x58] sm:$0xf]
                %695 = vst [vmem:[%s671 + $0x2c] sm:$0xf] %v694
                %v696 = vld [vmem:[%s670 + $0x60] sm:$0xf]
                %697 = vst [vmem:[%s671 + $0x30] sm:$0xf] %v696
                %v698 = vld [vmem:[%s670 + $0x68] sm:$0xf]
                %699 = vst [vmem:[%s671 + $0x34] sm:$0xf] %v698
                %v700 = vld [vmem:[%s670 + $0x70] sm:$0xf]
                %701 = vst [vmem:[%s671 + $0x38] sm:$0xf] %v700
                %v702 = vld [vmem:[%s670 + $0x78] sm:$0xf]
                %703 = vst [vmem:[%s671 + $0x3c] sm:$0xf] %v702
              $region151: #{rinet_forward.1} parent=145 // loop_footer
                %s669 = sadd.s32 1, %s665
              $region152: #{rinet_forward.1} parent=145 // loop_footer_branch
                %664 = sbr.rel target = $region148
              $region153: #{rinet_forward.1} parent=145 // loop_exit
                _
            $region146: #{rinet_forward.1} parent=137 // pred_fallthru
              _
          $region138: #{rinet_forward.1} parent=133 // pred_fallthru
            _
          %755 = vnop
        $region134: #{rinet_forward.1} parent=47 // pred_fallthru
          _
        // Predicated region
        $region172: #{rinet_forward.1} parent=47 // pred_check
          %p756 = pneg %p167
        $region173: #{rinet_forward.1} parent=47 // pred_check_branch
          %758 = sbr.rel (%p756) target = $region175
        $region174: #{rinet_forward.1} parent=47 // pred_region
          %s759 = sand.u32 %s157, 1
          %s760 = sand.u32 %s157, 1
          %s761 = smul.addr %s760, 64
          %s762 = scalar_lea.vmem [#allocation9], %s761
          %p763 = scmp.eq.s32.totalorder %s25, 0
          %s764 = scalar_select %p763, 0, %s26
          %s765 = scalar_select %p763, 0, %s27
          %s766 = smul.u32 16, %s764
          %s767 = smul.addr %s766, 2
          %s768 = sadd.s32 %s765, %s767
          %s769 = smul.addr %s768, 4
          %s770 = scalar_lea.vmem %s3, %s769
          // Predicated region
          $region176: #{rinet_forward.1} parent=174 // pred_check
            _
          $region177: #{rinet_forward.1} parent=174 // pred_check_branch
            %772 = sbr.rel (0) target = $region179
          $region178: #{rinet_forward.1} parent=174 // pred_region
            // Predicated region
            $region180: #{rinet_forward.1} parent=178 // pred_check
              _
            $region181: #{rinet_forward.1} parent=178 // pred_check_branch
              %774 = sbr.rel target = $region183
            $region182: #{rinet_forward.1} parent=178 // pred_region
              // Predicated region
              $region195: #{rinet_forward.1} parent=182 // pred_check
                _
              $region196: #{rinet_forward.1} parent=182 // pred_check_branch
                %819 = sbr.rel (0) target = $region198
              $region197: #{rinet_forward.1} parent=182 // pred_region
                loop: start=0, step=1, limit=1
                $region199: #{rinet_forward.1} parent=197 // loop_pre_header
                  _
                $region200: #{rinet_forward.1} parent=197 // loop_header
                  %s821 = sphi 0, %s825
                  %p822 = scmp.ge.s32.totalorder %s821, 1
                  %s826 = sphi %s770, %s770
                  %s827 = sphi %s762, %s762
                $region201: #{rinet_forward.1} parent=197 // loop_header_branch
                  %824 = sbr.rel (%p822) target = $region205
                $region202: #{rinet_forward.1} parent=197 // loop_body
                  _
                $region203: #{rinet_forward.1} parent=197 // loop_footer
                  %s825 = sadd.s32 1, %s821
                $region204: #{rinet_forward.1} parent=197 // loop_footer_branch
                  %820 = sbr.rel target = $region200
                $region205: #{rinet_forward.1} parent=197 // loop_exit
                  _
                loop: start=0, step=1, limit=1
                $region206: #{rinet_forward.1} parent=197 // loop_pre_header
                  _
                $region207: #{rinet_forward.1} parent=197 // loop_header
                  %s830 = sphi 0, %s834
                  %p831 = scmp.ge.s32.totalorder %s830, 1
                  %s835 = sphi %s770, %s770
                  %s836 = sphi %s762, %s762
                $region208: #{rinet_forward.1} parent=197 // loop_header_branch
                  %833 = sbr.rel (%p831) target = $region212
                $region209: #{rinet_forward.1} parent=197 // loop_body
                  %v837 = vld [vmem:[%s835] sm:$0xf]
                  %838 = vst [vmem:[%s836] sm:$0xf] %v837
                  %v839 = vld [vmem:[%s835 + $0x8] sm:$0xf]
                  %840 = vst [vmem:[%s836 + $0x4] sm:$0xf] %v839
                  %v841 = vld [vmem:[%s835 + $0x10] sm:$0xf]
                  %842 = vst [vmem:[%s836 + $0x8] sm:$0xf] %v841
                  %v843 = vld [vmem:[%s835 + $0x18] sm:$0xf]
                  %844 = vst [vmem:[%s836 + $0xc] sm:$0xf] %v843
                  %v845 = vld [vmem:[%s835 + $0x20] sm:$0xf]
                  %846 = vst [vmem:[%s836 + $0x10] sm:$0xf] %v845
                  %v847 = vld [vmem:[%s835 + $0x28] sm:$0xf]
                  %848 = vst [vmem:[%s836 + $0x14] sm:$0xf] %v847
                  %v849 = vld [vmem:[%s835 + $0x30] sm:$0xf]
                  %850 = vst [vmem:[%s836 + $0x18] sm:$0xf] %v849
                  %v851 = vld [vmem:[%s835 + $0x38] sm:$0xf]
                  %852 = vst [vmem:[%s836 + $0x1c] sm:$0xf] %v851
                  %v853 = vld [vmem:[%s835 + $0x40] sm:$0xf]
                  %854 = vst [vmem:[%s836 + $0x20] sm:$0xf] %v853
                  %v855 = vld [vmem:[%s835 + $0x48] sm:$0xf]
                  %856 = vst [vmem:[%s836 + $0x24] sm:$0xf] %v855
                  %v857 = vld [vmem:[%s835 + $0x50] sm:$0xf]
                  %858 = vst [vmem:[%s836 + $0x28] sm:$0xf] %v857
                  %v859 = vld [vmem:[%s835 + $0x58] sm:$0xf]
                  %860 = vst [vmem:[%s836 + $0x2c] sm:$0xf] %v859
                  %v861 = vld [vmem:[%s835 + $0x60] sm:$0xf]
                  %862 = vst [vmem:[%s836 + $0x30] sm:$0xf] %v861
                  %v863 = vld [vmem:[%s835 + $0x68] sm:$0xf]
                  %864 = vst [vmem:[%s836 + $0x34] sm:$0xf] %v863
                  %v865 = vld [vmem:[%s835 + $0x70] sm:$0xf]
                  %866 = vst [vmem:[%s836 + $0x38] sm:$0xf] %v865
                  %v867 = vld [vmem:[%s835 + $0x78] sm:$0xf]
                  %868 = vst [vmem:[%s836 + $0x3c] sm:$0xf] %v867
                $region210: #{rinet_forward.1} parent=197 // loop_footer
                  %s834 = sadd.s32 1, %s830
                $region211: #{rinet_forward.1} parent=197 // loop_footer_branch
                  %829 = sbr.rel target = $region207
                $region212: #{rinet_forward.1} parent=197 // loop_exit
                  _
              $region198: #{rinet_forward.1} parent=182 // pred_fallthru
                _
            $region183: #{rinet_forward.1} parent=178 // pred_fallthru
              _
            // Predicated region
            $region184: #{rinet_forward.1} parent=178 // pred_check
              _
            $region185: #{rinet_forward.1} parent=178 // pred_check_branch
              %776 = sbr.rel (0) target = $region187
            $region186: #{rinet_forward.1} parent=178 // pred_region
              loop: start=0, step=1, limit=1
              $region188: #{rinet_forward.1} parent=186 // loop_pre_header
                _
              $region189: #{rinet_forward.1} parent=186 // loop_header
                %s779 = sphi 0, %s783
                %p780 = scmp.ge.s32.totalorder %s779, 1
                %s784 = sphi %s770, %s770
                %s785 = sphi %s762, %s762
              $region190: #{rinet_forward.1} parent=186 // loop_header_branch
                %782 = sbr.rel (%p780) target = $region194
              $region191: #{rinet_forward.1} parent=186 // loop_body
                %v786 = vld [vmem:[%s784] sm:$0xf]
                %787 = vst [vmem:[%s785] sm:$0xf] %v786
                %v788 = vld [vmem:[%s784 + $0x8] sm:$0xf]
                %789 = vst [vmem:[%s785 + $0x4] sm:$0xf] %v788
                %v790 = vld [vmem:[%s784 + $0x10] sm:$0xf]
                %791 = vst [vmem:[%s785 + $0x8] sm:$0xf] %v790
                %v792 = vld [vmem:[%s784 + $0x18] sm:$0xf]
                %793 = vst [vmem:[%s785 + $0xc] sm:$0xf] %v792
                %v794 = vld [vmem:[%s784 + $0x20] sm:$0xf]
                %795 = vst [vmem:[%s785 + $0x10] sm:$0xf] %v794
                %v796 = vld [vmem:[%s784 + $0x28] sm:$0xf]
                %797 = vst [vmem:[%s785 + $0x14] sm:$0xf] %v796
                %v798 = vld [vmem:[%s784 + $0x30] sm:$0xf]
                %799 = vst [vmem:[%s785 + $0x18] sm:$0xf] %v798
                %v800 = vld [vmem:[%s784 + $0x38] sm:$0xf]
                %801 = vst [vmem:[%s785 + $0x1c] sm:$0xf] %v800
                %v802 = vld [vmem:[%s784 + $0x40] sm:$0xf]
                %803 = vst [vmem:[%s785 + $0x20] sm:$0xf] %v802
                %v804 = vld [vmem:[%s784 + $0x48] sm:$0xf]
                %805 = vst [vmem:[%s785 + $0x24] sm:$0xf] %v804
                %v806 = vld [vmem:[%s784 + $0x50] sm:$0xf]
                %807 = vst [vmem:[%s785 + $0x28] sm:$0xf] %v806
                %v808 = vld [vmem:[%s784 + $0x58] sm:$0xf]
                %809 = vst [vmem:[%s785 + $0x2c] sm:$0xf] %v808
                %v810 = vld [vmem:[%s784 + $0x60] sm:$0xf]
                %811 = vst [vmem:[%s785 + $0x30] sm:$0xf] %v810
                %v812 = vld [vmem:[%s784 + $0x68] sm:$0xf]
                %813 = vst [vmem:[%s785 + $0x34] sm:$0xf] %v812
                %v814 = vld [vmem:[%s784 + $0x70] sm:$0xf]
                %815 = vst [vmem:[%s785 + $0x38] sm:$0xf] %v814
                %v816 = vld [vmem:[%s784 + $0x78] sm:$0xf]
                %817 = vst [vmem:[%s785 + $0x3c] sm:$0xf] %v816
              $region192: #{rinet_forward.1} parent=186 // loop_footer
                %s783 = sadd.s32 1, %s779
              $region193: #{rinet_forward.1} parent=186 // loop_footer_branch
                %778 = sbr.rel target = $region189
              $region194: #{rinet_forward.1} parent=186 // loop_exit
                _
            $region187: #{rinet_forward.1} parent=178 // pred_fallthru
              _
          $region179: #{rinet_forward.1} parent=174 // pred_fallthru
            _
          %869 = vnop
        $region175: #{rinet_forward.1} parent=47 // pred_fallthru
          _
      $region48: #{rinet_forward.1} parent=5 // pred_fallthru
        _
      %p870 = scmp.le.s32.totalorder 1, %s18
      %p871 = scmp.lt.s32.totalorder %s18, 13
      %p872 = pnand %p870, %p871
      %p873 = pneg %p872
      // Predicated region
      $region213: #{rinet_forward.1} parent=5 // pred_check
        _
      $region214: #{rinet_forward.1} parent=5 // pred_check_branch
        %875 = sbr.rel (%p872) target = $region216
      $region215: #{rinet_forward.1} parent=5 // pred_region
        %s876 = ssub.s32 %s18, 1
        %s877 = sand.u32 %s58, 1
        %s878 = sand.u32 %s58, 1
        %s879 = smul.addr %s878, 64
        %s880 = scalar_lea.vmem [#allocation6], %s879
        // Predicated region
        $region217: #{rinet_forward.1} parent=215 // pred_check
          %p881 = pneg %p71
        $region218: #{rinet_forward.1} parent=215 // pred_check_branch
          %883 = sbr.rel (%p881) target = $region220
        $region219: #{rinet_forward.1} parent=215 // pred_region
          _
        $region220: #{rinet_forward.1} parent=215 // pred_fallthru
          _
        %s884 = sand.u32 %s92, 1
        %s885 = sand.u32 %s92, 1
        %s886 = smul.addr %s885, 64
        %s887 = scalar_lea.vmem [#allocation7], %s886
        // Predicated region
        $region221: #{rinet_forward.1} parent=215 // pred_check
          %p888 = pneg %p105
        $region222: #{rinet_forward.1} parent=215 // pred_check_branch
          %890 = sbr.rel (%p888) target = $region224
        $region223: #{rinet_forward.1} parent=215 // pred_region
          _
        $region224: #{rinet_forward.1} parent=215 // pred_fallthru
          _
        %s891 = sand.u32 %s126, 1
        %s892 = sand.u32 %s126, 1
        %s893 = smul.addr %s892, 64
        %s894 = scalar_lea.vmem [#allocation8], %s893
        // Predicated region
        $region225: #{rinet_forward.1} parent=215 // pred_check
          %p895 = pneg %p139
        $region226: #{rinet_forward.1} parent=215 // pred_check_branch
          %897 = sbr.rel (%p895) target = $region228
        $region227: #{rinet_forward.1} parent=215 // pred_region
          _
        $region228: #{rinet_forward.1} parent=215 // pred_fallthru
          _
        %s898 = sand.u32 %s160, 1
        %s899 = sand.u32 %s160, 1
        %s900 = smul.addr %s899, 64
        %s901 = scalar_lea.vmem [#allocation9], %s900
        // Predicated region
        $region229: #{rinet_forward.1} parent=215 // pred_check
          %p902 = pneg %p173
        $region230: #{rinet_forward.1} parent=215 // pred_check_branch
          %904 = sbr.rel (%p902) target = $region232
        $region231: #{rinet_forward.1} parent=215 // pred_region
          _
        $region232: #{rinet_forward.1} parent=215 // pred_fallthru
          _
        %s905 = sand.u32 %s58, 1
        %s906 = sand.u32 %s58, 1
        %s907 = smul.addr %s906, 64
        %s908 = scalar_lea.vmem [#allocation6], %s907
        %p909 = pneg %p71
        %p910 = pneg %p68
        %s911 = sand.u32 %s92, 1
        %s912 = sand.u32 %s92, 1
        %s913 = smul.addr %s912, 64
        %s914 = scalar_lea.vmem [#allocation7], %s913
        %p915 = pneg %p105
        %p916 = pneg %p102
        %s917 = sand.u32 %s126, 1
        %s918 = sand.u32 %s126, 1
        %s919 = smul.addr %s918, 64
        %s920 = scalar_lea.vmem [#allocation8], %s919
        %p921 = pneg %p139
        %p922 = pneg %p136
        %s923 = sand.u32 %s160, 1
        %s924 = sand.u32 %s160, 1
        %s925 = smul.addr %s924, 64
        %s926 = scalar_lea.vmem [#allocation9], %s925
        %p927 = pneg %p173
        %p928 = pneg %p170
        %p929 = pneg %p194
        %p930 = pneg %p191
        %p931 = pneg %p215
        %p932 = pneg %p212
        %p933 = pneg %p236
        %p934 = pneg %p233
        %p935 = pneg %p257
        %p936 = pneg %p254
        %p937 = pneg %p278
        %p938 = pneg %p275
        %p939 = pneg %p299
        %p940 = pneg %p296
        %p941 = pneg %p320
        %p942 = pneg %p317
        %p943 = pneg %p341
        %p944 = pneg %p338
        %p945 = pneg %p371
        %p946 = pneg %p368
        %p947 = scmp.eq.s32.totalorder %s28, 2
        %s948 = scalar_select %p947, %s29, 0
        %s949 = smul.u32 16, %s948
        %p950 = scmp.lt.s32.totalorder %s949, 31
        %s951 = scalar_select %p950, %s949, 31
        %s952 = smul.addr %s951, 8
        %s953 = scalar_lea.vmem %s12, %s952
        %p954 = scmp.eq.s32.totalorder %s28, 0
        %s955 = scalar_select %p954, %s29, 0
        %s956 = scalar_select %p954, %s30, 0
        %s957 = smul.u32 16, %s955
        %p958 = scmp.eq.s32.totalorder %s28, 0
        %s959 = scalar_select %p958, %s29, 0
        %s960 = scalar_select %p958, %s30, 0
        %s961 = smul.u32 16, %s959
        %p962 = scmp.eq.s32.totalorder %s28, 0
        %s963 = scalar_select %p962, %s29, 0
        %s964 = scalar_select %p962, %s30, 0
        %s965 = smul.u32 16, %s963
        %p966 = scmp.eq.s32.totalorder %s28, 0
        %s967 = scalar_select %p966, 0, %s29
        %s968 = scalar_select %p966, 0, %s30
        %s969 = smul.u32 16, %s967
        %p970 = scmp.eq.s32.totalorder %s28, 2
        %s971 = scalar_select %p970, %s29, 0
        %s972 = smul.u32 16, %s971
        %p973 = scmp.lt.s32.totalorder %s972, 31
        %s974 = scalar_select %p973, %s972, 31
        %s975 = smul.addr %s974, 8
        %s976 = scalar_lea.vmem %s12, %s975
        %p977 = scmp.eq.s32.totalorder %s28, 2
        %s978 = scalar_select %p977, %s29, 0
        %s979 = smul.u32 16, %s978
        %s980 = smul.u32 %s29, 128
        %s981 = smul.u32 %s30, 128
        %p982 = scmp.eq.s32.totalorder %s28, 0
        // Predicated region
        $region233: #{rinet_forward.1} parent=215 // pred_check
          %p983 = pneg %p982
        $region234: #{rinet_forward.1} parent=215 // pred_check_branch
          %985 = sbr.rel (%p983) target = $region236
        $region235: #{rinet_forward.1} parent=215 // pred_region
          %p986 = scmp.eq.s32.totalorder %s30, 0
          // Predicated region
          $region237: #{rinet_forward.1} parent=235 // pred_check
            %p987 = pneg %p986
          $region238: #{rinet_forward.1} parent=235 // pred_check_branch
            %989 = sbr.rel (%p987) target = $region240
          $region239: #{rinet_forward.1} parent=235 // pred_region
            %vm990 = vcmask 130048
            %991 = vst.msk [vmem:[#allocation4] sm:$0xff] %vm990, 0.0
            %992 = vst.msk [vmem:[#allocation4 + $0x8] sm:$0xff] %vm990, 0.0
            %993 = vst.msk [vmem:[#allocation4 + $0x10] sm:$0xff] %vm990, 0.0
            %994 = vst.msk [vmem:[#allocation4 + $0x18] sm:$0xff] %vm990, 0.0
            %995 = vst.msk [vmem:[#allocation4 + $0x20] sm:$0xff] %vm990, 0.0
            %996 = vst.msk [vmem:[#allocation4 + $0x28] sm:$0xff] %vm990, 0.0
            %997 = vst.msk [vmem:[#allocation4 + $0x30] sm:$0xff] %vm990, 0.0
            %998 = vst.msk [vmem:[#allocation4 + $0x38] sm:$0xff] %vm990, 0.0
            %999 = vst.msk [vmem:[#allocation4 + $0x40] sm:$0xff] %vm990, 0.0
            %1000 = vst.msk [vmem:[#allocation4 + $0x48] sm:$0xff] %vm990, 0.0
            %1001 = vst.msk [vmem:[#allocation4 + $0x50] sm:$0xff] %vm990, 0.0
            %1002 = vst.msk [vmem:[#allocation4 + $0x58] sm:$0xff] %vm990, 0.0
            %1003 = vst.msk [vmem:[#allocation4 + $0x60] sm:$0xff] %vm990, 0.0
            %1004 = vst.msk [vmem:[#allocation4 + $0x68] sm:$0xff] %vm990, 0.0
            %1005 = vst.msk [vmem:[#allocation4 + $0x70] sm:$0xff] %vm990, 0.0
            %1006 = vst.msk [vmem:[#allocation4 + $0x78] sm:$0xff] %vm990, 0.0
          $region240: #{rinet_forward.1} parent=235 // pred_fallthru
            _
          %v1007 = vld [vmem:[#allocation4] sm:$0xff]
          %v1008 = vld [vmem:[#allocation4 + $0x8] sm:$0xff]
          %v1009 = vld [vmem:[#allocation4 + $0x10] sm:$0xff]
          %v1010 = vld [vmem:[#allocation4 + $0x18] sm:$0xff]
          %v1011 = vld [vmem:[#allocation4 + $0x20] sm:$0xff]
          %v1012 = vld [vmem:[#allocation4 + $0x28] sm:$0xff]
          %v1013 = vld [vmem:[#allocation4 + $0x30] sm:$0xff]
          %v1014 = vld [vmem:[#allocation4 + $0x38] sm:$0xff]
          %v1015 = vld [vmem:[#allocation4 + $0x40] sm:$0xff]
          %v1016 = vld [vmem:[#allocation4 + $0x48] sm:$0xff]
          %v1017 = vld [vmem:[#allocation4 + $0x50] sm:$0xff]
          %v1018 = vld [vmem:[#allocation4 + $0x58] sm:$0xff]
          %v1019 = vld [vmem:[#allocation4 + $0x60] sm:$0xff]
          %v1020 = vld [vmem:[#allocation4 + $0x68] sm:$0xff]
          %v1021 = vld [vmem:[#allocation4 + $0x70] sm:$0xff]
          %v1022 = vld [vmem:[#allocation4 + $0x78] sm:$0xff]
          %v1023 = vld [vmem:[%s880] sm:$0xf]
          %v1024 = vld [vmem:[%s880 + $0x4] sm:$0xf]
          %v1025 = vld [vmem:[%s880 + $0x8] sm:$0xf]
          %v1026 = vld [vmem:[%s880 + $0xc] sm:$0xf]
          %v1027 = vld [vmem:[%s880 + $0x10] sm:$0xf]
          %v1028 = vld [vmem:[%s880 + $0x14] sm:$0xf]
          %v1029 = vld [vmem:[%s880 + $0x18] sm:$0xf]
          %v1030 = vld [vmem:[%s880 + $0x1c] sm:$0xf]
          %v1031 = vld [vmem:[%s880 + $0x20] sm:$0xf]
          %v1032 = vld [vmem:[%s880 + $0x24] sm:$0xf]
          %v1033 = vld [vmem:[%s880 + $0x28] sm:$0xf]
          %v1034 = vld [vmem:[%s880 + $0x2c] sm:$0xf]
          %v1035 = vld [vmem:[%s880 + $0x30] sm:$0xf]
          %v1036 = vld [vmem:[%s880 + $0x34] sm:$0xf]
          %v1037 = vld [vmem:[%s880 + $0x38] sm:$0xf]
          %v1038 = vld [vmem:[%s880 + $0x3c] sm:$0xf]
          %v1039 = vunpack.c.l.bf16 %v1023
          %v1040 = vunpack.c.l.bf16 %v1024
          %v1041 = vunpack.c.l.bf16 %v1025
          %v1042 = vunpack.c.l.bf16 %v1026
          %v1043 = vunpack.c.l.bf16 %v1027
          %v1044 = vunpack.c.l.bf16 %v1028
          %v1045 = vunpack.c.l.bf16 %v1029
          %v1046 = vunpack.c.l.bf16 %v1030
          %v1047 = vunpack.c.l.bf16 %v1031
          %v1048 = vunpack.c.l.bf16 %v1032
          %v1049 = vunpack.c.l.bf16 %v1033
          %v1050 = vunpack.c.l.bf16 %v1034
          %v1051 = vunpack.c.l.bf16 %v1035
          %v1052 = vunpack.c.l.bf16 %v1036
          %v1053 = vunpack.c.l.bf16 %v1037
          %v1054 = vunpack.c.l.bf16 %v1038
          %s1055 = scalar_lea.vmem %s5, %s981
          %v1056 = vld [vmem:[%s1055] sm:$0xff]
          %v1057 = vld [vmem:[%s1055 + $0x8] sm:$0xff]
          %v1058 = vld [vmem:[%s1055 + $0x10] sm:$0xff]
          %v1059 = vld [vmem:[%s1055 + $0x18] sm:$0xff]
          %v1060 = vld [vmem:[%s1055 + $0x20] sm:$0xff]
          %v1061 = vld [vmem:[%s1055 + $0x28] sm:$0xff]
          %v1062 = vld [vmem:[%s1055 + $0x30] sm:$0xff]
          %v1063 = vld [vmem:[%s1055 + $0x38] sm:$0xff]
          %v1064 = vld [vmem:[%s1055 + $0x40] sm:$0xff]
          %v1065 = vld [vmem:[%s1055 + $0x48] sm:$0xff]
          %v1066 = vld [vmem:[%s1055 + $0x50] sm:$0xff]
          %v1067 = vld [vmem:[%s1055 + $0x58] sm:$0xff]
          %v1068 = vld [vmem:[%s1055 + $0x60] sm:$0xff]
          %v1069 = vld [vmem:[%s1055 + $0x68] sm:$0xff]
          %v1070 = vld [vmem:[%s1055 + $0x70] sm:$0xff]
          %v1071 = vld [vmem:[%s1055 + $0x78] sm:$0xff]
          %1072 = vmatprep.subr.mxu0 0.0
          %1073 = vmatpush1.msra.mxu0 %v1056
          %1074 = vmatprep.subr.mxu0 0.0
          %1075 = vmatpush1.msra.mxu0 %v1057
          %1076 = vmatprep.subr.mxu0 0.0
          %1077 = vmatpush1.msra.mxu0 %v1058
          %1078 = vmatprep.subr.mxu0 0.0
          %1079 = vmatpush1.msra.mxu0 %v1059
          %1080 = vmatprep.subr.mxu0 0.0
          %1081 = vmatpush1.msra.mxu0 %v1060
          %1082 = vmatprep.subr.mxu0 0.0
          %1083 = vmatpush1.msra.mxu0 %v1061
          %1084 = vmatprep.subr.mxu0 0.0
          %1085 = vmatpush1.msra.mxu0 %v1062
          %1086 = vmatprep.subr.mxu0 0.0
          %1087 = vmatpush1.msra.mxu0 %v1063
          %1088 = vmatprep.subr.mxu0 0.0
          %1089 = vmatpush1.msra.mxu0 %v1064
          %1090 = vmatprep.subr.mxu0 0.0
          %1091 = vmatpush1.msra.mxu0 %v1065
          %1092 = vmatprep.subr.mxu0 0.0
          %1093 = vmatpush1.msra.mxu0 %v1066
          %1094 = vmatprep.subr.mxu0 0.0
          %1095 = vmatpush1.msra.mxu0 %v1067
          %1096 = vmatprep.subr.mxu0 0.0
          %1097 = vmatpush1.msra.mxu0 %v1068
          %1098 = vmatprep.subr.mxu0 0.0
          %1099 = vmatpush1.msra.mxu0 %v1069
          %1100 = vmatprep.subr.mxu0 0.0
          %1101 = vmatpush1.msra.mxu0 %v1070
          %1102 = vmatprep.subr.mxu0 0.0
          %1103 = vmatpush1.msra.mxu0 %v1071
          %1104 = vmatprep.subr.mxu0 0.0
          %1105 = vmatpush1.msra.mxu0 0.0
          %1106 = vmatprep.subr.mxu0 0.0
          %1107 = vmatpush1.msra.mxu0 0.0
          %1108 = vmatprep.subr.mxu0 0.0
          %1109 = vmatpush1.msra.mxu0 0.0
          %1110 = vmatprep.subr.mxu0 0.0
          %1111 = vmatpush1.msra.mxu0 0.0
          %1112 = vmatprep.subr.mxu0 0.0
          %1113 = vmatpush1.msra.mxu0 0.0
          %1114 = vmatprep.subr.mxu0 0.0
          %1115 = vmatpush1.msra.mxu0 0.0
          %1116 = vmatprep.subr.mxu0 0.0
          %1117 = vmatpush1.msra.mxu0 0.0
          %1118 = vmatprep.subr.mxu0 0.0
          %1119 = vmatpush1.msra.mxu0 0.0
          %1120 = vmatprep.subr.mxu0 0.0
          %1121 = vmatpush1.msra.mxu0 0.0
          %1122 = vmatprep.subr.mxu0 0.0
          %1123 = vmatpush1.msra.mxu0 0.0
          %1124 = vmatprep.subr.mxu0 0.0
          %1125 = vmatpush1.msra.mxu0 0.0
          %1126 = vmatprep.subr.mxu0 0.0
          %1127 = vmatpush1.msra.mxu0 0.0
          %1128 = vmatprep.subr.mxu0 0.0
          %1129 = vmatpush1.msra.mxu0 0.0
          %1130 = vmatprep.subr.mxu0 0.0
          %1131 = vmatpush1.msra.mxu0 0.0
          %1132 = vmatprep.subr.mxu0 0.0
          %1133 = vmatpush1.msra.mxu0 0.0
          %1134 = vmatprep.subr.mxu0 0.0
          %1135 = vmatpush1.msra.mxu0 0.0
          %1136 = vmatprep.mubr.f32.mxu0 0.0
          %1137 = vmatmul.mubr.f32.gmra.mrb[0].mxu0 %v1039
          %v1138 = vpop.f32.mrb[0].mxu0
          %v1139 = vadd.f32 0.0, %v1138
          %v1140 = vpop.f32.mrb[0].mxu0
          %1141 = vmatprep.mubr.f32.mxu0 0.0
          %1142 = vmatmul.mubr.f32.gmra.mrb[0].mxu0 %v1040
          %v1143 = vpop.f32.mrb[0].mxu0
          %v1144 = vadd.f32 0.0, %v1143
          %v1145 = vpop.f32.mrb[0].mxu0
          %1146 = vmatprep.mubr.f32.mxu0 0.0
          %1147 = vmatmul.mubr.f32.gmra.mrb[0].mxu0 %v1041
          %v1148 = vpop.f32.mrb[0].mxu0
          %v1149 = vadd.f32 0.0, %v1148
          %v1150 = vpop.f32.mrb[0].mxu0
          %1151 = vmatprep.mubr.f32.mxu0 0.0
          %1152 = vmatmul.mubr.f32.gmra.mrb[0].mxu0 %v1042
          %v1153 = vpop.f32.mrb[0].mxu0
          %v1154 = vadd.f32 0.0, %v1153
          %v1155 = vpop.f32.mrb[0].mxu0
          %1156 = vmatprep.mubr.f32.mxu0 0.0
          %1157 = vmatmul.mubr.f32.gmra.mrb[0].mxu0 %v1043
          %v1158 = vpop.f32.mrb[0].mxu0
          %v1159 = vadd.f32 0.0, %v1158
          %v1160 = vpop.f32.mrb[0].mxu0
          %1161 = vmatprep.mubr.f32.mxu0 0.0
          %1162 = vmatmul.mubr.f32.gmra.mrb[0].mxu0 %v1044
          %v1163 = vpop.f32.mrb[0].mxu0
          %v1164 = vadd.f32 0.0, %v1163
          %v1165 = vpop.f32.mrb[0].mxu0
          %1166 = vmatprep.mubr.f32.mxu0 0.0
          %1167 = vmatmul.mubr.f32.gmra.mrb[0].mxu0 %v1045
          %v1168 = vpop.f32.mrb[0].mxu0
          %v1169 = vadd.f32 0.0, %v1168
          %v1170 = vpop.f32.mrb[0].mxu0
          %1171 = vmatprep.mubr.f32.mxu0 0.0
          %1172 = vmatmul.mubr.f32.gmra.mrb[0].mxu0 %v1046
          %v1173 = vpop.f32.mrb[0].mxu0
          %v1174 = vadd.f32 0.0, %v1173
          %v1175 = vpop.f32.mrb[0].mxu0
          %1176 = vmatprep.mubr.f32.mxu0 0.0
          %1177 = vmatmul.mubr.f32.gmra.mrb[0].mxu0 %v1047
          %v1178 = vpop.f32.mrb[0].mxu0
          %v1179 = vadd.f32 0.0, %v1178
          %v1180 = vpop.f32.mrb[0].mxu0
          %1181 = vmatprep.mubr.f32.mxu0 0.0
          %1182 = vmatmul.mubr.f32.gmra.mrb[0].mxu0 %v1048
          %v1183 = vpop.f32.mrb[0].mxu0
          %v1184 = vadd.f32 0.0, %v1183
          %v1185 = vpop.f32.mrb[0].mxu0
          %1186 = vmatprep.mubr.f32.mxu0 0.0
          %1187 = vmatmul.mubr.f32.gmra.mrb[0].mxu0 %v1049
          %v1188 = vpop.f32.mrb[0].mxu0
          %v1189 = vadd.f32 0.0, %v1188
          %v1190 = vpop.f32.mrb[0].mxu0
          %1191 = vmatprep.mubr.f32.mxu0 0.0
          %1192 = vmatmul.mubr.f32.gmra.mrb[0].mxu0 %v1050
          %v1193 = vpop.f32.mrb[0].mxu0
          %v1194 = vadd.f32 0.0, %v1193
          %v1195 = vpop.f32.mrb[0].mxu0
          %1196 = vmatprep.mubr.f32.mxu0 0.0
          %1197 = vmatmul.mubr.f32.gmra.mrb[0].mxu0 %v1051
          %v1198 = vpop.f32.mrb[0].mxu0
          %v1199 = vadd.f32 0.0, %v1198
          %v1200 = vpop.f32.mrb[0].mxu0
          %1201 = vmatprep.mubr.f32.mxu0 0.0
          %1202 = vmatmul.mubr.f32.gmra.mrb[0].mxu0 %v1052
          %v1203 = vpop.f32.mrb[0].mxu0
          %v1204 = vadd.f32 0.0, %v1203
          %v1205 = vpop.f32.mrb[0].mxu0
          %1206 = vmatprep.mubr.f32.mxu0 0.0
          %1207 = vmatmul.mubr.f32.gmra.mrb[0].mxu0 %v1053
          %v1208 = vpop.f32.mrb[0].mxu0
          %v1209 = vadd.f32 0.0, %v1208
          %v1210 = vpop.f32.mrb[0].mxu0
          %1211 = vmatprep.mubr.f32.mxu0 0.0
          %1212 = vmatmul.mubr.f32.gmra.mrb[0].mxu0 %v1054
          %v1213 = vpop.f32.mrb[0].mxu0
          %v1214 = vadd.f32 0.0, %v1213
          %v1215 = vpop.f32.mrb[0].mxu0
          %1216 = vdwg.mxu0
          %v1217 = vadd.f32 %v1007, %v1139
          %v1218 = vadd.f32 %v1008, %v1144
          %v1219 = vadd.f32 %v1009, %v1149
          %v1220 = vadd.f32 %v1010, %v1154
          %v1221 = vadd.f32 %v1011, %v1159
          %v1222 = vadd.f32 %v1012, %v1164
          %v1223 = vadd.f32 %v1013, %v1169
          %v1224 = vadd.f32 %v1014, %v1174
          %v1225 = vadd.f32 %v1015, %v1179
          %v1226 = vadd.f32 %v1016, %v1184
          %v1227 = vadd.f32 %v1017, %v1189
          %v1228 = vadd.f32 %v1018, %v1194
          %v1229 = vadd.f32 %v1019, %v1199
          %v1230 = vadd.f32 %v1020, %v1204
          %v1231 = vadd.f32 %v1021, %v1209
          %v1232 = vadd.f32 %v1022, %v1214
          %v1233 = vld [vmem:[%s887] sm:$0xf]
          %v1234 = vld [vmem:[%s887 + $0x4] sm:$0xf]
          %v1235 = vld [vmem:[%s887 + $0x8] sm:$0xf]
          %v1236 = vld [vmem:[%s887 + $0xc] sm:$0xf]
          %v1237 = vld [vmem:[%s887 + $0x10] sm:$0xf]
          %v1238 = vld [vmem:[%s887 + $0x14] sm:$0xf]
          %v1239 = vld [vmem:[%s887 + $0x18] sm:$0xf]
          %v1240 = vld [vmem:[%s887 + $0x1c] sm:$0xf]
          %v1241 = vld [vmem:[%s887 + $0x20] sm:$0xf]
          %v1242 = vld [vmem:[%s887 + $0x24] sm:$0xf]
          %v1243 = vld [vmem:[%s887 + $0x28] sm:$0xf]
          %v1244 = vld [vmem:[%s887 + $0x2c] sm:$0xf]
          %v1245 = vld [vmem:[%s887 + $0x30] sm:$0xf]
          %v1246 = vld [vmem:[%s887 + $0x34] sm:$0xf]
          %v1247 = vld [vmem:[%s887 + $0x38] sm:$0xf]
          %v1248 = vld [vmem:[%s887 + $0x3c] sm:$0xf]
          %v1249 = vunpack.c.l.bf16 %v1233
          %v1250 = vunpack.c.l.bf16 %v1234
          %v1251 = vunpack.c.l.bf16 %v1235
          %v1252 = vunpack.c.l.bf16 %v1236
          %v1253 = vunpack.c.l.bf16 %v1237
          %v1254 = vunpack.c.l.bf16 %v1238
          %v1255 = vunpack.c.l.bf16 %v1239
          %v1256 = vunpack.c.l.bf16 %v1240
          %v1257 = vunpack.c.l.bf16 %v1241
          %v1258 = vunpack.c.l.bf16 %v1242
          %v1259 = vunpack.c.l.bf16 %v1243
          %v1260 = vunpack.c.l.bf16 %v1244
          %v1261 = vunpack.c.l.bf16 %v1245
          %v1262 = vunpack.c.l.bf16 %v1246
          %v1263 = vunpack.c.l.bf16 %v1247
          %v1264 = vunpack.c.l.bf16 %v1248
          %s1265 = scalar_lea.vmem %s6, %s981
          %v1266 = vld [vmem:[%s1265] sm:$0xff]
          %v1267 = vld [vmem:[%s1265 + $0x8] sm:$0xff]
          %v1268 = vld [vmem:[%s1265 + $0x10] sm:$0xff]
          %v1269 = vld [vmem:[%s1265 + $0x18] sm:$0xff]
          %v1270 = vld [vmem:[%s1265 + $0x20] sm:$0xff]
          %v1271 = vld [vmem:[%s1265 + $0x28] sm:$0xff]
          %v1272 = vld [vmem:[%s1265 + $0x30] sm:$0xff]
          %v1273 = vld [vmem:[%s1265 + $0x38] sm:$0xff]
          %v1274 = vld [vmem:[%s1265 + $0x40] sm:$0xff]
          %v1275 = vld [vmem:[%s1265 + $0x48] sm:$0xff]
          %v1276 = vld [vmem:[%s1265 + $0x50] sm:$0xff]
          %v1277 = vld [vmem:[%s1265 + $0x58] sm:$0xff]
          %v1278 = vld [vmem:[%s1265 + $0x60] sm:$0xff]
          %v1279 = vld [vmem:[%s1265 + $0x68] sm:$0xff]
          %v1280 = vld [vmem:[%s1265 + $0x70] sm:$0xff]
          %v1281 = vld [vmem:[%s1265 + $0x78] sm:$0xff]
          %1282 = vmatprep.subr.mxu0 0.0
          %1283 = vmatpush1.msra.mxu0 %v1266
          %1284 = vmatprep.subr.mxu0 0.0
          %1285 = vmatpush1.msra.mxu0 %v1267
          %1286 = vmatprep.subr.mxu0 0.0
          %1287 = vmatpush1.msra.mxu0 %v1268
          %1288 = vmatprep.subr.mxu0 0.0
          %1289 = vmatpush1.msra.mxu0 %v1269
          %1290 = vmatprep.subr.mxu0 0.0
          %1291 = vmatpush1.msra.mxu0 %v1270
          %1292 = vmatprep.subr.mxu0 0.0
          %1293 = vmatpush1.msra.mxu0 %v1271
          %1294 = vmatprep.subr.mxu0 0.0
          %1295 = vmatpush1.msra.mxu0 %v1272
          %1296 = vmatprep.subr.mxu0 0.0
          %1297 = vmatpush1.msra.mxu0 %v1273
          %1298 = vmatprep.subr.mxu0 0.0
          %1299 = vmatpush1.msra.mxu0 %v1274
          %1300 = vmatprep.subr.mxu0 0.0
          %1301 = vmatpush1.msra.mxu0 %v1275
          %1302 = vmatprep.subr.mxu0 0.0
          %1303 = vmatpush1.msra.mxu0 %v1276
          %1304 = vmatprep.subr.mxu0 0.0
          %1305 = vmatpush1.msra.mxu0 %v1277
          %1306 = vmatprep.subr.mxu0 0.0
          %1307 = vmatpush1.msra.mxu0 %v1278
          %1308 = vmatprep.subr.mxu0 0.0
          %1309 = vmatpush1.msra.mxu0 %v1279
          %1310 = vmatprep.subr.mxu0 0.0
          %1311 = vmatpush1.msra.mxu0 %v1280
          %1312 = vmatprep.subr.mxu0 0.0
          %1313 = vmatpush1.msra.mxu0 %v1281
          %1314 = vmatprep.subr.mxu0 0.0
          %1315 = vmatpush1.msra.mxu0 0.0
          %1316 = vmatprep.subr.mxu0 0.0
          %1317 = vmatpush1.msra.mxu0 0.0
          %1318 = vmatprep.subr.mxu0 0.0
          %1319 = vmatpush1.msra.mxu0 0.0
          %1320 = vmatprep.subr.mxu0 0.0
          %1321 = vmatpush1.msra.mxu0 0.0
          %1322 = vmatprep.subr.mxu0 0.0
          %1323 = vmatpush1.msra.mxu0 0.0
          %1324 = vmatprep.subr.mxu0 0.0
          %1325 = vmatpush1.msra.mxu0 0.0
          %1326 = vmatprep.subr.mxu0 0.0
          %1327 = vmatpush1.msra.mxu0 0.0
          %1328 = vmatprep.subr.mxu0 0.0
          %1329 = vmatpush1.msra.mxu0 0.0
          %1330 = vmatprep.subr.mxu0 0.0
          %1331 = vmatpush1.msra.mxu0 0.0
          %1332 = vmatprep.subr.mxu0 0.0
          %1333 = vmatpush1.msra.mxu0 0.0
          %1334 = vmatprep.subr.mxu0 0.0
          %1335 = vmatpush1.msra.mxu0 0.0
          %1336 = vmatprep.subr.mxu0 0.0
          %1337 = vmatpush1.msra.mxu0 0.0
          %1338 = vmatprep.subr.mxu0 0.0
          %1339 = vmatpush1.msra.mxu0 0.0
          %1340 = vmatprep.subr.mxu0 0.0
          %1341 = vmatpush1.msra.mxu0 0.0
          %1342 = vmatprep.subr.mxu0 0.0
          %1343 = vmatpush1.msra.mxu0 0.0
          %1344 = vmatprep.subr.mxu0 0.0
          %1345 = vmatpush1.msra.mxu0 0.0
          %1346 = vmatprep.mubr.f32.mxu0 0.0
          %1347 = vmatmul.mubr.f32.gmra.mrb[0].mxu0 %v1249
          %v1348 = vpop.f32.mrb[0].mxu0
          %v1349 = vadd.f32 0.0, %v1348
          %v1350 = vpop.f32.mrb[0].mxu0
          %1351 = vmatprep.mubr.f32.mxu0 0.0
          %1352 = vmatmul.mubr.f32.gmra.mrb[0].mxu0 %v1250
          %v1353 = vpop.f32.mrb[0].mxu0
          %v1354 = vadd.f32 0.0, %v1353
          %v1355 = vpop.f32.mrb[0].mxu0
          %1356 = vmatprep.mubr.f32.mxu0 0.0
          %1357 = vmatmul.mubr.f32.gmra.mrb[0].mxu0 %v1251
          %v1358 = vpop.f32.mrb[0].mxu0
          %v1359 = vadd.f32 0.0, %v1358
          %v1360 = vpop.f32.mrb[0].mxu0
          %1361 = vmatprep.mubr.f32.mxu0 0.0
          %1362 = vmatmul.mubr.f32.gmra.mrb[0].mxu0 %v1252
          %v1363 = vpop.f32.mrb[0].mxu0
          %v1364 = vadd.f32 0.0, %v1363
          %v1365 = vpop.f32.mrb[0].mxu0
          %1366 = vmatprep.mubr.f32.mxu0 0.0
          %1367 = vmatmul.mubr.f32.gmra.mrb[0].mxu0 %v1253
          %v1368 = vpop.f32.mrb[0].mxu0
          %v1369 = vadd.f32 0.0, %v1368
          %v1370 = vpop.f32.mrb[0].mxu0
          %1371 = vmatprep.mubr.f32.mxu0 0.0
          %1372 = vmatmul.mubr.f32.gmra.mrb[0].mxu0 %v1254
          %v1373 = vpop.f32.mrb[0].mxu0
          %v1374 = vadd.f32 0.0, %v1373
          %v1375 = vpop.f32.mrb[0].mxu0
          %1376 = vmatprep.mubr.f32.mxu0 0.0
          %1377 = vmatmul.mubr.f32.gmra.mrb[0].mxu0 %v1255
          %v1378 = vpop.f32.mrb[0].mxu0
          %v1379 = vadd.f32 0.0, %v1378
          %v1380 = vpop.f32.mrb[0].mxu0
          %1381 = vmatprep.mubr.f32.mxu0 0.0
          %1382 = vmatmul.mubr.f32.gmra.mrb[0].mxu0 %v1256
          %v1383 = vpop.f32.mrb[0].mxu0
          %v1384 = vadd.f32 0.0, %v1383
          %v1385 = vpop.f32.mrb[0].mxu0
          %1386 = vmatprep.mubr.f32.mxu0 0.0
          %1387 = vmatmul.mubr.f32.gmra.mrb[0].mxu0 %v1257
          %v1388 = vpop.f32.mrb[0].mxu0
          %v1389 = vadd.f32 0.0, %v1388
          %v1390 = vpop.f32.mrb[0].mxu0
          %1391 = vmatprep.mubr.f32.mxu0 0.0
          %1392 = vmatmul.mubr.f32.gmra.mrb[0].mxu0 %v1258
          %v1393 = vpop.f32.mrb[0].mxu0
          %v1394 = vadd.f32 0.0, %v1393
          %v1395 = vpop.f32.mrb[0].mxu0
          %1396 = vmatprep.mubr.f32.mxu0 0.0
          %1397 = vmatmul.mubr.f32.gmra.mrb[0].mxu0 %v1259
          %v1398 = vpop.f32.mrb[0].mxu0
          %v1399 = vadd.f32 0.0, %v1398
          %v1400 = vpop.f32.mrb[0].mxu0
          %1401 = vmatprep.mubr.f32.mxu0 0.0
          %1402 = vmatmul.mubr.f32.gmra.mrb[0].mxu0 %v1260
          %v1403 = vpop.f32.mrb[0].mxu0
          %v1404 = vadd.f32 0.0, %v1403
          %v1405 = vpop.f32.mrb[0].mxu0
          %1406 = vmatprep.mubr.f32.mxu0 0.0
          %1407 = vmatmul.mubr.f32.gmra.mrb[0].mxu0 %v1261
          %v1408 = vpop.f32.mrb[0].mxu0
          %v1409 = vadd.f32 0.0, %v1408
          %v1410 = vpop.f32.mrb[0].mxu0
          %1411 = vmatprep.mubr.f32.mxu0 0.0
          %1412 = vmatmul.mubr.f32.gmra.mrb[0].mxu0 %v1262
          %v1413 = vpop.f32.mrb[0].mxu0
          %v1414 = vadd.f32 0.0, %v1413
          %v1415 = vpop.f32.mrb[0].mxu0
          %1416 = vmatprep.mubr.f32.mxu0 0.0
          %1417 = vmatmul.mubr.f32.gmra.mrb[0].mxu0 %v1263
          %v1418 = vpop.f32.mrb[0].mxu0
          %v1419 = vadd.f32 0.0, %v1418
          %v1420 = vpop.f32.mrb[0].mxu0
          %1421 = vmatprep.mubr.f32.mxu0 0.0
          %1422 = vmatmul.mubr.f32.gmra.mrb[0].mxu0 %v1264
          %v1423 = vpop.f32.mrb[0].mxu0
          %v1424 = vadd.f32 0.0, %v1423
          %v1425 = vpop.f32.mrb[0].mxu0
          %1426 = vdwg.mxu0
          %v1427 = vadd.f32 %v1217, %v1349
          %v1428 = vadd.f32 %v1218, %v1354
          %v1429 = vadd.f32 %v1219, %v1359
          %v1430 = vadd.f32 %v1220, %v1364
          %v1431 = vadd.f32 %v1221, %v1369
          %v1432 = vadd.f32 %v1222, %v1374
          %v1433 = vadd.f32 %v1223, %v1379
          %v1434 = vadd.f32 %v1224, %v1384
          %v1435 = vadd.f32 %v1225, %v1389
          %v1436 = vadd.f32 %v1226, %v1394
          %v1437 = vadd.f32 %v1227, %v1399
          %v1438 = vadd.f32 %v1228, %v1404
          %v1439 = vadd.f32 %v1229, %v1409
          %v1440 = vadd.f32 %v1230, %v1414
          %v1441 = vadd.f32 %v1231, %v1419
          %v1442 = vadd.f32 %v1232, %v1424
          %v1443 = vld [vmem:[%s894] sm:$0xf]
          %v1444 = vld [vmem:[%s894 + $0x4] sm:$0xf]
          %v1445 = vld [vmem:[%s894 + $0x8] sm:$0xf]
          %v1446 = vld [vmem:[%s894 + $0xc] sm:$0xf]
          %v1447 = vld [vmem:[%s894 + $0x10] sm:$0xf]
          %v1448 = vld [vmem:[%s894 + $0x14] sm:$0xf]
          %v1449 = vld [vmem:[%s894 + $0x18] sm:$0xf]
          %v1450 = vld [vmem:[%s894 + $0x1c] sm:$0xf]
          %v1451 = vld [vmem:[%s894 + $0x20] sm:$0xf]
          %v1452 = vld [vmem:[%s894 + $0x24] sm:$0xf]
          %v1453 = vld [vmem:[%s894 + $0x28] sm:$0xf]
          %v1454 = vld [vmem:[%s894 + $0x2c] sm:$0xf]
          %v1455 = vld [vmem:[%s894 + $0x30] sm:$0xf]
          %v1456 = vld [vmem:[%s894 + $0x34] sm:$0xf]
          %v1457 = vld [vmem:[%s894 + $0x38] sm:$0xf]
          %v1458 = vld [vmem:[%s894 + $0x3c] sm:$0xf]
          %v1459 = vunpack.c.l.bf16 %v1443
          %v1460 = vunpack.c.l.bf16 %v1444
          %v1461 = vunpack.c.l.bf16 %v1445
          %v1462 = vunpack.c.l.bf16 %v1446
          %v1463 = vunpack.c.l.bf16 %v1447
          %v1464 = vunpack.c.l.bf16 %v1448
          %v1465 = vunpack.c.l.bf16 %v1449
          %v1466 = vunpack.c.l.bf16 %v1450
          %v1467 = vunpack.c.l.bf16 %v1451
          %v1468 = vunpack.c.l.bf16 %v1452
          %v1469 = vunpack.c.l.bf16 %v1453
          %v1470 = vunpack.c.l.bf16 %v1454
          %v1471 = vunpack.c.l.bf16 %v1455
          %v1472 = vunpack.c.l.bf16 %v1456
          %v1473 = vunpack.c.l.bf16 %v1457
          %v1474 = vunpack.c.l.bf16 %v1458
          %s1475 = scalar_lea.vmem %s7, %s981
          %v1476 = vld [vmem:[%s1475] sm:$0xff]
          %v1477 = vld [vmem:[%s1475 + $0x8] sm:$0xff]
          %v1478 = vld [vmem:[%s1475 + $0x10] sm:$0xff]
          %v1479 = vld [vmem:[%s1475 + $0x18] sm:$0xff]
          %v1480 = vld [vmem:[%s1475 + $0x20] sm:$0xff]
          %v1481 = vld [vmem:[%s1475 + $0x28] sm:$0xff]
          %v1482 = vld [vmem:[%s1475 + $0x30] sm:$0xff]
          %v1483 = vld [vmem:[%s1475 + $0x38] sm:$0xff]
          %v1484 = vld [vmem:[%s1475 + $0x40] sm:$0xff]
          %v1485 = vld [vmem:[%s1475 + $0x48] sm:$0xff]
          %v1486 = vld [vmem:[%s1475 + $0x50] sm:$0xff]
          %v1487 = vld [vmem:[%s1475 + $0x58] sm:$0xff]
          %v1488 = vld [vmem:[%s1475 + $0x60] sm:$0xff]
          %v1489 = vld [vmem:[%s1475 + $0x68] sm:$0xff]
          %v1490 = vld [vmem:[%s1475 + $0x70] sm:$0xff]
          %v1491 = vld [vmem:[%s1475 + $0x78] sm:$0xff]
          %1492 = vmatprep.subr.mxu0 0.0
          %1493 = vmatpush1.msra.mxu0 %v1476
          %1494 = vmatprep.subr.mxu0 0.0
          %1495 = vmatpush1.msra.mxu0 %v1477
          %1496 = vmatprep.subr.mxu0 0.0
          %1497 = vmatpush1.msra.mxu0 %v1478
          %1498 = vmatprep.subr.mxu0 0.0
          %1499 = vmatpush1.msra.mxu0 %v1479
          %1500 = vmatprep.subr.mxu0 0.0
          %1501 = vmatpush1.msra.mxu0 %v1480
          %1502 = vmatprep.subr.mxu0 0.0
          %1503 = vmatpush1.msra.mxu0 %v1481
          %1504 = vmatprep.subr.mxu0 0.0
          %1505 = vmatpush1.msra.mxu0 %v1482
          %1506 = vmatprep.subr.mxu0 0.0
          %1507 = vmatpush1.msra.mxu0 %v1483
          %1508 = vmatprep.subr.mxu0 0.0
          %1509 = vmatpush1.msra.mxu0 %v1484
          %1510 = vmatprep.subr.mxu0 0.0
          %1511 = vmatpush1.msra.mxu0 %v1485
          %1512 = vmatprep.subr.mxu0 0.0
          %1513 = vmatpush1.msra.mxu0 %v1486
          %1514 = vmatprep.subr.mxu0 0.0
          %1515 = vmatpush1.msra.mxu0 %v1487
          %1516 = vmatprep.subr.mxu0 0.0
          %1517 = vmatpush1.msra.mxu0 %v1488
          %1518 = vmatprep.subr.mxu0 0.0
          %1519 = vmatpush1.msra.mxu0 %v1489
          %1520 = vmatprep.subr.mxu0 0.0
          %1521 = vmatpush1.msra.mxu0 %v1490
          %1522 = vmatprep.subr.mxu0 0.0
          %1523 = vmatpush1.msra.mxu0 %v1491
          %1524 = vmatprep.subr.mxu0 0.0
          %1525 = vmatpush1.msra.mxu0 0.0
          %1526 = vmatprep.subr.mxu0 0.0
          %1527 = vmatpush1.msra.mxu0 0.0
          %1528 = vmatprep.subr.mxu0 0.0
          %1529 = vmatpush1.msra.mxu0 0.0
          %1530 = vmatprep.subr.mxu0 0.0
          %1531 = vmatpush1.msra.mxu0 0.0
          %1532 = vmatprep.subr.mxu0 0.0
          %1533 = vmatpush1.msra.mxu0 0.0
          %1534 = vmatprep.subr.mxu0 0.0
          %1535 = vmatpush1.msra.mxu0 0.0
          %1536 = vmatprep.subr.mxu0 0.0
          %1537 = vmatpush1.msra.mxu0 0.0
          %1538 = vmatprep.subr.mxu0 0.0
          %1539 = vmatpush1.msra.mxu0 0.0
          %1540 = vmatprep.subr.mxu0 0.0
          %1541 = vmatpush1.msra.mxu0 0.0
          %1542 = vmatprep.subr.mxu0 0.0
          %1543 = vmatpush1.msra.mxu0 0.0
          %1544 = vmatprep.subr.mxu0 0.0
          %1545 = vmatpush1.msra.mxu0 0.0
          %1546 = vmatprep.subr.mxu0 0.0
          %1547 = vmatpush1.msra.mxu0 0.0
          %1548 = vmatprep.subr.mxu0 0.0
          %1549 = vmatpush1.msra.mxu0 0.0
          %1550 = vmatprep.subr.mxu0 0.0
          %1551 = vmatpush1.msra.mxu0 0.0
          %1552 = vmatprep.subr.mxu0 0.0
          %1553 = vmatpush1.msra.mxu0 0.0
          %1554 = vmatprep.subr.mxu0 0.0
          %1555 = vmatpush1.msra.mxu0 0.0
          %1556 = vmatprep.mubr.f32.mxu0 0.0
          %1557 = vmatmul.mubr.f32.gmra.mrb[0].mxu0 %v1459
          %v1558 = vpop.f32.mrb[0].mxu0
          %v1559 = vadd.f32 0.0, %v1558
          %v1560 = vpop.f32.mrb[0].mxu0
          %1561 = vmatprep.mubr.f32.mxu0 0.0
          %1562 = vmatmul.mubr.f32.gmra.mrb[0].mxu0 %v1460
          %v1563 = vpop.f32.mrb[0].mxu0
          %v1564 = vadd.f32 0.0, %v1563
          %v1565 = vpop.f32.mrb[0].mxu0
          %1566 = vmatprep.mubr.f32.mxu0 0.0
          %1567 = vmatmul.mubr.f32.gmra.mrb[0].mxu0 %v1461
          %v1568 = vpop.f32.mrb[0].mxu0
          %v1569 = vadd.f32 0.0, %v1568
          %v1570 = vpop.f32.mrb[0].mxu0
          %1571 = vmatprep.mubr.f32.mxu0 0.0
          %1572 = vmatmul.mubr.f32.gmra.mrb[0].mxu0 %v1462
          %v1573 = vpop.f32.mrb[0].mxu0
          %v1574 = vadd.f32 0.0, %v1573
          %v1575 = vpop.f32.mrb[0].mxu0
          %1576 = vmatprep.mubr.f32.mxu0 0.0
          %1577 = vmatmul.mubr.f32.gmra.mrb[0].mxu0 %v1463
          %v1578 = vpop.f32.mrb[0].mxu0
          %v1579 = vadd.f32 0.0, %v1578
          %v1580 = vpop.f32.mrb[0].mxu0
          %1581 = vmatprep.mubr.f32.mxu0 0.0
          %1582 = vmatmul.mubr.f32.gmra.mrb[0].mxu0 %v1464
          %v1583 = vpop.f32.mrb[0].mxu0
          %v1584 = vadd.f32 0.0, %v1583
          %v1585 = vpop.f32.mrb[0].mxu0
          %1586 = vmatprep.mubr.f32.mxu0 0.0
          %1587 = vmatmul.mubr.f32.gmra.mrb[0].mxu0 %v1465
          %v1588 = vpop.f32.mrb[0].mxu0
          %v1589 = vadd.f32 0.0, %v1588
          %v1590 = vpop.f32.mrb[0].mxu0
          %1591 = vmatprep.mubr.f32.mxu0 0.0
          %1592 = vmatmul.mubr.f32.gmra.mrb[0].mxu0 %v1466
          %v1593 = vpop.f32.mrb[0].mxu0
          %v1594 = vadd.f32 0.0, %v1593
          %v1595 = vpop.f32.mrb[0].mxu0
          %1596 = vmatprep.mubr.f32.mxu0 0.0
          %1597 = vmatmul.mubr.f32.gmra.mrb[0].mxu0 %v1467
          %v1598 = vpop.f32.mrb[0].mxu0
          %v1599 = vadd.f32 0.0, %v1598
          %v1600 = vpop.f32.mrb[0].mxu0
          %1601 = vmatprep.mubr.f32.mxu0 0.0
          %1602 = vmatmul.mubr.f32.gmra.mrb[0].mxu0 %v1468
          %v1603 = vpop.f32.mrb[0].mxu0
          %v1604 = vadd.f32 0.0, %v1603
          %v1605 = vpop.f32.mrb[0].mxu0
          %1606 = vmatprep.mubr.f32.mxu0 0.0
          %1607 = vmatmul.mubr.f32.gmra.mrb[0].mxu0 %v1469
          %v1608 = vpop.f32.mrb[0].mxu0
          %v1609 = vadd.f32 0.0, %v1608
          %v1610 = vpop.f32.mrb[0].mxu0
          %1611 = vmatprep.mubr.f32.mxu0 0.0
          %1612 = vmatmul.mubr.f32.gmra.mrb[0].mxu0 %v1470
          %v1613 = vpop.f32.mrb[0].mxu0
          %v1614 = vadd.f32 0.0, %v1613
          %v1615 = vpop.f32.mrb[0].mxu0
          %1616 = vmatprep.mubr.f32.mxu0 0.0
          %1617 = vmatmul.mubr.f32.gmra.mrb[0].mxu0 %v1471
          %v1618 = vpop.f32.mrb[0].mxu0
          %v1619 = vadd.f32 0.0, %v1618
          %v1620 = vpop.f32.mrb[0].mxu0
          %1621 = vmatprep.mubr.f32.mxu0 0.0
          %1622 = vmatmul.mubr.f32.gmra.mrb[0].mxu0 %v1472
          %v1623 = vpop.f32.mrb[0].mxu0
          %v1624 = vadd.f32 0.0, %v1623
          %v1625 = vpop.f32.mrb[0].mxu0
          %1626 = vmatprep.mubr.f32.mxu0 0.0
          %1627 = vmatmul.mubr.f32.gmra.mrb[0].mxu0 %v1473
          %v1628 = vpop.f32.mrb[0].mxu0
          %v1629 = vadd.f32 0.0, %v1628
          %v1630 = vpop.f32.mrb[0].mxu0
          %1631 = vmatprep.mubr.f32.mxu0 0.0
          %1632 = vmatmul.mubr.f32.gmra.mrb[0].mxu0 %v1474
          %v1633 = vpop.f32.mrb[0].mxu0
          %v1634 = vadd.f32 0.0, %v1633
          %v1635 = vpop.f32.mrb[0].mxu0
          %1636 = vdwg.mxu0
          %v1637 = vadd.f32 %v1427, %v1559
          %v1638 = vadd.f32 %v1428, %v1564
          %v1639 = vadd.f32 %v1429, %v1569
          %v1640 = vadd.f32 %v1430, %v1574
          %v1641 = vadd.f32 %v1431, %v1579
          %v1642 = vadd.f32 %v1432, %v1584
          %v1643 = vadd.f32 %v1433, %v1589
          %v1644 = vadd.f32 %v1434, %v1594
          %v1645 = vadd.f32 %v1435, %v1599
          %v1646 = vadd.f32 %v1436, %v1604
          %v1647 = vadd.f32 %v1437, %v1609
          %v1648 = vadd.f32 %v1438, %v1614
          %v1649 = vadd.f32 %v1439, %v1619
          %v1650 = vadd.f32 %v1440, %v1624
          %v1651 = vadd.f32 %v1441, %v1629
          %v1652 = vadd.f32 %v1442, %v1634
          %vm1653 = vcmask 130048
          %1654 = vst.msk [vmem:[#allocation4] sm:$0xff] %vm1653, %v1637
          %1655 = vst.msk [vmem:[#allocation4 + $0x8] sm:$0xff] %vm1653, %v1638
          %1656 = vst.msk [vmem:[#allocation4 + $0x10] sm:$0xff] %vm1653, %v1639
          %1657 = vst.msk [vmem:[#allocation4 + $0x18] sm:$0xff] %vm1653, %v1640
          %1658 = vst.msk [vmem:[#allocation4 + $0x20] sm:$0xff] %vm1653, %v1641
          %1659 = vst.msk [vmem:[#allocation4 + $0x28] sm:$0xff] %vm1653, %v1642
          %1660 = vst.msk [vmem:[#allocation4 + $0x30] sm:$0xff] %vm1653, %v1643
          %1661 = vst.msk [vmem:[#allocation4 + $0x38] sm:$0xff] %vm1653, %v1644
          %1662 = vst.msk [vmem:[#allocation4 + $0x40] sm:$0xff] %vm1653, %v1645
          %1663 = vst.msk [vmem:[#allocation4 + $0x48] sm:$0xff] %vm1653, %v1646
          %1664 = vst.msk [vmem:[#allocation4 + $0x50] sm:$0xff] %vm1653, %v1647
          %1665 = vst.msk [vmem:[#allocation4 + $0x58] sm:$0xff] %vm1653, %v1648
          %1666 = vst.msk [vmem:[#allocation4 + $0x60] sm:$0xff] %vm1653, %v1649
          %1667 = vst.msk [vmem:[#allocation4 + $0x68] sm:$0xff] %vm1653, %v1650
          %1668 = vst.msk [vmem:[#allocation4 + $0x70] sm:$0xff] %vm1653, %v1651
          %1669 = vst.msk [vmem:[#allocation4 + $0x78] sm:$0xff] %vm1653, %v1652
          %p1670 = scmp.eq.s32.totalorder %s30, 1
          // Predicated region
          $region241: #{rinet_forward.1} parent=235 // pred_check
            %p1671 = pneg %p1670
          $region242: #{rinet_forward.1} parent=235 // pred_check_branch
            %1673 = sbr.rel (%p1671) target = $region244
          $region243: #{rinet_forward.1} parent=235 // pred_region
            %v1674 = vld [vmem:[#allocation4] sm:$0xff]
            %v1675 = vld [vmem:[#allocation4 + $0x8] sm:$0xff]
            %v1676 = vld [vmem:[#allocation4 + $0x10] sm:$0xff]
            %v1677 = vld [vmem:[#allocation4 + $0x18] sm:$0xff]
            %v1678 = vld [vmem:[#allocation4 + $0x20] sm:$0xff]
            %v1679 = vld [vmem:[#allocation4 + $0x28] sm:$0xff]
            %v1680 = vld [vmem:[#allocation4 + $0x30] sm:$0xff]
            %v1681 = vld [vmem:[#allocation4 + $0x38] sm:$0xff]
            %v1682 = vld [vmem:[#allocation4 + $0x40] sm:$0xff]
            %v1683 = vld [vmem:[#allocation4 + $0x48] sm:$0xff]
            %v1684 = vld [vmem:[#allocation4 + $0x50] sm:$0xff]
            %v1685 = vld [vmem:[#allocation4 + $0x58] sm:$0xff]
            %v1686 = vld [vmem:[#allocation4 + $0x60] sm:$0xff]
            %v1687 = vld [vmem:[#allocation4 + $0x68] sm:$0xff]
            %v1688 = vld [vmem:[#allocation4 + $0x70] sm:$0xff]
            %v1689 = vld [vmem:[#allocation4 + $0x78] sm:$0xff]
            %s1690 = scalar_lea.vmem %s4, %s980
            %v1691 = vld [vmem:[%s1690] sm:$0xff]
            %v1692 = vld [vmem:[%s1690 + $0x8] sm:$0xff]
            %v1693 = vld [vmem:[%s1690 + $0x10] sm:$0xff]
            %v1694 = vld [vmem:[%s1690 + $0x18] sm:$0xff]
            %v1695 = vld [vmem:[%s1690 + $0x20] sm:$0xff]
            %v1696 = vld [vmem:[%s1690 + $0x28] sm:$0xff]
            %v1697 = vld [vmem:[%s1690 + $0x30] sm:$0xff]
            %v1698 = vld [vmem:[%s1690 + $0x38] sm:$0xff]
            %v1699 = vld [vmem:[%s1690 + $0x40] sm:$0xff]
            %v1700 = vld [vmem:[%s1690 + $0x48] sm:$0xff]
            %v1701 = vld [vmem:[%s1690 + $0x50] sm:$0xff]
            %v1702 = vld [vmem:[%s1690 + $0x58] sm:$0xff]
            %v1703 = vld [vmem:[%s1690 + $0x60] sm:$0xff]
            %v1704 = vld [vmem:[%s1690 + $0x68] sm:$0xff]
            %v1705 = vld [vmem:[%s1690 + $0x70] sm:$0xff]
            %v1706 = vld [vmem:[%s1690 + $0x78] sm:$0xff]
            %v1707 = vadd.f32 %v1674, %v1691
            %v1708 = vadd.f32 %v1675, %v1692
            %v1709 = vadd.f32 %v1676, %v1693
            %v1710 = vadd.f32 %v1677, %v1694
            %v1711 = vadd.f32 %v1678, %v1695
            %v1712 = vadd.f32 %v1679, %v1696
            %v1713 = vadd.f32 %v1680, %v1697
            %v1714 = vadd.f32 %v1681, %v1698
            %v1715 = vadd.f32 %v1682, %v1699
            %v1716 = vadd.f32 %v1683, %v1700
            %v1717 = vadd.f32 %v1684, %v1701
            %v1718 = vadd.f32 %v1685, %v1702
            %v1719 = vadd.f32 %v1686, %v1703
            %v1720 = vadd.f32 %v1687, %v1704
            %v1721 = vadd.f32 %v1688, %v1705
            %v1722 = vadd.f32 %v1689, %v1706
            %s1723 = scalar_lea.vmem [#allocation2], %s980
            %1724 = vst.msk [vmem:[%s1723] sm:$0xff] %vm1653, %v1707
            %1725 = vst.msk [vmem:[%s1723 + $0x8] sm:$0xff] %vm1653, %v1708
            %1726 = vst.msk [vmem:[%s1723 + $0x10] sm:$0xff] %vm1653, %v1709
            %1727 = vst.msk [vmem:[%s1723 + $0x18] sm:$0xff] %vm1653, %v1710
            %1728 = vst.msk [vmem:[%s1723 + $0x20] sm:$0xff] %vm1653, %v1711
            %1729 = vst.msk [vmem:[%s1723 + $0x28] sm:$0xff] %vm1653, %v1712
            %1730 = vst.msk [vmem:[%s1723 + $0x30] sm:$0xff] %vm1653, %v1713
            %1731 = vst.msk [vmem:[%s1723 + $0x38] sm:$0xff] %vm1653, %v1714
            %1732 = vst.msk [vmem:[%s1723 + $0x40] sm:$0xff] %vm1653, %v1715
            %1733 = vst.msk [vmem:[%s1723 + $0x48] sm:$0xff] %vm1653, %v1716
            %1734 = vst.msk [vmem:[%s1723 + $0x50] sm:$0xff] %vm1653, %v1717
            %1735 = vst.msk [vmem:[%s1723 + $0x58] sm:$0xff] %vm1653, %v1718
            %1736 = vst.msk [vmem:[%s1723 + $0x60] sm:$0xff] %vm1653, %v1719
            %1737 = vst.msk [vmem:[%s1723 + $0x68] sm:$0xff] %vm1653, %v1720
            %1738 = vst.msk [vmem:[%s1723 + $0x70] sm:$0xff] %vm1653, %v1721
            %1739 = vst.msk [vmem:[%s1723 + $0x78] sm:$0xff] %vm1653, %v1722
          $region244: #{rinet_forward.1} parent=235 // pred_fallthru
            _
        $region236: #{rinet_forward.1} parent=215 // pred_fallthru
          _
        %p1740 = scmp.eq.s32.totalorder %s28, 1
        // Predicated region
        $region245: #{rinet_forward.1} parent=215 // pred_check
          %p1741 = pneg %p1740
        $region246: #{rinet_forward.1} parent=215 // pred_check_branch
          %1743 = sbr.rel (%p1741) target = $region248
        $region247: #{rinet_forward.1} parent=215 // pred_region
          %p1744 = scmp.eq.s32.totalorder %s30, 0
          // Predicated region
          $region249: #{rinet_forward.1} parent=247 // pred_check
            %p1745 = pneg %p1744
          $region250: #{rinet_forward.1} parent=247 // pred_check_branch
            %1747 = sbr.rel (%p1745) target = $region252
          $region251: #{rinet_forward.1} parent=247 // pred_region
            %vm1748 = vcmask 130048
            %1749 = vst.msk [vmem:[#allocation4] sm:$0xff] %vm1748, 0.0
            %1750 = vst.msk [vmem:[#allocation4 + $0x8] sm:$0xff] %vm1748, 0.0
            %1751 = vst.msk [vmem:[#allocation4 + $0x10] sm:$0xff] %vm1748, 0.0
            %1752 = vst.msk [vmem:[#allocation4 + $0x18] sm:$0xff] %vm1748, 0.0
            %1753 = vst.msk [vmem:[#allocation4 + $0x20] sm:$0xff] %vm1748, 0.0
            %1754 = vst.msk [vmem:[#allocation4 + $0x28] sm:$0xff] %vm1748, 0.0
            %1755 = vst.msk [vmem:[#allocation4 + $0x30] sm:$0xff] %vm1748, 0.0
            %1756 = vst.msk [vmem:[#allocation4 + $0x38] sm:$0xff] %vm1748, 0.0
            %1757 = vst.msk [vmem:[#allocation4 + $0x40] sm:$0xff] %vm1748, 0.0
            %1758 = vst.msk [vmem:[#allocation4 + $0x48] sm:$0xff] %vm1748, 0.0
            %1759 = vst.msk [vmem:[#allocation4 + $0x50] sm:$0xff] %vm1748, 0.0
            %1760 = vst.msk [vmem:[#allocation4 + $0x58] sm:$0xff] %vm1748, 0.0
            %1761 = vst.msk [vmem:[#allocation4 + $0x60] sm:$0xff] %vm1748, 0.0
            %1762 = vst.msk [vmem:[#allocation4 + $0x68] sm:$0xff] %vm1748, 0.0
            %1763 = vst.msk [vmem:[#allocation4 + $0x70] sm:$0xff] %vm1748, 0.0
            %1764 = vst.msk [vmem:[#allocation4 + $0x78] sm:$0xff] %vm1748, 0.0
          $region252: #{rinet_forward.1} parent=247 // pred_fallthru
            _
          %v1765 = vld [vmem:[#allocation4] sm:$0xff]
          %v1766 = vld [vmem:[#allocation4 + $0x8] sm:$0xff]
          %v1767 = vld [vmem:[#allocation4 + $0x10] sm:$0xff]
          %v1768 = vld [vmem:[#allocation4 + $0x18] sm:$0xff]
          %v1769 = vld [vmem:[#allocation4 + $0x20] sm:$0xff]
          %v1770 = vld [vmem:[#allocation4 + $0x28] sm:$0xff]
          %v1771 = vld [vmem:[#allocation4 + $0x30] sm:$0xff]
          %v1772 = vld [vmem:[#allocation4 + $0x38] sm:$0xff]
          %v1773 = vld [vmem:[#allocation4 + $0x40] sm:$0xff]
          %v1774 = vld [vmem:[#allocation4 + $0x48] sm:$0xff]
          %v1775 = vld [vmem:[#allocation4 + $0x50] sm:$0xff]
          %v1776 = vld [vmem:[#allocation4 + $0x58] sm:$0xff]
          %v1777 = vld [vmem:[#allocation4 + $0x60] sm:$0xff]
          %v1778 = vld [vmem:[#allocation4 + $0x68] sm:$0xff]
          %v1779 = vld [vmem:[#allocation4 + $0x70] sm:$0xff]
          %v1780 = vld [vmem:[#allocation4 + $0x78] sm:$0xff]
          %v1781 = vld [vmem:[%s901] sm:$0xf]
          %v1782 = vld [vmem:[%s901 + $0x4] sm:$0xf]
          %v1783 = vld [vmem:[%s901 + $0x8] sm:$0xf]
          %v1784 = vld [vmem:[%s901 + $0xc] sm:$0xf]
          %v1785 = vld [vmem:[%s901 + $0x10] sm:$0xf]
          %v1786 = vld [vmem:[%s901 + $0x14] sm:$0xf]
          %v1787 = vld [vmem:[%s901 + $0x18] sm:$0xf]
          %v1788 = vld [vmem:[%s901 + $0x1c] sm:$0xf]
          %v1789 = vld [vmem:[%s901 + $0x20] sm:$0xf]
          %v1790 = vld [vmem:[%s901 + $0x24] sm:$0xf]
          %v1791 = vld [vmem:[%s901 + $0x28] sm:$0xf]
          %v1792 = vld [vmem:[%s901 + $0x2c] sm:$0xf]
          %v1793 = vld [vmem:[%s901 + $0x30] sm:$0xf]
          %v1794 = vld [vmem:[%s901 + $0x34] sm:$0xf]
          %v1795 = vld [vmem:[%s901 + $0x38] sm:$0xf]
          %v1796 = vld [vmem:[%s901 + $0x3c] sm:$0xf]
          %v1797 = vunpack.c.l.bf16 %v1781
          %v1798 = vunpack.c.l.bf16 %v1782
          %v1799 = vunpack.c.l.bf16 %v1783
          %v1800 = vunpack.c.l.bf16 %v1784
          %v1801 = vunpack.c.l.bf16 %v1785
          %v1802 = vunpack.c.l.bf16 %v1786
          %v1803 = vunpack.c.l.bf16 %v1787
          %v1804 = vunpack.c.l.bf16 %v1788
          %v1805 = vunpack.c.l.bf16 %v1789
          %v1806 = vunpack.c.l.bf16 %v1790
          %v1807 = vunpack.c.l.bf16 %v1791
          %v1808 = vunpack.c.l.bf16 %v1792
          %v1809 = vunpack.c.l.bf16 %v1793
          %v1810 = vunpack.c.l.bf16 %v1794
          %v1811 = vunpack.c.l.bf16 %v1795
          %v1812 = vunpack.c.l.bf16 %v1796
          %s1813 = scalar_lea.vmem [#allocation2], %s981
          %v1814 = vld [vmem:[%s1813] sm:$0xff]
          %v1815 = vld [vmem:[%s1813 + $0x8] sm:$0xff]
          %v1816 = vld [vmem:[%s1813 + $0x10] sm:$0xff]
          %v1817 = vld [vmem:[%s1813 + $0x18] sm:$0xff]
          %v1818 = vld [vmem:[%s1813 + $0x20] sm:$0xff]
          %v1819 = vld [vmem:[%s1813 + $0x28] sm:$0xff]
          %v1820 = vld [vmem:[%s1813 + $0x30] sm:$0xff]
          %v1821 = vld [vmem:[%s1813 + $0x38] sm:$0xff]
          %v1822 = vld [vmem:[%s1813 + $0x40] sm:$0xff]
          %v1823 = vld [vmem:[%s1813 + $0x48] sm:$0xff]
          %v1824 = vld [vmem:[%s1813 + $0x50] sm:$0xff]
          %v1825 = vld [vmem:[%s1813 + $0x58] sm:$0xff]
          %v1826 = vld [vmem:[%s1813 + $0x60] sm:$0xff]
          %v1827 = vld [vmem:[%s1813 + $0x68] sm:$0xff]
          %v1828 = vld [vmem:[%s1813 + $0x70] sm:$0xff]
          %v1829 = vld [vmem:[%s1813 + $0x78] sm:$0xff]
          %1830 = vmatprep.subr.mxu0 0.0
          %1831 = vmatpush1.msra.mxu0 %v1814
          %1832 = vmatprep.subr.mxu0 0.0
          %1833 = vmatpush1.msra.mxu0 %v1815
          %1834 = vmatprep.subr.mxu0 0.0
          %1835 = vmatpush1.msra.mxu0 %v1816
          %1836 = vmatprep.subr.mxu0 0.0
          %1837 = vmatpush1.msra.mxu0 %v1817
          %1838 = vmatprep.subr.mxu0 0.0
          %1839 = vmatpush1.msra.mxu0 %v1818
          %1840 = vmatprep.subr.mxu0 0.0
          %1841 = vmatpush1.msra.mxu0 %v1819
          %1842 = vmatprep.subr.mxu0 0.0
          %1843 = vmatpush1.msra.mxu0 %v1820
          %1844 = vmatprep.subr.mxu0 0.0
          %1845 = vmatpush1.msra.mxu0 %v1821
          %1846 = vmatprep.subr.mxu0 0.0
          %1847 = vmatpush1.msra.mxu0 %v1822
          %1848 = vmatprep.subr.mxu0 0.0
          %1849 = vmatpush1.msra.mxu0 %v1823
          %1850 = vmatprep.subr.mxu0 0.0
          %1851 = vmatpush1.msra.mxu0 %v1824
          %1852 = vmatprep.subr.mxu0 0.0
          %1853 = vmatpush1.msra.mxu0 %v1825
          %1854 = vmatprep.subr.mxu0 0.0
          %1855 = vmatpush1.msra.mxu0 %v1826
          %1856 = vmatprep.subr.mxu0 0.0
          %1857 = vmatpush1.msra.mxu0 %v1827
          %1858 = vmatprep.subr.mxu0 0.0
          %1859 = vmatpush1.msra.mxu0 %v1828
          %1860 = vmatprep.subr.mxu0 0.0
          %1861 = vmatpush1.msra.mxu0 %v1829
          %1862 = vmatprep.subr.mxu0 0.0
          %1863 = vmatpush1.msra.mxu0 0.0
          %1864 = vmatprep.subr.mxu0 0.0
          %1865 = vmatpush1.msra.mxu0 0.0
          %1866 = vmatprep.subr.mxu0 0.0
          %1867 = vmatpush1.msra.mxu0 0.0
          %1868 = vmatprep.subr.mxu0 0.0
          %1869 = vmatpush1.msra.mxu0 0.0
          %1870 = vmatprep.subr.mxu0 0.0
          %1871 = vmatpush1.msra.mxu0 0.0
          %1872 = vmatprep.subr.mxu0 0.0
          %1873 = vmatpush1.msra.mxu0 0.0
          %1874 = vmatprep.subr.mxu0 0.0
          %1875 = vmatpush1.msra.mxu0 0.0
          %1876 = vmatprep.subr.mxu0 0.0
          %1877 = vmatpush1.msra.mxu0 0.0
          %1878 = vmatprep.subr.mxu0 0.0
          %1879 = vmatpush1.msra.mxu0 0.0
          %1880 = vmatprep.subr.mxu0 0.0
          %1881 = vmatpush1.msra.mxu0 0.0
          %1882 = vmatprep.subr.mxu0 0.0
          %1883 = vmatpush1.msra.mxu0 0.0
          %1884 = vmatprep.subr.mxu0 0.0
          %1885 = vmatpush1.msra.mxu0 0.0
          %1886 = vmatprep.subr.mxu0 0.0
          %1887 = vmatpush1.msra.mxu0 0.0
          %1888 = vmatprep.subr.mxu0 0.0
          %1889 = vmatpush1.msra.mxu0 0.0
          %1890 = vmatprep.subr.mxu0 0.0
          %1891 = vmatpush1.msra.mxu0 0.0
          %1892 = vmatprep.subr.mxu0 0.0
          %1893 = vmatpush1.msra.mxu0 0.0
          %1894 = vmatprep.mubr.f32.mxu0 0.0
          %1895 = vmatmul.mubr.f32.gmra.mrb[0].mxu0 %v1797
          %v1896 = vpop.f32.mrb[0].mxu0
          %v1897 = vadd.f32 0.0, %v1896
          %v1898 = vpop.f32.mrb[0].mxu0
          %1899 = vmatprep.mubr.f32.mxu0 0.0
          %1900 = vmatmul.mubr.f32.gmra.mrb[0].mxu0 %v1798
          %v1901 = vpop.f32.mrb[0].mxu0
          %v1902 = vadd.f32 0.0, %v1901
          %v1903 = vpop.f32.mrb[0].mxu0
          %1904 = vmatprep.mubr.f32.mxu0 0.0
          %1905 = vmatmul.mubr.f32.gmra.mrb[0].mxu0 %v1799
          %v1906 = vpop.f32.mrb[0].mxu0
          %v1907 = vadd.f32 0.0, %v1906
          %v1908 = vpop.f32.mrb[0].mxu0
          %1909 = vmatprep.mubr.f32.mxu0 0.0
          %1910 = vmatmul.mubr.f32.gmra.mrb[0].mxu0 %v1800
          %v1911 = vpop.f32.mrb[0].mxu0
          %v1912 = vadd.f32 0.0, %v1911
          %v1913 = vpop.f32.mrb[0].mxu0
          %1914 = vmatprep.mubr.f32.mxu0 0.0
          %1915 = vmatmul.mubr.f32.gmra.mrb[0].mxu0 %v1801
          %v1916 = vpop.f32.mrb[0].mxu0
          %v1917 = vadd.f32 0.0, %v1916
          %v1918 = vpop.f32.mrb[0].mxu0
          %1919 = vmatprep.mubr.f32.mxu0 0.0
          %1920 = vmatmul.mubr.f32.gmra.mrb[0].mxu0 %v1802
          %v1921 = vpop.f32.mrb[0].mxu0
          %v1922 = vadd.f32 0.0, %v1921
          %v1923 = vpop.f32.mrb[0].mxu0
          %1924 = vmatprep.mubr.f32.mxu0 0.0
          %1925 = vmatmul.mubr.f32.gmra.mrb[0].mxu0 %v1803
          %v1926 = vpop.f32.mrb[0].mxu0
          %v1927 = vadd.f32 0.0, %v1926
          %v1928 = vpop.f32.mrb[0].mxu0
          %1929 = vmatprep.mubr.f32.mxu0 0.0
          %1930 = vmatmul.mubr.f32.gmra.mrb[0].mxu0 %v1804
          %v1931 = vpop.f32.mrb[0].mxu0
          %v1932 = vadd.f32 0.0, %v1931
          %v1933 = vpop.f32.mrb[0].mxu0
          %1934 = vmatprep.mubr.f32.mxu0 0.0
          %1935 = vmatmul.mubr.f32.gmra.mrb[0].mxu0 %v1805
          %v1936 = vpop.f32.mrb[0].mxu0
          %v1937 = vadd.f32 0.0, %v1936
          %v1938 = vpop.f32.mrb[0].mxu0
          %1939 = vmatprep.mubr.f32.mxu0 0.0
          %1940 = vmatmul.mubr.f32.gmra.mrb[0].mxu0 %v1806
          %v1941 = vpop.f32.mrb[0].mxu0
          %v1942 = vadd.f32 0.0, %v1941
          %v1943 = vpop.f32.mrb[0].mxu0
          %1944 = vmatprep.mubr.f32.mxu0 0.0
          %1945 = vmatmul.mubr.f32.gmra.mrb[0].mxu0 %v1807
          %v1946 = vpop.f32.mrb[0].mxu0
          %v1947 = vadd.f32 0.0, %v1946
          %v1948 = vpop.f32.mrb[0].mxu0
          %1949 = vmatprep.mubr.f32.mxu0 0.0
          %1950 = vmatmul.mubr.f32.gmra.mrb[0].mxu0 %v1808
          %v1951 = vpop.f32.mrb[0].mxu0
          %v1952 = vadd.f32 0.0, %v1951
          %v1953 = vpop.f32.mrb[0].mxu0
          %1954 = vmatprep.mubr.f32.mxu0 0.0
          %1955 = vmatmul.mubr.f32.gmra.mrb[0].mxu0 %v1809
          %v1956 = vpop.f32.mrb[0].mxu0
          %v1957 = vadd.f32 0.0, %v1956
          %v1958 = vpop.f32.mrb[0].mxu0
          %1959 = vmatprep.mubr.f32.mxu0 0.0
          %1960 = vmatmul.mubr.f32.gmra.mrb[0].mxu0 %v1810
          %v1961 = vpop.f32.mrb[0].mxu0
          %v1962 = vadd.f32 0.0, %v1961
          %v1963 = vpop.f32.mrb[0].mxu0
          %1964 = vmatprep.mubr.f32.mxu0 0.0
          %1965 = vmatmul.mubr.f32.gmra.mrb[0].mxu0 %v1811
          %v1966 = vpop.f32.mrb[0].mxu0
          %v1967 = vadd.f32 0.0, %v1966
          %v1968 = vpop.f32.mrb[0].mxu0
          %1969 = vmatprep.mubr.f32.mxu0 0.0
          %1970 = vmatmul.mubr.f32.gmra.mrb[0].mxu0 %v1812
          %v1971 = vpop.f32.mrb[0].mxu0
          %v1972 = vadd.f32 0.0, %v1971
          %v1973 = vpop.f32.mrb[0].mxu0
          %1974 = vdwg.mxu0
          %v1975 = vadd.f32 %v1765, %v1897
          %v1976 = vadd.f32 %v1766, %v1902
          %v1977 = vadd.f32 %v1767, %v1907
          %v1978 = vadd.f32 %v1768, %v1912
          %v1979 = vadd.f32 %v1769, %v1917
          %v1980 = vadd.f32 %v1770, %v1922
          %v1981 = vadd.f32 %v1771, %v1927
          %v1982 = vadd.f32 %v1772, %v1932
          %v1983 = vadd.f32 %v1773, %v1937
          %v1984 = vadd.f32 %v1774, %v1942
          %v1985 = vadd.f32 %v1775, %v1947
          %v1986 = vadd.f32 %v1776, %v1952
          %v1987 = vadd.f32 %v1777, %v1957
          %v1988 = vadd.f32 %v1778, %v1962
          %v1989 = vadd.f32 %v1779, %v1967
          %v1990 = vadd.f32 %v1780, %v1972
          %vm1991 = vcmask 130048
          %1992 = vst.msk [vmem:[#allocation4] sm:$0xff] %vm1991, %v1975
          %1993 = vst.msk [vmem:[#allocation4 + $0x8] sm:$0xff] %vm1991, %v1976
          %1994 = vst.msk [vmem:[#allocation4 + $0x10] sm:$0xff] %vm1991, %v1977
          %1995 = vst.msk [vmem:[#allocation4 + $0x18] sm:$0xff] %vm1991, %v1978
          %1996 = vst.msk [vmem:[#allocation4 + $0x20] sm:$0xff] %vm1991, %v1979
          %1997 = vst.msk [vmem:[#allocation4 + $0x28] sm:$0xff] %vm1991, %v1980
          %1998 = vst.msk [vmem:[#allocation4 + $0x30] sm:$0xff] %vm1991, %v1981
          %1999 = vst.msk [vmem:[#allocation4 + $0x38] sm:$0xff] %vm1991, %v1982
          %2000 = vst.msk [vmem:[#allocation4 + $0x40] sm:$0xff] %vm1991, %v1983
          %2001 = vst.msk [vmem:[#allocation4 + $0x48] sm:$0xff] %vm1991, %v1984
          %2002 = vst.msk [vmem:[#allocation4 + $0x50] sm:$0xff] %vm1991, %v1985
          %2003 = vst.msk [vmem:[#allocation4 + $0x58] sm:$0xff] %vm1991, %v1986
          %2004 = vst.msk [vmem:[#allocation4 + $0x60] sm:$0xff] %vm1991, %v1987
          %2005 = vst.msk [vmem:[#allocation4 + $0x68] sm:$0xff] %vm1991, %v1988
          %2006 = vst.msk [vmem:[#allocation4 + $0x70] sm:$0xff] %vm1991, %v1989
          %2007 = vst.msk [vmem:[#allocation4 + $0x78] sm:$0xff] %vm1991, %v1990
          %p2008 = scmp.eq.s32.totalorder %s30, 1
          // Predicated region
          $region253: #{rinet_forward.1} parent=247 // pred_check
            %p2009 = pneg %p2008
          $region254: #{rinet_forward.1} parent=247 // pred_check_branch
            %2011 = sbr.rel (%p2009) target = $region256
          $region255: #{rinet_forward.1} parent=247 // pred_region
            %v2012 = vld [vmem:[#allocation4] sm:$0xff]
            %v2013 = vld [vmem:[#allocation4 + $0x8] sm:$0xff]
            %v2014 = vld [vmem:[#allocation4 + $0x10] sm:$0xff]
            %v2015 = vld [vmem:[#allocation4 + $0x18] sm:$0xff]
            %v2016 = vld [vmem:[#allocation4 + $0x20] sm:$0xff]
            %v2017 = vld [vmem:[#allocation4 + $0x28] sm:$0xff]
            %v2018 = vld [vmem:[#allocation4 + $0x30] sm:$0xff]
            %v2019 = vld [vmem:[#allocation4 + $0x38] sm:$0xff]
            %v2020 = vld [vmem:[#allocation4 + $0x40] sm:$0xff]
            %v2021 = vld [vmem:[#allocation4 + $0x48] sm:$0xff]
            %v2022 = vld [vmem:[#allocation4 + $0x50] sm:$0xff]
            %v2023 = vld [vmem:[#allocation4 + $0x58] sm:$0xff]
            %v2024 = vld [vmem:[#allocation4 + $0x60] sm:$0xff]
            %v2025 = vld [vmem:[#allocation4 + $0x68] sm:$0xff]
            %v2026 = vld [vmem:[#allocation4 + $0x70] sm:$0xff]
            %v2027 = vld [vmem:[#allocation4 + $0x78] sm:$0xff]
            %v2028 = vld [vmem:[%s8] sm:$0xff]
            %v2029 = vld [vmem:[%s8 + $0x8] sm:$0xff]
            %v2030 = vld [vmem:[%s9] sm:$0x1]
            %v2032 = vlaneseq
            %v2033 = vshrl.u32 %v2032, 7
            %v2034 = vsub.s32 0, %v2033
            %v2035 = vrot.slane %v2030, %v2034
            %v2038 = vsel %vm1991, %v2012, 0
            %v2041 = vsel %vm1991, %v2013, 0
            %v2044 = vsel %vm1991, %v2014, 0
            %v2047 = vsel %vm1991, %v2015, 0
            %v2050 = vsel %vm1991, %v2016, 0
            %v2053 = vsel %vm1991, %v2017, 0
            %v2056 = vsel %vm1991, %v2018, 0
            %v2059 = vsel %vm1991, %v2019, 0
            %v2062 = vsel %vm1991, %v2020, 0
            %v2065 = vsel %vm1991, %v2021, 0
            %v2068 = vsel %vm1991, %v2022, 0
            %v2071 = vsel %vm1991, %v2023, 0
            %v2074 = vsel %vm1991, %v2024, 0
            %v2077 = vsel %vm1991, %v2025, 0
            %v2080 = vsel %vm1991, %v2026, 0
            %v2083 = vsel %vm1991, %v2027, 0
            %2085 = vmatprep.subr.mxu0 0.0
            %2086 = vmatpush1.msra.mxu0 %v2028
            %2087 = vmatprep.subr.mxu0 0.0
            %2088 = vmatpush1.msra.mxu0 %v2029
            %2089 = vmatprep.subr.mxu0 0.0
            %2090 = vmatpush1.msra.mxu0 0.0
            %2091 = vmatprep.subr.mxu0 0.0
            %2092 = vmatpush1.msra.mxu0 0.0
            %2093 = vmatprep.subr.mxu0 0.0
            %2094 = vmatpush1.msra.mxu0 0.0
            %2095 = vmatprep.subr.mxu0 0.0
            %2096 = vmatpush1.msra.mxu0 0.0
            %2097 = vmatprep.subr.mxu0 0.0
            %2098 = vmatpush1.msra.mxu0 0.0
            %2099 = vmatprep.subr.mxu0 0.0
            %2100 = vmatpush1.msra.mxu0 0.0
            %2101 = vmatprep.subr.mxu0 0.0
            %2102 = vmatpush1.msra.mxu0 0.0
            %2103 = vmatprep.subr.mxu0 0.0
            %2104 = vmatpush1.msra.mxu0 0.0
            %2105 = vmatprep.subr.mxu0 0.0
            %2106 = vmatpush1.msra.mxu0 0.0
            %2107 = vmatprep.subr.mxu0 0.0
            %2108 = vmatpush1.msra.mxu0 0.0
            %2109 = vmatprep.subr.mxu0 0.0
            %2110 = vmatpush1.msra.mxu0 0.0
            %2111 = vmatprep.subr.mxu0 0.0
            %2112 = vmatpush1.msra.mxu0 0.0
            %2113 = vmatprep.subr.mxu0 0.0
            %2114 = vmatpush1.msra.mxu0 0.0
            %2115 = vmatprep.subr.mxu0 0.0
            %2116 = vmatpush1.msra.mxu0 0.0
            %2117 = vmatprep.subr.mxu0 0.0
            %2118 = vmatpush1.msra.mxu0 0.0
            %2119 = vmatprep.subr.mxu0 0.0
            %2120 = vmatpush1.msra.mxu0 0.0
            %2121 = vmatprep.subr.mxu0 0.0
            %2122 = vmatpush1.msra.mxu0 0.0
            %2123 = vmatprep.subr.mxu0 0.0
            %2124 = vmatpush1.msra.mxu0 0.0
            %2125 = vmatprep.subr.mxu0 0.0
            %2126 = vmatpush1.msra.mxu0 0.0
            %2127 = vmatprep.subr.mxu0 0.0
            %2128 = vmatpush1.msra.mxu0 0.0
            %2129 = vmatprep.subr.mxu0 0.0
            %2130 = vmatpush1.msra.mxu0 0.0
            %2131 = vmatprep.subr.mxu0 0.0
            %2132 = vmatpush1.msra.mxu0 0.0
            %2133 = vmatprep.subr.mxu0 0.0
            %2134 = vmatpush1.msra.mxu0 0.0
            %2135 = vmatprep.subr.mxu0 0.0
            %2136 = vmatpush1.msra.mxu0 0.0
            %2137 = vmatprep.subr.mxu0 0.0
            %2138 = vmatpush1.msra.mxu0 0.0
            %2139 = vmatprep.subr.mxu0 0.0
            %2140 = vmatpush1.msra.mxu0 0.0
            %2141 = vmatprep.subr.mxu0 0.0
            %2142 = vmatpush1.msra.mxu0 0.0
            %2143 = vmatprep.subr.mxu0 0.0
            %2144 = vmatpush1.msra.mxu0 0.0
            %2145 = vmatprep.subr.mxu0 0.0
            %2146 = vmatpush1.msra.mxu0 0.0
            %2147 = vmatprep.subr.mxu0 0.0
            %2148 = vmatpush1.msra.mxu0 0.0
            %2149 = vmatprep.mubr.f32.mxu0 0.0
            %2150 = vmatmul.mubr.f32.gmra.mrb[0].mxu0 %v2038
            %v2151 = vpop.f32.mrb[0].mxu0
            %v2152 = vadd.f32 %v2035, %v2151
            %v2153 = vpop.f32.mrb[0].mxu0
            %2154 = vmatprep.mubr.f32.mxu0 0.0
            %2155 = vmatmul.mubr.f32.gmra.mrb[0].mxu0 %v2041
            %v2156 = vpop.f32.mrb[0].mxu0
            %v2157 = vadd.f32 %v2035, %v2156
            %v2158 = vpop.f32.mrb[0].mxu0
            %2159 = vmatprep.mubr.f32.mxu0 0.0
            %2160 = vmatmul.mubr.f32.gmra.mrb[0].mxu0 %v2044
            %v2161 = vpop.f32.mrb[0].mxu0
            %v2162 = vadd.f32 %v2035, %v2161
            %v2163 = vpop.f32.mrb[0].mxu0
            %2164 = vmatprep.mubr.f32.mxu0 0.0
            %2165 = vmatmul.mubr.f32.gmra.mrb[0].mxu0 %v2047
            %v2166 = vpop.f32.mrb[0].mxu0
            %v2167 = vadd.f32 %v2035, %v2166
            %v2168 = vpop.f32.mrb[0].mxu0
            %2169 = vmatprep.mubr.f32.mxu0 0.0
            %2170 = vmatmul.mubr.f32.gmra.mrb[0].mxu0 %v2050
            %v2171 = vpop.f32.mrb[0].mxu0
            %v2172 = vadd.f32 %v2035, %v2171
            %v2173 = vpop.f32.mrb[0].mxu0
            %2174 = vmatprep.mubr.f32.mxu0 0.0
            %2175 = vmatmul.mubr.f32.gmra.mrb[0].mxu0 %v2053
            %v2176 = vpop.f32.mrb[0].mxu0
            %v2177 = vadd.f32 %v2035, %v2176
            %v2178 = vpop.f32.mrb[0].mxu0
            %2179 = vmatprep.mubr.f32.mxu0 0.0
            %2180 = vmatmul.mubr.f32.gmra.mrb[0].mxu0 %v2056
            %v2181 = vpop.f32.mrb[0].mxu0
            %v2182 = vadd.f32 %v2035, %v2181
            %v2183 = vpop.f32.mrb[0].mxu0
            %2184 = vmatprep.mubr.f32.mxu0 0.0
            %2185 = vmatmul.mubr.f32.gmra.mrb[0].mxu0 %v2059
            %v2186 = vpop.f32.mrb[0].mxu0
            %v2187 = vadd.f32 %v2035, %v2186
            %v2188 = vpop.f32.mrb[0].mxu0
            %2189 = vmatprep.mubr.f32.mxu0 0.0
            %2190 = vmatmul.mubr.f32.gmra.mrb[0].mxu0 %v2062
            %v2191 = vpop.f32.mrb[0].mxu0
            %v2192 = vadd.f32 %v2035, %v2191
            %v2193 = vpop.f32.mrb[0].mxu0
            %2194 = vmatprep.mubr.f32.mxu0 0.0
            %2195 = vmatmul.mubr.f32.gmra.mrb[0].mxu0 %v2065
            %v2196 = vpop.f32.mrb[0].mxu0
            %v2197 = vadd.f32 %v2035, %v2196
            %v2198 = vpop.f32.mrb[0].mxu0
            %2199 = vmatprep.mubr.f32.mxu0 0.0
            %2200 = vmatmul.mubr.f32.gmra.mrb[0].mxu0 %v2068
            %v2201 = vpop.f32.mrb[0].mxu0
            %v2202 = vadd.f32 %v2035, %v2201
            %v2203 = vpop.f32.mrb[0].mxu0
            %2204 = vmatprep.mubr.f32.mxu0 0.0
            %2205 = vmatmul.mubr.f32.gmra.mrb[0].mxu0 %v2071
            %v2206 = vpop.f32.mrb[0].mxu0
            %v2207 = vadd.f32 %v2035, %v2206
            %v2208 = vpop.f32.mrb[0].mxu0
            %2209 = vmatprep.mubr.f32.mxu0 0.0
            %2210 = vmatmul.mubr.f32.gmra.mrb[0].mxu0 %v2074
            %v2211 = vpop.f32.mrb[0].mxu0
            %v2212 = vadd.f32 %v2035, %v2211
            %v2213 = vpop.f32.mrb[0].mxu0
            %2214 = vmatprep.mubr.f32.mxu0 0.0
            %2215 = vmatmul.mubr.f32.gmra.mrb[0].mxu0 %v2077
            %v2216 = vpop.f32.mrb[0].mxu0
            %v2217 = vadd.f32 %v2035, %v2216
            %v2218 = vpop.f32.mrb[0].mxu0
            %2219 = vmatprep.mubr.f32.mxu0 0.0
            %2220 = vmatmul.mubr.f32.gmra.mrb[0].mxu0 %v2080
            %v2221 = vpop.f32.mrb[0].mxu0
            %v2222 = vadd.f32 %v2035, %v2221
            %v2223 = vpop.f32.mrb[0].mxu0
            %2224 = vmatprep.mubr.f32.mxu0 0.0
            %2225 = vmatmul.mubr.f32.gmra.mrb[0].mxu0 %v2083
            %v2226 = vpop.f32.mrb[0].mxu0
            %v2227 = vadd.f32 %v2035, %v2226
            %v2228 = vpop.f32.mrb[0].mxu0
            %2229 = vdwg.mxu0
            %v2230 = vmax.f32 %v2152, 0.0
            %v2231 = vmax.f32 %v2157, 0.0
            %v2232 = vmax.f32 %v2162, 0.0
            %v2233 = vmax.f32 %v2167, 0.0
            %v2234 = vmax.f32 %v2172, 0.0
            %v2235 = vmax.f32 %v2177, 0.0
            %v2236 = vmax.f32 %v2182, 0.0
            %v2237 = vmax.f32 %v2187, 0.0
            %v2238 = vmax.f32 %v2192, 0.0
            %v2239 = vmax.f32 %v2197, 0.0
            %v2240 = vmax.f32 %v2202, 0.0
            %v2241 = vmax.f32 %v2207, 0.0
            %v2242 = vmax.f32 %v2212, 0.0
            %v2243 = vmax.f32 %v2217, 0.0
            %v2244 = vmax.f32 %v2222, 0.0
            %v2245 = vmax.f32 %v2227, 0.0
            %v2246 = vld [vmem:[%s10] sm:$0xff]
            %v2247 = vld [vmem:[%s10 + $0x8] sm:$0xff]
            %v2248 = vld [vmem:[%s10 + $0x10] sm:$0xff]
            %v2249 = vld [vmem:[%s10 + $0x18] sm:$0xff]
            %vm2250 = vcmask 261120
            %v2252 = vsel %vm2250, %v2230, 0
            %v2255 = vsel %vm2250, %v2231, 0
            %v2258 = vsel %vm2250, %v2232, 0
            %v2261 = vsel %vm2250, %v2233, 0
            %v2264 = vsel %vm2250, %v2234, 0
            %v2267 = vsel %vm2250, %v2235, 0
            %v2270 = vsel %vm2250, %v2236, 0
            %v2273 = vsel %vm2250, %v2237, 0
            %v2276 = vsel %vm2250, %v2238, 0
            %v2279 = vsel %vm2250, %v2239, 0
            %v2282 = vsel %vm2250, %v2240, 0
            %v2285 = vsel %vm2250, %v2241, 0
            %v2288 = vsel %vm2250, %v2242, 0
            %v2291 = vsel %vm2250, %v2243, 0
            %v2294 = vsel %vm2250, %v2244, 0
            %v2297 = vsel %vm2250, %v2245, 0
            %2299 = vmatprep.subr.mxu0 0.0
            %2300 = vmatpush1.msra.mxu0 %v2246
            %2301 = vmatprep.subr.mxu0 0.0
            %2302 = vmatpush1.msra.mxu0 %v2247
            %2303 = vmatprep.subr.mxu0 0.0
            %2304 = vmatpush1.msra.mxu0 %v2248
            %2305 = vmatprep.subr.mxu0 0.0
            %2306 = vmatpush1.msra.mxu0 %v2249
            %2307 = vmatprep.subr.mxu0 0.0
            %2308 = vmatpush1.msra.mxu0 0.0
            %2309 = vmatprep.subr.mxu0 0.0
            %2310 = vmatpush1.msra.mxu0 0.0
            %2311 = vmatprep.subr.mxu0 0.0
            %2312 = vmatpush1.msra.mxu0 0.0
            %2313 = vmatprep.subr.mxu0 0.0
            %2314 = vmatpush1.msra.mxu0 0.0
            %2315 = vmatprep.subr.mxu0 0.0
            %2316 = vmatpush1.msra.mxu0 0.0
            %2317 = vmatprep.subr.mxu0 0.0
            %2318 = vmatpush1.msra.mxu0 0.0
            %2319 = vmatprep.subr.mxu0 0.0
            %2320 = vmatpush1.msra.mxu0 0.0
            %2321 = vmatprep.subr.mxu0 0.0
            %2322 = vmatpush1.msra.mxu0 0.0
            %2323 = vmatprep.subr.mxu0 0.0
            %2324 = vmatpush1.msra.mxu0 0.0
            %2325 = vmatprep.subr.mxu0 0.0
            %2326 = vmatpush1.msra.mxu0 0.0
            %2327 = vmatprep.subr.mxu0 0.0
            %2328 = vmatpush1.msra.mxu0 0.0
            %2329 = vmatprep.subr.mxu0 0.0
            %2330 = vmatpush1.msra.mxu0 0.0
            %2331 = vmatprep.subr.mxu0 0.0
            %2332 = vmatpush1.msra.mxu0 0.0
            %2333 = vmatprep.subr.mxu0 0.0
            %2334 = vmatpush1.msra.mxu0 0.0
            %2335 = vmatprep.subr.mxu0 0.0
            %2336 = vmatpush1.msra.mxu0 0.0
            %2337 = vmatprep.subr.mxu0 0.0
            %2338 = vmatpush1.msra.mxu0 0.0
            %2339 = vmatprep.subr.mxu0 0.0
            %2340 = vmatpush1.msra.mxu0 0.0
            %2341 = vmatprep.subr.mxu0 0.0
            %2342 = vmatpush1.msra.mxu0 0.0
            %2343 = vmatprep.subr.mxu0 0.0
            %2344 = vmatpush1.msra.mxu0 0.0
            %2345 = vmatprep.subr.mxu0 0.0
            %2346 = vmatpush1.msra.mxu0 0.0
            %2347 = vmatprep.subr.mxu0 0.0
            %2348 = vmatpush1.msra.mxu0 0.0
            %2349 = vmatprep.subr.mxu0 0.0
            %2350 = vmatpush1.msra.mxu0 0.0
            %2351 = vmatprep.subr.mxu0 0.0
            %2352 = vmatpush1.msra.mxu0 0.0
            %2353 = vmatprep.subr.mxu0 0.0
            %2354 = vmatpush1.msra.mxu0 0.0
            %2355 = vmatprep.subr.mxu0 0.0
            %2356 = vmatpush1.msra.mxu0 0.0
            %2357 = vmatprep.subr.mxu0 0.0
            %2358 = vmatpush1.msra.mxu0 0.0
            %2359 = vmatprep.subr.mxu0 0.0
            %2360 = vmatpush1.msra.mxu0 0.0
            %2361 = vmatprep.subr.mxu0 0.0
            %2362 = vmatpush1.msra.mxu0 0.0
            %2363 = vmatprep.mubr.f32.mxu0 0.0
            %2364 = vmatmul.mubr.f32.gmra.mrb[0].mxu0 %v2252
            %v2365 = vpop.f32.mrb[0].mxu0
            %v2366 = vadd.f32 0.0, %v2365
            %v2367 = vpop.f32.mrb[0].mxu0
            %2368 = vmatprep.mubr.f32.mxu0 0.0
            %2369 = vmatmul.mubr.f32.gmra.mrb[0].mxu0 %v2255
            %v2370 = vpop.f32.mrb[0].mxu0
            %v2371 = vadd.f32 0.0, %v2370
            %v2372 = vpop.f32.mrb[0].mxu0
            %2373 = vmatprep.mubr.f32.mxu0 0.0
            %2374 = vmatmul.mubr.f32.gmra.mrb[0].mxu0 %v2258
            %v2375 = vpop.f32.mrb[0].mxu0
            %v2376 = vadd.f32 0.0, %v2375
            %v2377 = vpop.f32.mrb[0].mxu0
            %2378 = vmatprep.mubr.f32.mxu0 0.0
            %2379 = vmatmul.mubr.f32.gmra.mrb[0].mxu0 %v2261
            %v2380 = vpop.f32.mrb[0].mxu0
            %v2381 = vadd.f32 0.0, %v2380
            %v2382 = vpop.f32.mrb[0].mxu0
            %2383 = vmatprep.mubr.f32.mxu0 0.0
            %2384 = vmatmul.mubr.f32.gmra.mrb[0].mxu0 %v2264
            %v2385 = vpop.f32.mrb[0].mxu0
            %v2386 = vadd.f32 0.0, %v2385
            %v2387 = vpop.f32.mrb[0].mxu0
            %2388 = vmatprep.mubr.f32.mxu0 0.0
            %2389 = vmatmul.mubr.f32.gmra.mrb[0].mxu0 %v2267
            %v2390 = vpop.f32.mrb[0].mxu0
            %v2391 = vadd.f32 0.0, %v2390
            %v2392 = vpop.f32.mrb[0].mxu0
            %2393 = vmatprep.mubr.f32.mxu0 0.0
            %2394 = vmatmul.mubr.f32.gmra.mrb[0].mxu0 %v2270
            %v2395 = vpop.f32.mrb[0].mxu0
            %v2396 = vadd.f32 0.0, %v2395
            %v2397 = vpop.f32.mrb[0].mxu0
            %2398 = vmatprep.mubr.f32.mxu0 0.0
            %2399 = vmatmul.mubr.f32.gmra.mrb[0].mxu0 %v2273
            %v2400 = vpop.f32.mrb[0].mxu0
            %v2401 = vadd.f32 0.0, %v2400
            %v2402 = vpop.f32.mrb[0].mxu0
            %2403 = vmatprep.mubr.f32.mxu0 0.0
            %2404 = vmatmul.mubr.f32.gmra.mrb[0].mxu0 %v2276
            %v2405 = vpop.f32.mrb[0].mxu0
            %v2406 = vadd.f32 0.0, %v2405
            %v2407 = vpop.f32.mrb[0].mxu0
            %2408 = vmatprep.mubr.f32.mxu0 0.0
            %2409 = vmatmul.mubr.f32.gmra.mrb[0].mxu0 %v2279
            %v2410 = vpop.f32.mrb[0].mxu0
            %v2411 = vadd.f32 0.0, %v2410
            %v2412 = vpop.f32.mrb[0].mxu0
            %2413 = vmatprep.mubr.f32.mxu0 0.0
            %2414 = vmatmul.mubr.f32.gmra.mrb[0].mxu0 %v2282
            %v2415 = vpop.f32.mrb[0].mxu0
            %v2416 = vadd.f32 0.0, %v2415
            %v2417 = vpop.f32.mrb[0].mxu0
            %2418 = vmatprep.mubr.f32.mxu0 0.0
            %2419 = vmatmul.mubr.f32.gmra.mrb[0].mxu0 %v2285
            %v2420 = vpop.f32.mrb[0].mxu0
            %v2421 = vadd.f32 0.0, %v2420
            %v2422 = vpop.f32.mrb[0].mxu0
            %2423 = vmatprep.mubr.f32.mxu0 0.0
            %2424 = vmatmul.mubr.f32.gmra.mrb[0].mxu0 %v2288
            %v2425 = vpop.f32.mrb[0].mxu0
            %v2426 = vadd.f32 0.0, %v2425
            %v2427 = vpop.f32.mrb[0].mxu0
            %2428 = vmatprep.mubr.f32.mxu0 0.0
            %2429 = vmatmul.mubr.f32.gmra.mrb[0].mxu0 %v2291
            %v2430 = vpop.f32.mrb[0].mxu0
            %v2431 = vadd.f32 0.0, %v2430
            %v2432 = vpop.f32.mrb[0].mxu0
            %2433 = vmatprep.mubr.f32.mxu0 0.0
            %2434 = vmatmul.mubr.f32.gmra.mrb[0].mxu0 %v2294
            %v2435 = vpop.f32.mrb[0].mxu0
            %v2436 = vadd.f32 0.0, %v2435
            %v2437 = vpop.f32.mrb[0].mxu0
            %2438 = vmatprep.mubr.f32.mxu0 0.0
            %2439 = vmatmul.mubr.f32.gmra.mrb[0].mxu0 %v2297
            %v2440 = vpop.f32.mrb[0].mxu0
            %v2441 = vadd.f32 0.0, %v2440
            %v2442 = vpop.f32.mrb[0].mxu0
            %2443 = vdwg.mxu0
            %s2444 = scalar_lea.vmem [#allocation3], %s980
            %2445 = vst [vmem:[%s2444] sm:$0xff] %v2366
            %2446 = vst [vmem:[%s2444 + $0x8] sm:$0xff] %v2371
            %2447 = vst [vmem:[%s2444 + $0x10] sm:$0xff] %v2376
            %2448 = vst [vmem:[%s2444 + $0x18] sm:$0xff] %v2381
            %2449 = vst [vmem:[%s2444 + $0x20] sm:$0xff] %v2386
            %2450 = vst [vmem:[%s2444 + $0x28] sm:$0xff] %v2391
            %2451 = vst [vmem:[%s2444 + $0x30] sm:$0xff] %v2396
            %2452 = vst [vmem:[%s2444 + $0x38] sm:$0xff] %v2401
            %2453 = vst [vmem:[%s2444 + $0x40] sm:$0xff] %v2406
            %2454 = vst [vmem:[%s2444 + $0x48] sm:$0xff] %v2411
            %2455 = vst [vmem:[%s2444 + $0x50] sm:$0xff] %v2416
            %2456 = vst [vmem:[%s2444 + $0x58] sm:$0xff] %v2421
            %2457 = vst [vmem:[%s2444 + $0x60] sm:$0xff] %v2426
            %2458 = vst [vmem:[%s2444 + $0x68] sm:$0xff] %v2431
            %2459 = vst [vmem:[%s2444 + $0x70] sm:$0xff] %v2436
            %2460 = vst [vmem:[%s2444 + $0x78] sm:$0xff] %v2441
          $region256: #{rinet_forward.1} parent=247 // pred_fallthru
            _
        $region248: #{rinet_forward.1} parent=215 // pred_fallthru
          _
        %p2461 = scmp.eq.s32.totalorder %s28, 2
        // Predicated region
        $region257: #{rinet_forward.1} parent=215 // pred_check
          %p2462 = pneg %p2461
        $region258: #{rinet_forward.1} parent=215 // pred_check_branch
          %2464 = sbr.rel (%p2462) target = $region260
        $region259: #{rinet_forward.1} parent=215 // pred_region
          %p2465 = scmp.eq.s32.totalorder %s30, 0
          // Predicated region
          $region261: #{rinet_forward.1} parent=259 // pred_check
            %p2466 = pneg %p2465
          $region262: #{rinet_forward.1} parent=259 // pred_check_branch
            %2468 = sbr.rel (%p2466) target = $region264
          $region263: #{rinet_forward.1} parent=259 // pred_region
            %2469 = vst [vmem:[#allocation5] sm:$0xff] 0.0
            %2470 = vst [vmem:[#allocation5 + $0x8] sm:$0xff] 0.0
            %2471 = vst [vmem:[#allocation5 + $0x10] sm:$0xff] 0.0
            %2472 = vst [vmem:[#allocation5 + $0x18] sm:$0xff] 0.0
            %2473 = vst [vmem:[#allocation5 + $0x20] sm:$0xff] 0.0
            %2474 = vst [vmem:[#allocation5 + $0x28] sm:$0xff] 0.0
            %2475 = vst [vmem:[#allocation5 + $0x30] sm:$0xff] 0.0
            %2476 = vst [vmem:[#allocation5 + $0x38] sm:$0xff] 0.0
            %2477 = vst [vmem:[#allocation5 + $0x40] sm:$0xff] 0.0
            %2478 = vst [vmem:[#allocation5 + $0x48] sm:$0xff] 0.0
            %2479 = vst [vmem:[#allocation5 + $0x50] sm:$0xff] 0.0
            %2480 = vst [vmem:[#allocation5 + $0x58] sm:$0xff] 0.0
            %2481 = vst [vmem:[#allocation5 + $0x60] sm:$0xff] 0.0
            %2482 = vst [vmem:[#allocation5 + $0x68] sm:$0xff] 0.0
            %2483 = vst [vmem:[#allocation5 + $0x70] sm:$0xff] 0.0
            %2484 = vst [vmem:[#allocation5 + $0x78] sm:$0xff] 0.0
          $region264: #{rinet_forward.1} parent=259 // pred_fallthru
            _
          %v2485 = vld [vmem:[#allocation5] sm:$0xff]
          %v2486 = vld [vmem:[#allocation5 + $0x8] sm:$0xff]
          %v2487 = vld [vmem:[#allocation5 + $0x10] sm:$0xff]
          %v2488 = vld [vmem:[#allocation5 + $0x18] sm:$0xff]
          %v2489 = vld [vmem:[#allocation5 + $0x20] sm:$0xff]
          %v2490 = vld [vmem:[#allocation5 + $0x28] sm:$0xff]
          %v2491 = vld [vmem:[#allocation5 + $0x30] sm:$0xff]
          %v2492 = vld [vmem:[#allocation5 + $0x38] sm:$0xff]
          %v2493 = vld [vmem:[#allocation5 + $0x40] sm:$0xff]
          %v2494 = vld [vmem:[#allocation5 + $0x48] sm:$0xff]
          %v2495 = vld [vmem:[#allocation5 + $0x50] sm:$0xff]
          %v2496 = vld [vmem:[#allocation5 + $0x58] sm:$0xff]
          %v2497 = vld [vmem:[#allocation5 + $0x60] sm:$0xff]
          %v2498 = vld [vmem:[#allocation5 + $0x68] sm:$0xff]
          %v2499 = vld [vmem:[#allocation5 + $0x70] sm:$0xff]
          %v2500 = vld [vmem:[#allocation5 + $0x78] sm:$0xff]
          %v2501 = vld [vmem:[%s901] sm:$0xf]
          %v2502 = vld [vmem:[%s901 + $0x4] sm:$0xf]
          %v2503 = vld [vmem:[%s901 + $0x8] sm:$0xf]
          %v2504 = vld [vmem:[%s901 + $0xc] sm:$0xf]
          %v2505 = vld [vmem:[%s901 + $0x10] sm:$0xf]
          %v2506 = vld [vmem:[%s901 + $0x14] sm:$0xf]
          %v2507 = vld [vmem:[%s901 + $0x18] sm:$0xf]
          %v2508 = vld [vmem:[%s901 + $0x1c] sm:$0xf]
          %v2509 = vld [vmem:[%s901 + $0x20] sm:$0xf]
          %v2510 = vld [vmem:[%s901 + $0x24] sm:$0xf]
          %v2511 = vld [vmem:[%s901 + $0x28] sm:$0xf]
          %v2512 = vld [vmem:[%s901 + $0x2c] sm:$0xf]
          %v2513 = vld [vmem:[%s901 + $0x30] sm:$0xf]
          %v2514 = vld [vmem:[%s901 + $0x34] sm:$0xf]
          %v2515 = vld [vmem:[%s901 + $0x38] sm:$0xf]
          %v2516 = vld [vmem:[%s901 + $0x3c] sm:$0xf]
          %v2517 = vunpack.c.l.bf16 %v2501
          %v2518 = vunpack.c.l.bf16 %v2502
          %v2519 = vunpack.c.l.bf16 %v2503
          %v2520 = vunpack.c.l.bf16 %v2504
          %v2521 = vunpack.c.l.bf16 %v2505
          %v2522 = vunpack.c.l.bf16 %v2506
          %v2523 = vunpack.c.l.bf16 %v2507
          %v2524 = vunpack.c.l.bf16 %v2508
          %v2525 = vunpack.c.l.bf16 %v2509
          %v2526 = vunpack.c.l.bf16 %v2510
          %v2527 = vunpack.c.l.bf16 %v2511
          %v2528 = vunpack.c.l.bf16 %v2512
          %v2529 = vunpack.c.l.bf16 %v2513
          %v2530 = vunpack.c.l.bf16 %v2514
          %v2531 = vunpack.c.l.bf16 %v2515
          %v2532 = vunpack.c.l.bf16 %v2516
          %s2533 = scalar_lea.vmem [#allocation3], %s981
          %v2534 = vld [vmem:[%s2533] sm:$0xff]
          %v2535 = vld [vmem:[%s2533 + $0x8] sm:$0xff]
          %v2536 = vld [vmem:[%s2533 + $0x10] sm:$0xff]
          %v2537 = vld [vmem:[%s2533 + $0x18] sm:$0xff]
          %v2538 = vld [vmem:[%s2533 + $0x20] sm:$0xff]
          %v2539 = vld [vmem:[%s2533 + $0x28] sm:$0xff]
          %v2540 = vld [vmem:[%s2533 + $0x30] sm:$0xff]
          %v2541 = vld [vmem:[%s2533 + $0x38] sm:$0xff]
          %v2542 = vld [vmem:[%s2533 + $0x40] sm:$0xff]
          %v2543 = vld [vmem:[%s2533 + $0x48] sm:$0xff]
          %v2544 = vld [vmem:[%s2533 + $0x50] sm:$0xff]
          %v2545 = vld [vmem:[%s2533 + $0x58] sm:$0xff]
          %v2546 = vld [vmem:[%s2533 + $0x60] sm:$0xff]
          %v2547 = vld [vmem:[%s2533 + $0x68] sm:$0xff]
          %v2548 = vld [vmem:[%s2533 + $0x70] sm:$0xff]
          %v2549 = vld [vmem:[%s2533 + $0x78] sm:$0xff]
          %2550 = vmatprep.subr.mxu0 0.0
          %2551 = vmatpush1.msra.mxu0 %v2534
          %2552 = vmatprep.subr.mxu0 0.0
          %2553 = vmatpush1.msra.mxu0 %v2535
          %2554 = vmatprep.subr.mxu0 0.0
          %2555 = vmatpush1.msra.mxu0 %v2536
          %2556 = vmatprep.subr.mxu0 0.0
          %2557 = vmatpush1.msra.mxu0 %v2537
          %2558 = vmatprep.subr.mxu0 0.0
          %2559 = vmatpush1.msra.mxu0 %v2538
          %2560 = vmatprep.subr.mxu0 0.0
          %2561 = vmatpush1.msra.mxu0 %v2539
          %2562 = vmatprep.subr.mxu0 0.0
          %2563 = vmatpush1.msra.mxu0 %v2540
          %2564 = vmatprep.subr.mxu0 0.0
          %2565 = vmatpush1.msra.mxu0 %v2541
          %2566 = vmatprep.subr.mxu0 0.0
          %2567 = vmatpush1.msra.mxu0 %v2542
          %2568 = vmatprep.subr.mxu0 0.0
          %2569 = vmatpush1.msra.mxu0 %v2543
          %2570 = vmatprep.subr.mxu0 0.0
          %2571 = vmatpush1.msra.mxu0 %v2544
          %2572 = vmatprep.subr.mxu0 0.0
          %2573 = vmatpush1.msra.mxu0 %v2545
          %2574 = vmatprep.subr.mxu0 0.0
          %2575 = vmatpush1.msra.mxu0 %v2546
          %2576 = vmatprep.subr.mxu0 0.0
          %2577 = vmatpush1.msra.mxu0 %v2547
          %2578 = vmatprep.subr.mxu0 0.0
          %2579 = vmatpush1.msra.mxu0 %v2548
          %2580 = vmatprep.subr.mxu0 0.0
          %2581 = vmatpush1.msra.mxu0 %v2549
          %2582 = vmatprep.subr.mxu0 0.0
          %2583 = vmatpush1.msra.mxu0 0.0
          %2584 = vmatprep.subr.mxu0 0.0
          %2585 = vmatpush1.msra.mxu0 0.0
          %2586 = vmatprep.subr.mxu0 0.0
          %2587 = vmatpush1.msra.mxu0 0.0
          %2588 = vmatprep.subr.mxu0 0.0
          %2589 = vmatpush1.msra.mxu0 0.0
          %2590 = vmatprep.subr.mxu0 0.0
          %2591 = vmatpush1.msra.mxu0 0.0
          %2592 = vmatprep.subr.mxu0 0.0
          %2593 = vmatpush1.msra.mxu0 0.0
          %2594 = vmatprep.subr.mxu0 0.0
          %2595 = vmatpush1.msra.mxu0 0.0
          %2596 = vmatprep.subr.mxu0 0.0
          %2597 = vmatpush1.msra.mxu0 0.0
          %2598 = vmatprep.subr.mxu0 0.0
          %2599 = vmatpush1.msra.mxu0 0.0
          %2600 = vmatprep.subr.mxu0 0.0
          %2601 = vmatpush1.msra.mxu0 0.0
          %2602 = vmatprep.subr.mxu0 0.0
          %2603 = vmatpush1.msra.mxu0 0.0
          %2604 = vmatprep.subr.mxu0 0.0
          %2605 = vmatpush1.msra.mxu0 0.0
          %2606 = vmatprep.subr.mxu0 0.0
          %2607 = vmatpush1.msra.mxu0 0.0
          %2608 = vmatprep.subr.mxu0 0.0
          %2609 = vmatpush1.msra.mxu0 0.0
          %2610 = vmatprep.subr.mxu0 0.0
          %2611 = vmatpush1.msra.mxu0 0.0
          %2612 = vmatprep.subr.mxu0 0.0
          %2613 = vmatpush1.msra.mxu0 0.0
          %2614 = vmatprep.mubr.f32.mxu0 0.0
          %2615 = vmatmul.mubr.f32.gmra.mrb[0].mxu0 %v2517
          %v2616 = vpop.f32.mrb[0].mxu0
          %v2617 = vadd.f32 0.0, %v2616
          %v2618 = vpop.f32.mrb[0].mxu0
          %2619 = vmatprep.mubr.f32.mxu0 0.0
          %2620 = vmatmul.mubr.f32.gmra.mrb[0].mxu0 %v2518
          %v2621 = vpop.f32.mrb[0].mxu0
          %v2622 = vadd.f32 0.0, %v2621
          %v2623 = vpop.f32.mrb[0].mxu0
          %2624 = vmatprep.mubr.f32.mxu0 0.0
          %2625 = vmatmul.mubr.f32.gmra.mrb[0].mxu0 %v2519
          %v2626 = vpop.f32.mrb[0].mxu0
          %v2627 = vadd.f32 0.0, %v2626
          %v2628 = vpop.f32.mrb[0].mxu0
          %2629 = vmatprep.mubr.f32.mxu0 0.0
          %2630 = vmatmul.mubr.f32.gmra.mrb[0].mxu0 %v2520
          %v2631 = vpop.f32.mrb[0].mxu0
          %v2632 = vadd.f32 0.0, %v2631
          %v2633 = vpop.f32.mrb[0].mxu0
          %2634 = vmatprep.mubr.f32.mxu0 0.0
          %2635 = vmatmul.mubr.f32.gmra.mrb[0].mxu0 %v2521
          %v2636 = vpop.f32.mrb[0].mxu0
          %v2637 = vadd.f32 0.0, %v2636
          %v2638 = vpop.f32.mrb[0].mxu0
          %2639 = vmatprep.mubr.f32.mxu0 0.0
          %2640 = vmatmul.mubr.f32.gmra.mrb[0].mxu0 %v2522
          %v2641 = vpop.f32.mrb[0].mxu0
          %v2642 = vadd.f32 0.0, %v2641
          %v2643 = vpop.f32.mrb[0].mxu0
          %2644 = vmatprep.mubr.f32.mxu0 0.0
          %2645 = vmatmul.mubr.f32.gmra.mrb[0].mxu0 %v2523
          %v2646 = vpop.f32.mrb[0].mxu0
          %v2647 = vadd.f32 0.0, %v2646
          %v2648 = vpop.f32.mrb[0].mxu0
          %2649 = vmatprep.mubr.f32.mxu0 0.0
          %2650 = vmatmul.mubr.f32.gmra.mrb[0].mxu0 %v2524
          %v2651 = vpop.f32.mrb[0].mxu0
          %v2652 = vadd.f32 0.0, %v2651
          %v2653 = vpop.f32.mrb[0].mxu0
          %2654 = vmatprep.mubr.f32.mxu0 0.0
          %2655 = vmatmul.mubr.f32.gmra.mrb[0].mxu0 %v2525
          %v2656 = vpop.f32.mrb[0].mxu0
          %v2657 = vadd.f32 0.0, %v2656
          %v2658 = vpop.f32.mrb[0].mxu0
          %2659 = vmatprep.mubr.f32.mxu0 0.0
          %2660 = vmatmul.mubr.f32.gmra.mrb[0].mxu0 %v2526
          %v2661 = vpop.f32.mrb[0].mxu0
          %v2662 = vadd.f32 0.0, %v2661
          %v2663 = vpop.f32.mrb[0].mxu0
          %2664 = vmatprep.mubr.f32.mxu0 0.0
          %2665 = vmatmul.mubr.f32.gmra.mrb[0].mxu0 %v2527
          %v2666 = vpop.f32.mrb[0].mxu0
          %v2667 = vadd.f32 0.0, %v2666
          %v2668 = vpop.f32.mrb[0].mxu0
          %2669 = vmatprep.mubr.f32.mxu0 0.0
          %2670 = vmatmul.mubr.f32.gmra.mrb[0].mxu0 %v2528
          %v2671 = vpop.f32.mrb[0].mxu0
          %v2672 = vadd.f32 0.0, %v2671
          %v2673 = vpop.f32.mrb[0].mxu0
          %2674 = vmatprep.mubr.f32.mxu0 0.0
          %2675 = vmatmul.mubr.f32.gmra.mrb[0].mxu0 %v2529
          %v2676 = vpop.f32.mrb[0].mxu0
          %v2677 = vadd.f32 0.0, %v2676
          %v2678 = vpop.f32.mrb[0].mxu0
          %2679 = vmatprep.mubr.f32.mxu0 0.0
          %2680 = vmatmul.mubr.f32.gmra.mrb[0].mxu0 %v2530
          %v2681 = vpop.f32.mrb[0].mxu0
          %v2682 = vadd.f32 0.0, %v2681
          %v2683 = vpop.f32.mrb[0].mxu0
          %2684 = vmatprep.mubr.f32.mxu0 0.0
          %2685 = vmatmul.mubr.f32.gmra.mrb[0].mxu0 %v2531
          %v2686 = vpop.f32.mrb[0].mxu0
          %v2687 = vadd.f32 0.0, %v2686
          %v2688 = vpop.f32.mrb[0].mxu0
          %2689 = vmatprep.mubr.f32.mxu0 0.0
          %2690 = vmatmul.mubr.f32.gmra.mrb[0].mxu0 %v2532
          %v2691 = vpop.f32.mrb[0].mxu0
          %v2692 = vadd.f32 0.0, %v2691
          %v2693 = vpop.f32.mrb[0].mxu0
          %2694 = vdwg.mxu0
          %v2695 = vadd.f32 %v2485, %v2617
          %v2696 = vadd.f32 %v2486, %v2622
          %v2697 = vadd.f32 %v2487, %v2627
          %v2698 = vadd.f32 %v2488, %v2632
          %v2699 = vadd.f32 %v2489, %v2637
          %v2700 = vadd.f32 %v2490, %v2642
          %v2701 = vadd.f32 %v2491, %v2647
          %v2702 = vadd.f32 %v2492, %v2652
          %v2703 = vadd.f32 %v2493, %v2657
          %v2704 = vadd.f32 %v2494, %v2662
          %v2705 = vadd.f32 %v2495, %v2667
          %v2706 = vadd.f32 %v2496, %v2672
          %v2707 = vadd.f32 %v2497, %v2677
          %v2708 = vadd.f32 %v2498, %v2682
          %v2709 = vadd.f32 %v2499, %v2687
          %v2710 = vadd.f32 %v2500, %v2692
          %2711 = vst [vmem:[#allocation5] sm:$0xff] %v2695
          %2712 = vst [vmem:[#allocation5 + $0x8] sm:$0xff] %v2696
          %2713 = vst [vmem:[#allocation5 + $0x10] sm:$0xff] %v2697
          %2714 = vst [vmem:[#allocation5 + $0x18] sm:$0xff] %v2698
          %2715 = vst [vmem:[#allocation5 + $0x20] sm:$0xff] %v2699
          %2716 = vst [vmem:[#allocation5 + $0x28] sm:$0xff] %v2700
          %2717 = vst [vmem:[#allocation5 + $0x30] sm:$0xff] %v2701
          %2718 = vst [vmem:[#allocation5 + $0x38] sm:$0xff] %v2702
          %2719 = vst [vmem:[#allocation5 + $0x40] sm:$0xff] %v2703
          %2720 = vst [vmem:[#allocation5 + $0x48] sm:$0xff] %v2704
          %2721 = vst [vmem:[#allocation5 + $0x50] sm:$0xff] %v2705
          %2722 = vst [vmem:[#allocation5 + $0x58] sm:$0xff] %v2706
          %2723 = vst [vmem:[#allocation5 + $0x60] sm:$0xff] %v2707
          %2724 = vst [vmem:[#allocation5 + $0x68] sm:$0xff] %v2708
          %2725 = vst [vmem:[#allocation5 + $0x70] sm:$0xff] %v2709
          %2726 = vst [vmem:[#allocation5 + $0x78] sm:$0xff] %v2710
          %p2727 = scmp.eq.s32.totalorder %s30, 1
          // Predicated region
          $region265: #{rinet_forward.1} parent=259 // pred_check
            %p2728 = pneg %p2727
          $region266: #{rinet_forward.1} parent=259 // pred_check_branch
            %2730 = sbr.rel (%p2728) target = $region268
          $region267: #{rinet_forward.1} parent=259 // pred_region
            %v2731 = vld [vmem:[#allocation5] sm:$0xff]
            %v2732 = vld [vmem:[#allocation5 + $0x8] sm:$0xff]
            %v2733 = vld [vmem:[#allocation5 + $0x10] sm:$0xff]
            %v2734 = vld [vmem:[#allocation5 + $0x18] sm:$0xff]
            %v2735 = vld [vmem:[#allocation5 + $0x20] sm:$0xff]
            %v2736 = vld [vmem:[#allocation5 + $0x28] sm:$0xff]
            %v2737 = vld [vmem:[#allocation5 + $0x30] sm:$0xff]
            %v2738 = vld [vmem:[#allocation5 + $0x38] sm:$0xff]
            %v2739 = vld [vmem:[#allocation5 + $0x40] sm:$0xff]
            %v2740 = vld [vmem:[#allocation5 + $0x48] sm:$0xff]
            %v2741 = vld [vmem:[#allocation5 + $0x50] sm:$0xff]
            %v2742 = vld [vmem:[#allocation5 + $0x58] sm:$0xff]
            %v2743 = vld [vmem:[#allocation5 + $0x60] sm:$0xff]
            %v2744 = vld [vmem:[#allocation5 + $0x68] sm:$0xff]
            %v2745 = vld [vmem:[#allocation5 + $0x70] sm:$0xff]
            %v2746 = vld [vmem:[#allocation5 + $0x78] sm:$0xff]
            %v2747 = vld [vmem:[%s11] sm:$0x1]
            %v2749 = vlaneseq
            %v2750 = vshrl.u32 %v2749, 7
            %v2751 = vsub.s32 0, %v2750
            %v2752 = vrot.slane %v2747, %v2751
            %v2754 = vadd.f32 %v2731, %v2752
            %v2755 = vadd.f32 %v2732, %v2752
            %v2756 = vadd.f32 %v2733, %v2752
            %v2757 = vadd.f32 %v2734, %v2752
            %v2758 = vadd.f32 %v2735, %v2752
            %v2759 = vadd.f32 %v2736, %v2752
            %v2760 = vadd.f32 %v2737, %v2752
            %v2761 = vadd.f32 %v2738, %v2752
            %v2762 = vadd.f32 %v2739, %v2752
            %v2763 = vadd.f32 %v2740, %v2752
            %v2764 = vadd.f32 %v2741, %v2752
            %v2765 = vadd.f32 %v2742, %v2752
            %v2766 = vadd.f32 %v2743, %v2752
            %v2767 = vadd.f32 %v2744, %v2752
            %v2768 = vadd.f32 %v2745, %v2752
            %v2769 = vadd.f32 %v2746, %v2752
            %v2770 = vlaneseq
            %v2771 = vand.u32 %v2770, 127
            %vm2772 = vcmp.lt.s32.totalorder %v2771, 4
            %v2773 = vsel %vm2772, %v2754, -1e+30
            %v2774 = vsel %vm2772, %v2755, -1e+30
            %v2775 = vsel %vm2772, %v2756, -1e+30
            %v2776 = vsel %vm2772, %v2757, -1e+30
            %v2777 = vsel %vm2772, %v2758, -1e+30
            %v2778 = vsel %vm2772, %v2759, -1e+30
            %v2779 = vsel %vm2772, %v2760, -1e+30
            %v2780 = vsel %vm2772, %v2761, -1e+30
            %v2781 = vsel %vm2772, %v2762, -1e+30
            %v2782 = vsel %vm2772, %v2763, -1e+30
            %v2783 = vsel %vm2772, %v2764, -1e+30
            %v2784 = vsel %vm2772, %v2765, -1e+30
            %v2785 = vsel %vm2772, %v2766, -1e+30
            %v2786 = vsel %vm2772, %v2767, -1e+30
            %v2787 = vsel %vm2772, %v2768, -1e+30
            %v2788 = vsel %vm2772, %v2769, -1e+30
            %2789 = vmax.xlane.f32.xlu0 %v2773
            %v2790 = vpop.xlane.xlu0 %2789
            %2791 = vmax.xlane.f32.xlu0 %v2774
            %v2792 = vpop.xlane.xlu0 %2791
            %2793 = vmax.xlane.f32.xlu0 %v2775
            %v2794 = vpop.xlane.xlu0 %2793
            %2795 = vmax.xlane.f32.xlu0 %v2776
            %v2796 = vpop.xlane.xlu0 %2795
            %2797 = vmax.xlane.f32.xlu0 %v2777
            %v2798 = vpop.xlane.xlu0 %2797
            %2799 = vmax.xlane.f32.xlu0 %v2778
            %v2800 = vpop.xlane.xlu0 %2799
            %2801 = vmax.xlane.f32.xlu0 %v2779
            %v2802 = vpop.xlane.xlu0 %2801
            %2803 = vmax.xlane.f32.xlu0 %v2780
            %v2804 = vpop.xlane.xlu0 %2803
            %2805 = vmax.xlane.f32.xlu0 %v2781
            %v2806 = vpop.xlane.xlu0 %2805
            %2807 = vmax.xlane.f32.xlu0 %v2782
            %v2808 = vpop.xlane.xlu0 %2807
            %2809 = vmax.xlane.f32.xlu0 %v2783
            %v2810 = vpop.xlane.xlu0 %2809
            %2811 = vmax.xlane.f32.xlu0 %v2784
            %v2812 = vpop.xlane.xlu0 %2811
            %2813 = vmax.xlane.f32.xlu0 %v2785
            %v2814 = vpop.xlane.xlu0 %2813
            %2815 = vmax.xlane.f32.xlu0 %v2786
            %v2816 = vpop.xlane.xlu0 %2815
            %2817 = vmax.xlane.f32.xlu0 %v2787
            %v2818 = vpop.xlane.xlu0 %2817
            %2819 = vmax.xlane.f32.xlu0 %v2788
            %v2820 = vpop.xlane.xlu0 %2819
            %v2821 = vsub.f32 %v2773, %v2790
            %v2822 = vsub.f32 %v2774, %v2792
            %v2823 = vsub.f32 %v2775, %v2794
            %v2824 = vsub.f32 %v2776, %v2796
            %v2825 = vsub.f32 %v2777, %v2798
            %v2826 = vsub.f32 %v2778, %v2800
            %v2827 = vsub.f32 %v2779, %v2802
            %v2828 = vsub.f32 %v2780, %v2804
            %v2829 = vsub.f32 %v2781, %v2806
            %v2830 = vsub.f32 %v2782, %v2808
            %v2831 = vsub.f32 %v2783, %v2810
            %v2832 = vsub.f32 %v2784, %v2812
            %v2833 = vsub.f32 %v2785, %v2814
            %v2834 = vsub.f32 %v2786, %v2816
            %v2835 = vsub.f32 %v2787, %v2818
            %v2836 = vsub.f32 %v2788, %v2820
            %v2837 = vmul.f32 %v2821, 1.442695
            %v2838 = vpow.pop %v2837
            %v2839 = vmul.f32 %v2822, 1.442695
            %v2840 = vpow.pop %v2839
            %v2841 = vmul.f32 %v2823, 1.442695
            %v2842 = vpow.pop %v2841
            %v2843 = vmul.f32 %v2824, 1.442695
            %v2844 = vpow.pop %v2843
            %v2845 = vmul.f32 %v2825, 1.442695
            %v2846 = vpow.pop %v2845
            %v2847 = vmul.f32 %v2826, 1.442695
            %v2848 = vpow.pop %v2847
            %v2849 = vmul.f32 %v2827, 1.442695
            %v2850 = vpow.pop %v2849
            %v2851 = vmul.f32 %v2828, 1.442695
            %v2852 = vpow.pop %v2851
            %v2853 = vmul.f32 %v2829, 1.442695
            %v2854 = vpow.pop %v2853
            %v2855 = vmul.f32 %v2830, 1.442695
            %v2856 = vpow.pop %v2855
            %v2857 = vmul.f32 %v2831, 1.442695
            %v2858 = vpow.pop %v2857
            %v2859 = vmul.f32 %v2832, 1.442695
            %v2860 = vpow.pop %v2859
            %v2861 = vmul.f32 %v2833, 1.442695
            %v2862 = vpow.pop %v2861
            %v2863 = vmul.f32 %v2834, 1.442695
            %v2864 = vpow.pop %v2863
            %v2865 = vmul.f32 %v2835, 1.442695
            %v2866 = vpow.pop %v2865
            %v2867 = vmul.f32 %v2836, 1.442695
            %v2868 = vpow.pop %v2867
            %2869 = vadd.xlane.f32.xlu0 %v2838
            %v2870 = vpop.xlane.xlu0 %2869
            %2871 = vadd.xlane.f32.xlu0 %v2840
            %v2872 = vpop.xlane.xlu0 %2871
            %2873 = vadd.xlane.f32.xlu0 %v2842
            %v2874 = vpop.xlane.xlu0 %2873
            %2875 = vadd.xlane.f32.xlu0 %v2844
            %v2876 = vpop.xlane.xlu0 %2875
            %2877 = vadd.xlane.f32.xlu0 %v2846
            %v2878 = vpop.xlane.xlu0 %2877
            %2879 = vadd.xlane.f32.xlu0 %v2848
            %v2880 = vpop.xlane.xlu0 %2879
            %2881 = vadd.xlane.f32.xlu0 %v2850
            %v2882 = vpop.xlane.xlu0 %2881
            %2883 = vadd.xlane.f32.xlu0 %v2852
            %v2884 = vpop.xlane.xlu0 %2883
            %2885 = vadd.xlane.f32.xlu0 %v2854
            %v2886 = vpop.xlane.xlu0 %2885
            %2887 = vadd.xlane.f32.xlu0 %v2856
            %v2888 = vpop.xlane.xlu0 %2887
            %2889 = vadd.xlane.f32.xlu0 %v2858
            %v2890 = vpop.xlane.xlu0 %2889
            %2891 = vadd.xlane.f32.xlu0 %v2860
            %v2892 = vpop.xlane.xlu0 %2891
            %2893 = vadd.xlane.f32.xlu0 %v2862
            %v2894 = vpop.xlane.xlu0 %2893
            %2895 = vadd.xlane.f32.xlu0 %v2864
            %v2896 = vpop.xlane.xlu0 %2895
            %2897 = vadd.xlane.f32.xlu0 %v2866
            %v2898 = vpop.xlane.xlu0 %2897
            %2899 = vadd.xlane.f32.xlu0 %v2868
            %v2900 = vpop.xlane.xlu0 %2899
            %v2901 = vlog2.pop %v2870
            %v2902 = vmul.f32 %v2901, 0.6931472
            %v2903 = vlog2.pop %v2872
            %v2904 = vmul.f32 %v2903, 0.6931472
            %v2905 = vlog2.pop %v2874
            %v2906 = vmul.f32 %v2905, 0.6931472
            %v2907 = vlog2.pop %v2876
            %v2908 = vmul.f32 %v2907, 0.6931472
            %v2909 = vlog2.pop %v2878
            %v2910 = vmul.f32 %v2909, 0.6931472
            %v2911 = vlog2.pop %v2880
            %v2912 = vmul.f32 %v2911, 0.6931472
            %v2913 = vlog2.pop %v2882
            %v2914 = vmul.f32 %v2913, 0.6931472
            %v2915 = vlog2.pop %v2884
            %v2916 = vmul.f32 %v2915, 0.6931472
            %v2917 = vlog2.pop %v2886
            %v2918 = vmul.f32 %v2917, 0.6931472
            %v2919 = vlog2.pop %v2888
            %v2920 = vmul.f32 %v2919, 0.6931472
            %v2921 = vlog2.pop %v2890
            %v2922 = vmul.f32 %v2921, 0.6931472
            %v2923 = vlog2.pop %v2892
            %v2924 = vmul.f32 %v2923, 0.6931472
            %v2925 = vlog2.pop %v2894
            %v2926 = vmul.f32 %v2925, 0.6931472
            %v2927 = vlog2.pop %v2896
            %v2928 = vmul.f32 %v2927, 0.6931472
            %v2929 = vlog2.pop %v2898
            %v2930 = vmul.f32 %v2929, 0.6931472
            %v2931 = vlog2.pop %v2900
            %v2932 = vmul.f32 %v2931, 0.6931472
            %v2933 = vsub.f32 %v2821, %v2902
            %v2934 = vsub.f32 %v2822, %v2904
            %v2935 = vsub.f32 %v2823, %v2906
            %v2936 = vsub.f32 %v2824, %v2908
            %v2937 = vsub.f32 %v2825, %v2910
            %v2938 = vsub.f32 %v2826, %v2912
            %v2939 = vsub.f32 %v2827, %v2914
            %v2940 = vsub.f32 %v2828, %v2916
            %v2941 = vsub.f32 %v2829, %v2918
            %v2942 = vsub.f32 %v2830, %v2920
            %v2943 = vsub.f32 %v2831, %v2922
            %v2944 = vsub.f32 %v2832, %v2924
            %v2945 = vsub.f32 %v2833, %v2926
            %v2946 = vsub.f32 %v2834, %v2928
            %v2947 = vsub.f32 %v2835, %v2930
            %v2948 = vsub.f32 %v2836, %v2932
            %2949 = vst [vmem:[%s976] sm:$0xff] %v2933
            %2950 = vst [vmem:[%s976 + $0x8] sm:$0xff] %v2934
            %2951 = vst [vmem:[%s976 + $0x10] sm:$0xff] %v2935
            %2952 = vst [vmem:[%s976 + $0x18] sm:$0xff] %v2936
            %2953 = vst [vmem:[%s976 + $0x20] sm:$0xff] %v2937
            %2954 = vst [vmem:[%s976 + $0x28] sm:$0xff] %v2938
            %2955 = vst [vmem:[%s976 + $0x30] sm:$0xff] %v2939
            %2956 = vst [vmem:[%s976 + $0x38] sm:$0xff] %v2940
            %2957 = vst [vmem:[%s976 + $0x40] sm:$0xff] %v2941
            %2958 = vst [vmem:[%s976 + $0x48] sm:$0xff] %v2942
            %2959 = vst [vmem:[%s976 + $0x50] sm:$0xff] %v2943
            %2960 = vst [vmem:[%s976 + $0x58] sm:$0xff] %v2944
            %2961 = vst [vmem:[%s976 + $0x60] sm:$0xff] %v2945
            %2962 = vst [vmem:[%s976 + $0x68] sm:$0xff] %v2946
            %2963 = vst [vmem:[%s976 + $0x70] sm:$0xff] %v2947
            %2964 = vst [vmem:[%s976 + $0x78] sm:$0xff] %v2948
          $region268: #{rinet_forward.1} parent=259 // pred_fallthru
            _
        $region260: #{rinet_forward.1} parent=215 // pred_fallthru
          _
        %p2965 = scmp.eq.s32.totalorder %s28, 2
        %s2966 = scalar_select %p2965, %s29, 0
        %s2967 = smul.u32 16, %s2966
        %p2968 = scmp.lt.s32.totalorder %s2967, 31
        %s2969 = scalar_select %p2968, %s2967, 31
        %s2970 = smul.addr %s2969, 8
        %s2971 = scalar_lea.vmem %s12, %s2970
        // Predicated region
        $region269: #{rinet_forward.1} parent=215 // pred_check
          %p2972 = pneg %p368
        $region270: #{rinet_forward.1} parent=215 // pred_check_branch
          %2974 = sbr.rel (%p2972) target = $region272
        $region271: #{rinet_forward.1} parent=215 // pred_region
          %p2975 = scmp.eq.s32.totalorder %s28, 2
          %s2976 = scalar_select %p2975, %s29, 0
          %s2977 = smul.u32 16, %s2976
        $region272: #{rinet_forward.1} parent=215 // pred_fallthru
          _
      $region216: #{rinet_forward.1} parent=5 // pred_fallthru
        _
      %p2978 = scmp.le.s32.totalorder 2, %s18
      // Predicated region
      $region273: #{rinet_forward.1} parent=5 // pred_check
        %p2979 = pneg %p2978
      $region274: #{rinet_forward.1} parent=5 // pred_check_branch
        %2981 = sbr.rel (%p2979) target = $region276
      $region275: #{rinet_forward.1} parent=5 // pred_region
        %s2982 = ssub.s32 %s18, 2
        // Predicated region
        $region277: #{rinet_forward.1} parent=275 // pred_check
          %p2983 = pneg %p374
        $region278: #{rinet_forward.1} parent=275 // pred_check_branch
          %2985 = sbr.rel (%p2983) target = $region280
        $region279: #{rinet_forward.1} parent=275 // pred_region
          %p2986 = scmp.eq.s32.totalorder %s31, 2
          %s2987 = scalar_select %p2986, %s32, 0
          %s2988 = smul.u32 16, %s2987
          %p2989 = scmp.lt.s32.totalorder %s2988, 31
          %s2990 = scalar_select %p2989, %s2988, 31
          %s2991 = smul.addr %s2990, 8
          %s2992 = scalar_lea.vmem %s12, %s2991
        $region280: #{rinet_forward.1} parent=275 // pred_fallthru
          _
      $region276: #{rinet_forward.1} parent=5 // pred_fallthru
        _
    $region6: #{rinet_forward.1} parent=1 // loop_footer
      %s22 = sadd.s32 1, %s18
    $region7: #{rinet_forward.1} parent=1 // loop_footer_branch
      %17 = sbr.rel target = $region3
    $region8: #{rinet_forward.1} parent=1 // loop_exit
      _

</llo_original>
